<compile_context>
chip_gen: v6e
topology: v6e:2x2x1
jax: 0.10.0
libtpu: 0.0.40
codegen_flags: <defaults>
</compile_context>

<pallas_src>
import functools

import jax
import jax.numpy as jnp
from jax.experimental import pallas as pl
from jax.experimental.pallas import tpu as pltpu


_VMEM_LIMIT_BYTES = 48 * 1024 * 1024   # < v7x's 64 MiB physical; tiles use ~10-15 MiB


# --------------------------------------------------------------------------
# helpers
# --------------------------------------------------------------------------
def _cdiv(a, b):
    return (a + b - 1) // b


def _round_up(x, m):
    return _cdiv(x, m) * m


def _lane_tile(m, max_tile):
    """Tile the last (lane) dimension of extent m.

    Small extents use one full-extent block; large extents use 128-aligned tiles
    capped at ~m/2 so the parallel grid axis has >=2 steps (v7x megacore).  The
    ragged last block is handled by Pallas edge masking (no jnp.pad copies)."""
    if m <= max_tile:
        return m, 1
    tm = min(max_tile, _round_up(_cdiv(m, 2), 128))
    return tm, _cdiv(m, tm)


# --------------------------------------------------------------------------
# In-kernel math: exact-erf GELU (A&S 7.1.26, |err| ~ 1.5e-7, exact divide)
# --------------------------------------------------------------------------
def _erf(x):
    a1, a2, a3, a4, a5 = (0.254829592, -0.284496736, 1.421413741,
                          -1.453152027, 1.061405429)
    p = 0.3275911
    sgn = jnp.where(x >= 0.0, 1.0, -1.0)
    ax = jnp.abs(x)
    t = 1.0 / (1.0 + p * ax)
    poly = ((((a5 * t + a4) * t + a3) * t + a2) * t + a1) * t
    return sgn * (1.0 - poly * jnp.exp(-ax * ax))


def _gelu(x):
    # nn.GELU() default: 0.5*x*(1+erf(x/sqrt(2))); applied BEFORE the pool max.
    return 0.5 * x * (1.0 + _erf(x * 0.7071067811865476))


# --------------------------------------------------------------------------
# Fused conv stage: 4x(matmul + bias + GELU) -> max  ==  conv+BN+GELU+maxpool(2,2)
# Inputs are channel-major patch stacks; output (Cout, TM) is lane-dense.
# --------------------------------------------------------------------------
def _conv_gelu_pool_kernel(p_ref, w_ref, b_ref, o_ref):
    w = w_ref[...]                         # (Cout, K) bf16
    b = b_ref[...]                         # (Cout, 1) f32

    def branch(j):
        z = jnp.dot(w, p_ref[j], preferred_element_type=jnp.float32) + b
        return _gelu(z)

    g = jnp.maximum(jnp.maximum(branch(0), branch(1)),
                    jnp.maximum(branch(2), branch(3)))
    o_ref[...] = g.astype(o_ref.dtype)


def conv_gelu_pool(patches, w, b, *, max_tile=4096):
    """patches: (4, K, M) bf16 stacked pool-position patch matrices."""
    _, k, m = patches.shape
    cout = w.shape[0]
    tm, grid = _lane_tile(m, max_tile)
    return pl.pallas_call(
        _conv_gelu_pool_kernel,
        out_shape=jax.ShapeDtypeStruct((cout, m), jnp.bfloat16),
        grid=(grid,),
        in_specs=[
            pl.BlockSpec((4, k, tm), lambda i: (0, 0, i)),
            pl.BlockSpec((cout, k), lambda i: (0, 0)),
            pl.BlockSpec((cout, 1), lambda i: (0, 0)),
        ],
        out_specs=pl.BlockSpec((cout, tm), lambda i: (0, i)),
        compiler_params=pltpu.CompilerParams(
            dimension_semantics=("parallel",),
            vmem_limit_bytes=_VMEM_LIMIT_BYTES),
    )(patches, w, b)


# --------------------------------------------------------------------------
# Fused fc head: Linear(1568,64) + GELU + Linear(64,out); consumes the
# channel-major (1568, N) flatten directly, output (out_pad, TN) lane-dense in N.
# --------------------------------------------------------------------------
def _fc_fused_kernel(a_ref, w1_ref, b1_ref, w2_ref, b2_ref, o_ref):
    h = jnp.dot(w1_ref[...], a_ref[...],
                preferred_element_type=jnp.float32) + b1_ref[...]
    h = _gelu(h).astype(w2_ref.dtype)
    o = jnp.dot(w2_ref[...], h, preferred_element_type=jnp.float32) + b2_ref[...]
    o_ref[...] = o.astype(o_ref.dtype)


def fc_fused(a, w1, b1, w2, b2, *, max_tile=1024):
    k, n = a.shape                          # (1568, N)
    hid = w1.shape[0]                       # 64
    n_out = w2.shape[0]                     # out_size padded to multiple of 8
    tn, grid = _lane_tile(n, max_tile)
    return pl.pallas_call(
        _fc_fused_kernel,
        out_shape=jax.ShapeDtypeStruct((n_out, n), jnp.float32),
        grid=(grid,),
        in_specs=[
            pl.BlockSpec((k, tn), lambda i: (0, i)),
            pl.BlockSpec((hid, k), lambda i: (0, 0)),
            pl.BlockSpec((hid, 1), lambda i: (0, 0)),
            pl.BlockSpec((n_out, hid), lambda i: (0, 0)),
            pl.BlockSpec((n_out, 1), lambda i: (0, 0)),
        ],
        out_specs=pl.BlockSpec((n_out, tn), lambda i: (0, i)),
        compiler_params=pltpu.CompilerParams(
            dimension_semantics=("parallel",),
            vmem_limit_bytes=_VMEM_LIMIT_BYTES),
    )(a, w1, b1, w2, b2)


# --------------------------------------------------------------------------
# im2col per pool position (3x3 conv, pad=1, stride=1; maxpool window 2x2),
# channel-major / batch-minor, built once as a single stacked array.
# --------------------------------------------------------------------------
POOL_POS = ((0, 0), (0, 1), (1, 0), (1, 1))


def pooled_patches(xp, ho, wo):
    """xp: (C, H+2, W+2, N) spatially zero-padded activation.
    Returns (4, 9*C, ho*wo*N): one (K, M) patch matrix per pool position, with
    K rows ordered (cin, kh, kw) to match w.reshape(Cout, Cin*9) and columns
    ordered (oh, ow, n)."""
    c, _, _, n = xp.shape
    mats = []
    for ph, pw in POOL_POS:
        taps = []
        for kh in range(3):
            for kw in range(3):
                r0, c0 = ph + kh, pw + kw
                taps.append(xp[:, r0:r0 + 2 * ho:2, c0:c0 + 2 * wo:2, :])
        t = jnp.stack(taps, axis=1)               # (C, 9, ho, wo, N)
        mats.append(t.reshape(c * 9, ho * wo * n))
    return jnp.stack(mats, axis=0)                # (4, 9C, ho*wo*N)


# --------------------------------------------------------------------------
# Deterministic parameter init (shapes from NeuralNet.__init__); eval-mode BN
# folded into the conv weights/biases; weights stored bf16, biases f32 columns.
# --------------------------------------------------------------------------
def init_params(key, out_size):
    ks = jax.random.split(key, 8)

    def u(k, shape, fan_in):
        bound = 1.0 / float(fan_in) ** 0.5
        return jax.random.uniform(k, shape, jnp.float32, -bound, bound)

    eps = 1e-5

    def fold_bn(w_cout_k, bias, c):
        # TODO(synk): eval-mode BatchNorm with PyTorch default stats (gamma=1,
        # beta=0, mean=0, var=1); trained running stats must be threaded in here.
        gamma = jnp.ones((c,), jnp.float32)
        beta = jnp.zeros((c,), jnp.float32)
        rmean = jnp.zeros((c,), jnp.float32)
        rvar = jnp.ones((c,), jnp.float32)
        scale = gamma / jnp.sqrt(rvar + eps)
        shift = beta - rmean * scale
        w = w_cout_k * scale[:, None]
        b = bias * scale + shift
        return w.astype(jnp.bfloat16), b[:, None]     # (Cout,K) bf16, (Cout,1) f32

    p = {}

    # Conv2d(3, 16, 3, padding=1): PyTorch weight (Cout,Cin,kh,kw) -> (Cout, Cin*9)
    w1_pt = u(ks[0], (16, 3, 3, 3), 27)
    b1_pt = u(ks[1], (16,), 27)
    p["w1"], p["b1"] = fold_bn(w1_pt.reshape(16, 27), b1_pt, 16)

    # Conv2d(16, 32, 3, padding=1)
    w2_pt = u(ks[2], (32, 16, 3, 3), 144)
    b2_pt = u(ks[3], (32,), 144)
    p["w2"], p["b2"] = fold_bn(w2_pt.reshape(32, 144), b2_pt, 32)

    # Linear(32*7*7, 64): weight used as-is — its column index c*49 + h*7 + w
    # matches the channel-major (1568, N) activation produced by the conv stages.
    p["fw1"] = u(ks[4], (64, 1568), 1568).astype(jnp.bfloat16)
    p["fb1"] = u(ks[5], (64,), 1568)[:, None]

    # Linear(64, out_size), output rows zero-padded to a multiple of 8 sublanes.
    n_pad = _round_up(out_size, 8)
    fw2_pt = u(ks[6], (out_size, 64), 64)
    fb2_pt = u(ks[7], (out_size,), 64)
    p["fw2"] = (jnp.zeros((n_pad, 64), jnp.float32)
                .at[:out_size].set(fw2_pt).astype(jnp.bfloat16))
    p["fb2"] = jnp.zeros((n_pad, 1), jnp.float32).at[:out_size, 0].set(fb2_pt)
    return p


# --------------------------------------------------------------------------
# Forward pass (inference semantics: Dropout = identity, BN = running stats)
# --------------------------------------------------------------------------
@functools.partial(jax.jit, static_argnames=("out_size",))
def forward(params, x, *, out_size):
    n = x.shape[0]
    # PyTorch: x.view(-1, 3, 31, 31); go channel-major / batch-minor (C,H,W,N).
    x = x.reshape(n, 3, 31, 31).astype(jnp.bfloat16)
    x = jnp.transpose(x, (1, 2, 3, 0))                        # (3, 31, 31, N)

    # conv1 -> BN -> GELU -> maxpool(2,2)   (one fused Pallas kernel)
    xp = jnp.pad(x, ((0, 0), (1, 1), (1, 1), (0, 0)))
    z = conv_gelu_pool(pooled_patches(xp, 15, 15), params["w1"], params["b1"])
    z = z.reshape(16, 15, 15, n)                              # Dropout(0.1) = id

    # conv2 -> BN -> GELU -> maxpool(2,2)   (one fused Pallas kernel)
    zp = jnp.pad(z, ((0, 0), (1, 1), (1, 1), (0, 0)))
    z = conv_gelu_pool(pooled_patches(zp, 7, 7), params["w2"], params["b2"])

    # flatten: (32, 49N) -> (1568, N); row index c*49 + h*7 + w == PyTorch's
    # x.view(N, -1) feature order.                            # Dropout(0.2) = id
    a = z.reshape(32 * 49, n)

    # fc1 -> GELU -> fc2   (one fused Pallas kernel; Dropout(0.2) = id)
    out = fc_fused(a, params["fw1"], params["fb1"], params["fw2"], params["fb2"])
    return out[:out_size].T                                   # (N, out_size) f32


if __name__ == "__main__":
    key = jax.random.PRNGKey(0)
    kx, kp = jax.random.split(key)

    N = 2
    out_size = 4
    in_size = 3 * 31 * 31                     # forced by x.view(-1, 3, 31, 31)

    x = jax.random.normal(kx, (N, in_size), jnp.float32)
    params = init_params(kp, out_size)

    y = forward(params, x, out_size=out_size)
    y = jax.block_until_ready(y)
    assert y.shape == (N, out_size), y.shape
    assert bool(jnp.all(jnp.isfinite(y)))
    print("KERNEL_OK")
</pallas_src>

<mosaic_0001>
module attributes {stable_mosaic.version = 11 : i64} {
  func.func @_conv_gelu_pool_kernel(%arg0: i32, %arg1: memref<4x27x450xbf16, #tpu.memory_space<vmem>>, %arg2: memref<16x27xbf16, #tpu.memory_space<vmem>>, %arg3: memref<16x1xf32, #tpu.memory_space<vmem>>, %arg4: memref<16x450xbf16, #tpu.memory_space<vmem>>) attributes {dimension_semantics = [#tpu.dimension_semantics<parallel>], iteration_bounds = array<i64: 1>, scalar_prefetch = 0 : i64, scratch_operands = 0 : i64, tpu.core_type = #tpu.core_type<tc>, window_params = [{transform_indices = @transform_0, window_bounds = array<i64: 4, 27, 450>}, {pipeline_mode = #tpu.pipeline_mode<synchronous>, transform_indices = @transform_1, window_bounds = array<i64: 16, 27>}, {pipeline_mode = #tpu.pipeline_mode<synchronous>, transform_indices = @transform_2, window_bounds = array<i64: 16, 1>}, {transform_indices = @transform_3, window_bounds = array<i64: 16, 450>}]} {
    %c0 = arith.constant 0 : index
    %c0_0 = arith.constant 0 : index
    %0 = vector.load %arg2[%c0, %c0_0] : memref<16x27xbf16, #tpu.memory_space<vmem>>, vector<16x27xbf16>
    %c0_1 = arith.constant 0 : index
    %c0_2 = arith.constant 0 : index
    %1 = vector.load %arg3[%c0_1, %c0_2] : memref<16x1xf32, #tpu.memory_space<vmem>>, vector<16x1xf32>
    %c0_3 = arith.constant 0 : index
    %c0_4 = arith.constant 0 : index
    %c0_5 = arith.constant 0 : index
    %2 = vector.load %arg1[%c0_3, %c0_4, %c0_5] : memref<4x27x450xbf16, #tpu.memory_space<vmem>>, vector<1x27x450xbf16>
    %3 = vector.shape_cast %2 : vector<1x27x450xbf16> to vector<27x450xbf16>
    %cst = arith.constant dense<0.000000e+00> : vector<16x450xf32>
    %4 = tpu.matmul %0, %3, %cst {dimension_numbers = #tpu.dot_dimension_numbers<[1], [0], [0], [1], [0, 0, 1, 1], [], []>} : vector<16x27xbf16>, vector<27x450xbf16>, vector<16x450xf32> -> vector<16x450xf32>
    %5 = vector.broadcast %1 : vector<16x1xf32> to vector<16x450xf32>
    %6 = arith.addf %4, %5 : vector<16x450xf32>
    %cst_6 = arith.constant 5.000000e-01 : f32
    %7 = vector.broadcast %cst_6 : f32 to vector<16x450xf32>
    %8 = arith.mulf %7, %6 : vector<16x450xf32>
    %cst_7 = arith.constant 0.707106769 : f32
    %9 = vector.broadcast %cst_7 : f32 to vector<16x450xf32>
    %10 = arith.mulf %6, %9 : vector<16x450xf32>
    %cst_8 = arith.constant 0.000000e+00 : f32
    %11 = vector.broadcast %cst_8 : f32 to vector<16x450xf32>
    %12 = arith.cmpf oge, %10, %11 : vector<16x450xf32>
    %cst_9 = arith.constant 1.000000e+00 : f32
    %cst_10 = arith.constant -1.000000e+00 : f32
    %13 = vector.broadcast %cst_9 : f32 to vector<16x450xf32>
    %14 = vector.broadcast %cst_10 : f32 to vector<16x450xf32>
    %15 = arith.select %12, %13, %14 : vector<16x450xi1>, vector<16x450xf32>
    %16 = math.absf %10 : vector<16x450xf32>
    %cst_11 = arith.constant 0.327591091 : f32
    %17 = vector.broadcast %cst_11 : f32 to vector<16x450xf32>
    %18 = arith.mulf %17, %16 : vector<16x450xf32>
    %cst_12 = arith.constant 1.000000e+00 : f32
    %19 = vector.broadcast %cst_12 : f32 to vector<16x450xf32>
    %20 = arith.addf %19, %18 : vector<16x450xf32>
    %cst_13 = arith.constant 1.000000e+00 : f32
    %21 = vector.broadcast %cst_13 : f32 to vector<16x450xf32>
    %22 = arith.divf %21, %20 : vector<16x450xf32>
    %cst_14 = arith.constant 1.06140542 : f32
    %23 = vector.broadcast %cst_14 : f32 to vector<16x450xf32>
    %24 = arith.mulf %23, %22 : vector<16x450xf32>
    %cst_15 = arith.constant -1.45315206 : f32
    %25 = vector.broadcast %cst_15 : f32 to vector<16x450xf32>
    %26 = arith.addf %24, %25 : vector<16x450xf32>
    %27 = arith.mulf %26, %22 : vector<16x450xf32>
    %cst_16 = arith.constant 1.42141378 : f32
    %28 = vector.broadcast %cst_16 : f32 to vector<16x450xf32>
    %29 = arith.addf %27, %28 : vector<16x450xf32>
    %30 = arith.mulf %29, %22 : vector<16x450xf32>
    %cst_17 = arith.constant -0.284496725 : f32
    %31 = vector.broadcast %cst_17 : f32 to vector<16x450xf32>
    %32 = arith.addf %30, %31 : vector<16x450xf32>
    %33 = arith.mulf %32, %22 : vector<16x450xf32>
    %cst_18 = arith.constant 0.254829586 : f32
    %34 = vector.broadcast %cst_18 : f32 to vector<16x450xf32>
    %35 = arith.addf %33, %34 : vector<16x450xf32>
    %36 = arith.mulf %35, %22 : vector<16x450xf32>
    %cst_19 = arith.constant 0.000000e+00 : f32
    %37 = vector.broadcast %cst_19 : f32 to vector<16x450xf32>
    %38 = arith.subf %37, %16 : vector<16x450xf32>
    %39 = arith.mulf %38, %16 : vector<16x450xf32>
    %40 = math.exp %39 : vector<16x450xf32>
    %41 = arith.mulf %36, %40 : vector<16x450xf32>
    %cst_20 = arith.constant 1.000000e+00 : f32
    %42 = vector.broadcast %cst_20 : f32 to vector<16x450xf32>
    %43 = arith.subf %42, %41 : vector<16x450xf32>
    %44 = arith.mulf %15, %43 : vector<16x450xf32>
    %cst_21 = arith.constant 1.000000e+00 : f32
    %45 = vector.broadcast %cst_21 : f32 to vector<16x450xf32>
    %46 = arith.addf %45, %44 : vector<16x450xf32>
    %47 = arith.mulf %8, %46 : vector<16x450xf32>
    %c1 = arith.constant 1 : index
    %c0_22 = arith.constant 0 : index
    %c0_23 = arith.constant 0 : index
    %48 = vector.load %arg1[%c1, %c0_22, %c0_23] : memref<4x27x450xbf16, #tpu.memory_space<vmem>>, vector<1x27x450xbf16>
    %49 = vector.shape_cast %48 : vector<1x27x450xbf16> to vector<27x450xbf16>
    %cst_24 = arith.constant dense<0.000000e+00> : vector<16x450xf32>
    %50 = tpu.matmul %0, %49, %cst_24 {dimension_numbers = #tpu.dot_dimension_numbers<[1], [0], [0], [1], [0, 0, 1, 1], [], []>} : vector<16x27xbf16>, vector<27x450xbf16>, vector<16x450xf32> -> vector<16x450xf32>
    %51 = vector.broadcast %1 : vector<16x1xf32> to vector<16x450xf32>
    %52 = arith.addf %50, %51 : vector<16x450xf32>
    %cst_25 = arith.constant 5.000000e-01 : f32
    %53 = vector.broadcast %cst_25 : f32 to vector<16x450xf32>
    %54 = arith.mulf %53, %52 : vector<16x450xf32>
    %cst_26 = arith.constant 0.707106769 : f32
    %55 = vector.broadcast %cst_26 : f32 to vector<16x450xf32>
    %56 = arith.mulf %52, %55 : vector<16x450xf32>
    %cst_27 = arith.constant 0.000000e+00 : f32
    %57 = vector.broadcast %cst_27 : f32 to vector<16x450xf32>
    %58 = arith.cmpf oge, %56, %57 : vector<16x450xf32>
    %cst_28 = arith.constant 1.000000e+00 : f32
    %cst_29 = arith.constant -1.000000e+00 : f32
    %59 = vector.broadcast %cst_28 : f32 to vector<16x450xf32>
    %60 = vector.broadcast %cst_29 : f32 to vector<16x450xf32>
    %61 = arith.select %58, %59, %60 : vector<16x450xi1>, vector<16x450xf32>
    %62 = math.absf %56 : vector<16x450xf32>
    %cst_30 = arith.constant 0.327591091 : f32
    %63 = vector.broadcast %cst_30 : f32 to vector<16x450xf32>
    %64 = arith.mulf %63, %62 : vector<16x450xf32>
    %cst_31 = arith.constant 1.000000e+00 : f32
    %65 = vector.broadcast %cst_31 : f32 to vector<16x450xf32>
    %66 = arith.addf %65, %64 : vector<16x450xf32>
    %cst_32 = arith.constant 1.000000e+00 : f32
    %67 = vector.broadcast %cst_32 : f32 to vector<16x450xf32>
    %68 = arith.divf %67, %66 : vector<16x450xf32>
    %cst_33 = arith.constant 1.06140542 : f32
    %69 = vector.broadcast %cst_33 : f32 to vector<16x450xf32>
    %70 = arith.mulf %69, %68 : vector<16x450xf32>
    %cst_34 = arith.constant -1.45315206 : f32
    %71 = vector.broadcast %cst_34 : f32 to vector<16x450xf32>
    %72 = arith.addf %70, %71 : vector<16x450xf32>
    %73 = arith.mulf %72, %68 : vector<16x450xf32>
    %cst_35 = arith.constant 1.42141378 : f32
    %74 = vector.broadcast %cst_35 : f32 to vector<16x450xf32>
    %75 = arith.addf %73, %74 : vector<16x450xf32>
    %76 = arith.mulf %75, %68 : vector<16x450xf32>
    %cst_36 = arith.constant -0.284496725 : f32
    %77 = vector.broadcast %cst_36 : f32 to vector<16x450xf32>
    %78 = arith.addf %76, %77 : vector<16x450xf32>
    %79 = arith.mulf %78, %68 : vector<16x450xf32>
    %cst_37 = arith.constant 0.254829586 : f32
    %80 = vector.broadcast %cst_37 : f32 to vector<16x450xf32>
    %81 = arith.addf %79, %80 : vector<16x450xf32>
    %82 = arith.mulf %81, %68 : vector<16x450xf32>
    %cst_38 = arith.constant 0.000000e+00 : f32
    %83 = vector.broadcast %cst_38 : f32 to vector<16x450xf32>
    %84 = arith.subf %83, %62 : vector<16x450xf32>
    %85 = arith.mulf %84, %62 : vector<16x450xf32>
    %86 = math.exp %85 : vector<16x450xf32>
    %87 = arith.mulf %82, %86 : vector<16x450xf32>
    %cst_39 = arith.constant 1.000000e+00 : f32
    %88 = vector.broadcast %cst_39 : f32 to vector<16x450xf32>
    %89 = arith.subf %88, %87 : vector<16x450xf32>
    %90 = arith.mulf %61, %89 : vector<16x450xf32>
    %cst_40 = arith.constant 1.000000e+00 : f32
    %91 = vector.broadcast %cst_40 : f32 to vector<16x450xf32>
    %92 = arith.addf %91, %90 : vector<16x450xf32>
    %93 = arith.mulf %54, %92 : vector<16x450xf32>
    %94 = arith.maximumf %47, %93 : vector<16x450xf32>
    %c2 = arith.constant 2 : index
    %c0_41 = arith.constant 0 : index
    %c0_42 = arith.constant 0 : index
    %95 = vector.load %arg1[%c2, %c0_41, %c0_42] : memref<4x27x450xbf16, #tpu.memory_space<vmem>>, vector<1x27x450xbf16>
    %96 = vector.shape_cast %95 : vector<1x27x450xbf16> to vector<27x450xbf16>
    %cst_43 = arith.constant dense<0.000000e+00> : vector<16x450xf32>
    %97 = tpu.matmul %0, %96, %cst_43 {dimension_numbers = #tpu.dot_dimension_numbers<[1], [0], [0], [1], [0, 0, 1, 1], [], []>} : vector<16x27xbf16>, vector<27x450xbf16>, vector<16x450xf32> -> vector<16x450xf32>
    %98 = vector.broadcast %1 : vector<16x1xf32> to vector<16x450xf32>
    %99 = arith.addf %97, %98 : vector<16x450xf32>
    %cst_44 = arith.constant 5.000000e-01 : f32
    %100 = vector.broadcast %cst_44 : f32 to vector<16x450xf32>
    %101 = arith.mulf %100, %99 : vector<16x450xf32>
    %cst_45 = arith.constant 0.707106769 : f32
    %102 = vector.broadcast %cst_45 : f32 to vector<16x450xf32>
    %103 = arith.mulf %99, %102 : vector<16x450xf32>
    %cst_46 = arith.constant 0.000000e+00 : f32
    %104 = vector.broadcast %cst_46 : f32 to vector<16x450xf32>
    %105 = arith.cmpf oge, %103, %104 : vector<16x450xf32>
    %cst_47 = arith.constant 1.000000e+00 : f32
    %cst_48 = arith.constant -1.000000e+00 : f32
    %106 = vector.broadcast %cst_47 : f32 to vector<16x450xf32>
    %107 = vector.broadcast %cst_48 : f32 to vector<16x450xf32>
    %108 = arith.select %105, %106, %107 : vector<16x450xi1>, vector<16x450xf32>
    %109 = math.absf %103 : vector<16x450xf32>
    %cst_49 = arith.constant 0.327591091 : f32
    %110 = vector.broadcast %cst_49 : f32 to vector<16x450xf32>
    %111 = arith.mulf %110, %109 : vector<16x450xf32>
    %cst_50 = arith.constant 1.000000e+00 : f32
    %112 = vector.broadcast %cst_50 : f32 to vector<16x450xf32>
    %113 = arith.addf %112, %111 : vector<16x450xf32>
    %cst_51 = arith.constant 1.000000e+00 : f32
    %114 = vector.broadcast %cst_51 : f32 to vector<16x450xf32>
    %115 = arith.divf %114, %113 : vector<16x450xf32>
    %cst_52 = arith.constant 1.06140542 : f32
    %116 = vector.broadcast %cst_52 : f32 to vector<16x450xf32>
    %117 = arith.mulf %116, %115 : vector<16x450xf32>
    %cst_53 = arith.constant -1.45315206 : f32
    %118 = vector.broadcast %cst_53 : f32 to vector<16x450xf32>
    %119 = arith.addf %117, %118 : vector<16x450xf32>
    %120 = arith.mulf %119, %115 : vector<16x450xf32>
    %cst_54 = arith.constant 1.42141378 : f32
    %121 = vector.broadcast %cst_54 : f32 to vector<16x450xf32>
    %122 = arith.addf %120, %121 : vector<16x450xf32>
    %123 = arith.mulf %122, %115 : vector<16x450xf32>
    %cst_55 = arith.constant -0.284496725 : f32
    %124 = vector.broadcast %cst_55 : f32 to vector<16x450xf32>
    %125 = arith.addf %123, %124 : vector<16x450xf32>
    %126 = arith.mulf %125, %115 : vector<16x450xf32>
    %cst_56 = arith.constant 0.254829586 : f32
    %127 = vector.broadcast %cst_56 : f32 to vector<16x450xf32>
    %128 = arith.addf %126, %127 : vector<16x450xf32>
    %129 = arith.mulf %128, %115 : vector<16x450xf32>
    %cst_57 = arith.constant 0.000000e+00 : f32
    %130 = vector.broadcast %cst_57 : f32 to vector<16x450xf32>
    %131 = arith.subf %130, %109 : vector<16x450xf32>
    %132 = arith.mulf %131, %109 : vector<16x450xf32>
    %133 = math.exp %132 : vector<16x450xf32>
    %134 = arith.mulf %129, %133 : vector<16x450xf32>
    %cst_58 = arith.constant 1.000000e+00 : f32
    %135 = vector.broadcast %cst_58 : f32 to vector<16x450xf32>
    %136 = arith.subf %135, %134 : vector<16x450xf32>
    %137 = arith.mulf %108, %136 : vector<16x450xf32>
    %cst_59 = arith.constant 1.000000e+00 : f32
    %138 = vector.broadcast %cst_59 : f32 to vector<16x450xf32>
    %139 = arith.addf %138, %137 : vector<16x450xf32>
    %140 = arith.mulf %101, %139 : vector<16x450xf32>
    %c3 = arith.constant 3 : index
    %c0_60 = arith.constant 0 : index
    %c0_61 = arith.constant 0 : index
    %141 = vector.load %arg1[%c3, %c0_60, %c0_61] : memref<4x27x450xbf16, #tpu.memory_space<vmem>>, vector<1x27x450xbf16>
    %142 = vector.shape_cast %141 : vector<1x27x450xbf16> to vector<27x450xbf16>
    %cst_62 = arith.constant dense<0.000000e+00> : vector<16x450xf32>
    %143 = tpu.matmul %0, %142, %cst_62 {dimension_numbers = #tpu.dot_dimension_numbers<[1], [0], [0], [1], [0, 0, 1, 1], [], []>} : vector<16x27xbf16>, vector<27x450xbf16>, vector<16x450xf32> -> vector<16x450xf32>
    %144 = vector.broadcast %1 : vector<16x1xf32> to vector<16x450xf32>
    %145 = arith.addf %143, %144 : vector<16x450xf32>
    %cst_63 = arith.constant 5.000000e-01 : f32
    %146 = vector.broadcast %cst_63 : f32 to vector<16x450xf32>
    %147 = arith.mulf %146, %145 : vector<16x450xf32>
    %cst_64 = arith.constant 0.707106769 : f32
    %148 = vector.broadcast %cst_64 : f32 to vector<16x450xf32>
    %149 = arith.mulf %145, %148 : vector<16x450xf32>
    %cst_65 = arith.constant 0.000000e+00 : f32
    %150 = vector.broadcast %cst_65 : f32 to vector<16x450xf32>
    %151 = arith.cmpf oge, %149, %150 : vector<16x450xf32>
    %cst_66 = arith.constant 1.000000e+00 : f32
    %cst_67 = arith.constant -1.000000e+00 : f32
    %152 = vector.broadcast %cst_66 : f32 to vector<16x450xf32>
    %153 = vector.broadcast %cst_67 : f32 to vector<16x450xf32>
    %154 = arith.select %151, %152, %153 : vector<16x450xi1>, vector<16x450xf32>
    %155 = math.absf %149 : vector<16x450xf32>
    %cst_68 = arith.constant 0.327591091 : f32
    %156 = vector.broadcast %cst_68 : f32 to vector<16x450xf32>
    %157 = arith.mulf %156, %155 : vector<16x450xf32>
    %cst_69 = arith.constant 1.000000e+00 : f32
    %158 = vector.broadcast %cst_69 : f32 to vector<16x450xf32>
    %159 = arith.addf %158, %157 : vector<16x450xf32>
    %cst_70 = arith.constant 1.000000e+00 : f32
    %160 = vector.broadcast %cst_70 : f32 to vector<16x450xf32>
    %161 = arith.divf %160, %159 : vector<16x450xf32>
    %cst_71 = arith.constant 1.06140542 : f32
    %162 = vector.broadcast %cst_71 : f32 to vector<16x450xf32>
    %163 = arith.mulf %162, %161 : vector<16x450xf32>
    %cst_72 = arith.constant -1.45315206 : f32
    %164 = vector.broadcast %cst_72 : f32 to vector<16x450xf32>
    %165 = arith.addf %163, %164 : vector<16x450xf32>
    %166 = arith.mulf %165, %161 : vector<16x450xf32>
    %cst_73 = arith.constant 1.42141378 : f32
    %167 = vector.broadcast %cst_73 : f32 to vector<16x450xf32>
    %168 = arith.addf %166, %167 : vector<16x450xf32>
    %169 = arith.mulf %168, %161 : vector<16x450xf32>
    %cst_74 = arith.constant -0.284496725 : f32
    %170 = vector.broadcast %cst_74 : f32 to vector<16x450xf32>
    %171 = arith.addf %169, %170 : vector<16x450xf32>
    %172 = arith.mulf %171, %161 : vector<16x450xf32>
    %cst_75 = arith.constant 0.254829586 : f32
    %173 = vector.broadcast %cst_75 : f32 to vector<16x450xf32>
    %174 = arith.addf %172, %173 : vector<16x450xf32>
    %175 = arith.mulf %174, %161 : vector<16x450xf32>
    %cst_76 = arith.constant 0.000000e+00 : f32
    %176 = vector.broadcast %cst_76 : f32 to vector<16x450xf32>
    %177 = arith.subf %176, %155 : vector<16x450xf32>
    %178 = arith.mulf %177, %155 : vector<16x450xf32>
    %179 = math.exp %178 : vector<16x450xf32>
    %180 = arith.mulf %175, %179 : vector<16x450xf32>
    %cst_77 = arith.constant 1.000000e+00 : f32
    %181 = vector.broadcast %cst_77 : f32 to vector<16x450xf32>
    %182 = arith.subf %181, %180 : vector<16x450xf32>
    %183 = arith.mulf %154, %182 : vector<16x450xf32>
    %cst_78 = arith.constant 1.000000e+00 : f32
    %184 = vector.broadcast %cst_78 : f32 to vector<16x450xf32>
    %185 = arith.addf %184, %183 : vector<16x450xf32>
    %186 = arith.mulf %147, %185 : vector<16x450xf32>
    %187 = arith.maximumf %140, %186 : vector<16x450xf32>
    %188 = arith.maximumf %94, %187 : vector<16x450xf32>
    %189 = arith.truncf %188 : vector<16x450xf32> to vector<16x450xbf16>
    %c0_79 = arith.constant 0 : index
    %c0_80 = arith.constant 0 : index
    %190 = vector.load %arg4[%c0_79, %c0_80] : memref<16x450xbf16, #tpu.memory_space<vmem>>, vector<16x450xbf16>
    tpu.vector_store %arg4[%c0_79, %c0_80], %189 {strides = array<i32>} : memref<16x450xbf16, #tpu.memory_space<vmem>>, vector<16x450xbf16>,
    return
  }
  func.func @transform_0(%arg0: i32) -> (i32, i32, i32) {
    %c0_i32 = arith.constant 0 : i32
    %c0_i32_0 = arith.constant 0 : i32
    %c0_i32_1 = arith.constant 0 : i32
    return %c0_i32, %c0_i32_0, %arg0 : i32, i32, i32
  }
  func.func @transform_1(%arg0: i32) -> (i32, i32) {
    %c0_i32 = arith.constant 0 : i32
    %c0_i32_0 = arith.constant 0 : i32
    %c0_i32_1 = arith.constant 0 : i32
    return %c0_i32, %c0_i32_0 : i32, i32
  }
  func.func @transform_2(%arg0: i32) -> (i32, i32) {
    %c0_i32 = arith.constant 0 : i32
    %c0_i32_0 = arith.constant 0 : i32
    %c0_i32_1 = arith.constant 0 : i32
    return %c0_i32, %c0_i32_0 : i32, i32
  }
  func.func @transform_3(%arg0: i32) -> (i32, i32) {
    %c0_i32 = arith.constant 0 : i32
    %c0_i32_0 = arith.constant 0 : i32
    return %c0_i32, %arg0 : i32, i32
  }
}

module attributes {stable_mosaic.version = 11 : i64} {
  func.func @_conv_gelu_pool_kernel(%arg0: i32, %arg1: memref<4x144x98xbf16, #tpu.memory_space<vmem>>, %arg2: memref<32x144xbf16, #tpu.memory_space<vmem>>, %arg3: memref<32x1xf32, #tpu.memory_space<vmem>>, %arg4: memref<32x98xbf16, #tpu.memory_space<vmem>>) attributes {dimension_semantics = [#tpu.dimension_semantics<parallel>], iteration_bounds = array<i64: 1>, scalar_prefetch = 0 : i64, scratch_operands = 0 : i64, tpu.core_type = #tpu.core_type<tc>, window_params = [{transform_indices = @transform_0, window_bounds = array<i64: 4, 144, 98>}, {pipeline_mode = #tpu.pipeline_mode<synchronous>, transform_indices = @transform_1, window_bounds = array<i64: 32, 144>}, {pipeline_mode = #tpu.pipeline_mode<synchronous>, transform_indices = @transform_2, window_bounds = array<i64: 32, 1>}, {transform_indices = @transform_3, window_bounds = array<i64: 32, 98>}]} {
    %c0 = arith.constant 0 : index
    %c0_0 = arith.constant 0 : index
    %0 = vector.load %arg2[%c0, %c0_0] : memref<32x144xbf16, #tpu.memory_space<vmem>>, vector<32x144xbf16>
    %c0_1 = arith.constant 0 : index
    %c0_2 = arith.constant 0 : index
    %1 = vector.load %arg3[%c0_1, %c0_2] : memref<32x1xf32, #tpu.memory_space<vmem>>, vector<32x1xf32>
    %c0_3 = arith.constant 0 : index
    %c0_4 = arith.constant 0 : index
    %c0_5 = arith.constant 0 : index
    %2 = vector.load %arg1[%c0_3, %c0_4, %c0_5] : memref<4x144x98xbf16, #tpu.memory_space<vmem>>, vector<1x144x98xbf16>
    %3 = vector.shape_cast %2 : vector<1x144x98xbf16> to vector<144x98xbf16>
    %cst = arith.constant dense<0.000000e+00> : vector<32x98xf32>
    %4 = tpu.matmul %0, %3, %cst {dimension_numbers = #tpu.dot_dimension_numbers<[1], [0], [0], [1], [0, 0, 1, 1], [], []>} : vector<32x144xbf16>, vector<144x98xbf16>, vector<32x98xf32> -> vector<32x98xf32>
    %5 = vector.broadcast %1 : vector<32x1xf32> to vector<32x98xf32>
    %6 = arith.addf %4, %5 : vector<32x98xf32>
    %cst_6 = arith.constant 5.000000e-01 : f32
    %7 = vector.broadcast %cst_6 : f32 to vector<32x98xf32>
    %8 = arith.mulf %7, %6 : vector<32x98xf32>
    %cst_7 = arith.constant 0.707106769 : f32
    %9 = vector.broadcast %cst_7 : f32 to vector<32x98xf32>
    %10 = arith.mulf %6, %9 : vector<32x98xf32>
    %cst_8 = arith.constant 0.000000e+00 : f32
    %11 = vector.broadcast %cst_8 : f32 to vector<32x98xf32>
    %12 = arith.cmpf oge, %10, %11 : vector<32x98xf32>
    %cst_9 = arith.constant 1.000000e+00 : f32
    %cst_10 = arith.constant -1.000000e+00 : f32
    %13 = vector.broadcast %cst_9 : f32 to vector<32x98xf32>
    %14 = vector.broadcast %cst_10 : f32 to vector<32x98xf32>
    %15 = arith.select %12, %13, %14 : vector<32x98xi1>, vector<32x98xf32>
    %16 = math.absf %10 : vector<32x98xf32>
    %cst_11 = arith.constant 0.327591091 : f32
    %17 = vector.broadcast %cst_11 : f32 to vector<32x98xf32>
    %18 = arith.mulf %17, %16 : vector<32x98xf32>
    %cst_12 = arith.constant 1.000000e+00 : f32
    %19 = vector.broadcast %cst_12 : f32 to vector<32x98xf32>
    %20 = arith.addf %19, %18 : vector<32x98xf32>
    %cst_13 = arith.constant 1.000000e+00 : f32
    %21 = vector.broadcast %cst_13 : f32 to vector<32x98xf32>
    %22 = arith.divf %21, %20 : vector<32x98xf32>
    %cst_14 = arith.constant 1.06140542 : f32
    %23 = vector.broadcast %cst_14 : f32 to vector<32x98xf32>
    %24 = arith.mulf %23, %22 : vector<32x98xf32>
    %cst_15 = arith.constant -1.45315206 : f32
    %25 = vector.broadcast %cst_15 : f32 to vector<32x98xf32>
    %26 = arith.addf %24, %25 : vector<32x98xf32>
    %27 = arith.mulf %26, %22 : vector<32x98xf32>
    %cst_16 = arith.constant 1.42141378 : f32
    %28 = vector.broadcast %cst_16 : f32 to vector<32x98xf32>
    %29 = arith.addf %27, %28 : vector<32x98xf32>
    %30 = arith.mulf %29, %22 : vector<32x98xf32>
    %cst_17 = arith.constant -0.284496725 : f32
    %31 = vector.broadcast %cst_17 : f32 to vector<32x98xf32>
    %32 = arith.addf %30, %31 : vector<32x98xf32>
    %33 = arith.mulf %32, %22 : vector<32x98xf32>
    %cst_18 = arith.constant 0.254829586 : f32
    %34 = vector.broadcast %cst_18 : f32 to vector<32x98xf32>
    %35 = arith.addf %33, %34 : vector<32x98xf32>
    %36 = arith.mulf %35, %22 : vector<32x98xf32>
    %cst_19 = arith.constant 0.000000e+00 : f32
    %37 = vector.broadcast %cst_19 : f32 to vector<32x98xf32>
    %38 = arith.subf %37, %16 : vector<32x98xf32>
    %39 = arith.mulf %38, %16 : vector<32x98xf32>
    %40 = math.exp %39 : vector<32x98xf32>
    %41 = arith.mulf %36, %40 : vector<32x98xf32>
    %cst_20 = arith.constant 1.000000e+00 : f32
    %42 = vector.broadcast %cst_20 : f32 to vector<32x98xf32>
    %43 = arith.subf %42, %41 : vector<32x98xf32>
    %44 = arith.mulf %15, %43 : vector<32x98xf32>
    %cst_21 = arith.constant 1.000000e+00 : f32
    %45 = vector.broadcast %cst_21 : f32 to vector<32x98xf32>
    %46 = arith.addf %45, %44 : vector<32x98xf32>
    %47 = arith.mulf %8, %46 : vector<32x98xf32>
    %c1 = arith.constant 1 : index
    %c0_22 = arith.constant 0 : index
    %c0_23 = arith.constant 0 : index
    %48 = vector.load %arg1[%c1, %c0_22, %c0_23] : memref<4x144x98xbf16, #tpu.memory_space<vmem>>, vector<1x144x98xbf16>
    %49 = vector.shape_cast %48 : vector<1x144x98xbf16> to vector<144x98xbf16>
    %cst_24 = arith.constant dense<0.000000e+00> : vector<32x98xf32>
    %50 = tpu.matmul %0, %49, %cst_24 {dimension_numbers = #tpu.dot_dimension_numbers<[1], [0], [0], [1], [0, 0, 1, 1], [], []>} : vector<32x144xbf16>, vector<144x98xbf16>, vector<32x98xf32> -> vector<32x98xf32>
    %51 = vector.broadcast %1 : vector<32x1xf32> to vector<32x98xf32>
    %52 = arith.addf %50, %51 : vector<32x98xf32>
    %cst_25 = arith.constant 5.000000e-01 : f32
    %53 = vector.broadcast %cst_25 : f32 to vector<32x98xf32>
    %54 = arith.mulf %53, %52 : vector<32x98xf32>
    %cst_26 = arith.constant 0.707106769 : f32
    %55 = vector.broadcast %cst_26 : f32 to vector<32x98xf32>
    %56 = arith.mulf %52, %55 : vector<32x98xf32>
    %cst_27 = arith.constant 0.000000e+00 : f32
    %57 = vector.broadcast %cst_27 : f32 to vector<32x98xf32>
    %58 = arith.cmpf oge, %56, %57 : vector<32x98xf32>
    %cst_28 = arith.constant 1.000000e+00 : f32
    %cst_29 = arith.constant -1.000000e+00 : f32
    %59 = vector.broadcast %cst_28 : f32 to vector<32x98xf32>
    %60 = vector.broadcast %cst_29 : f32 to vector<32x98xf32>
    %61 = arith.select %58, %59, %60 : vector<32x98xi1>, vector<32x98xf32>
    %62 = math.absf %56 : vector<32x98xf32>
    %cst_30 = arith.constant 0.327591091 : f32
    %63 = vector.broadcast %cst_30 : f32 to vector<32x98xf32>
    %64 = arith.mulf %63, %62 : vector<32x98xf32>
    %cst_31 = arith.constant 1.000000e+00 : f32
    %65 = vector.broadcast %cst_31 : f32 to vector<32x98xf32>
    %66 = arith.addf %65, %64 : vector<32x98xf32>
    %cst_32 = arith.constant 1.000000e+00 : f32
    %67 = vector.broadcast %cst_32 : f32 to vector<32x98xf32>
    %68 = arith.divf %67, %66 : vector<32x98xf32>
    %cst_33 = arith.constant 1.06140542 : f32
    %69 = vector.broadcast %cst_33 : f32 to vector<32x98xf32>
    %70 = arith.mulf %69, %68 : vector<32x98xf32>
    %cst_34 = arith.constant -1.45315206 : f32
    %71 = vector.broadcast %cst_34 : f32 to vector<32x98xf32>
    %72 = arith.addf %70, %71 : vector<32x98xf32>
    %73 = arith.mulf %72, %68 : vector<32x98xf32>
    %cst_35 = arith.constant 1.42141378 : f32
    %74 = vector.broadcast %cst_35 : f32 to vector<32x98xf32>
    %75 = arith.addf %73, %74 : vector<32x98xf32>
    %76 = arith.mulf %75, %68 : vector<32x98xf32>
    %cst_36 = arith.constant -0.284496725 : f32
    %77 = vector.broadcast %cst_36 : f32 to vector<32x98xf32>
    %78 = arith.addf %76, %77 : vector<32x98xf32>
    %79 = arith.mulf %78, %68 : vector<32x98xf32>
    %cst_37 = arith.constant 0.254829586 : f32
    %80 = vector.broadcast %cst_37 : f32 to vector<32x98xf32>
    %81 = arith.addf %79, %80 : vector<32x98xf32>
    %82 = arith.mulf %81, %68 : vector<32x98xf32>
    %cst_38 = arith.constant 0.000000e+00 : f32
    %83 = vector.broadcast %cst_38 : f32 to vector<32x98xf32>
    %84 = arith.subf %83, %62 : vector<32x98xf32>
    %85 = arith.mulf %84, %62 : vector<32x98xf32>
    %86 = math.exp %85 : vector<32x98xf32>
    %87 = arith.mulf %82, %86 : vector<32x98xf32>
    %cst_39 = arith.constant 1.000000e+00 : f32
    %88 = vector.broadcast %cst_39 : f32 to vector<32x98xf32>
    %89 = arith.subf %88, %87 : vector<32x98xf32>
    %90 = arith.mulf %61, %89 : vector<32x98xf32>
    %cst_40 = arith.constant 1.000000e+00 : f32
    %91 = vector.broadcast %cst_40 : f32 to vector<32x98xf32>
    %92 = arith.addf %91, %90 : vector<32x98xf32>
    %93 = arith.mulf %54, %92 : vector<32x98xf32>
    %94 = arith.maximumf %47, %93 : vector<32x98xf32>
    %c2 = arith.constant 2 : index
    %c0_41 = arith.constant 0 : index
    %c0_42 = arith.constant 0 : index
    %95 = vector.load %arg1[%c2, %c0_41, %c0_42] : memref<4x144x98xbf16, #tpu.memory_space<vmem>>, vector<1x144x98xbf16>
    %96 = vector.shape_cast %95 : vector<1x144x98xbf16> to vector<144x98xbf16>
    %cst_43 = arith.constant dense<0.000000e+00> : vector<32x98xf32>
    %97 = tpu.matmul %0, %96, %cst_43 {dimension_numbers = #tpu.dot_dimension_numbers<[1], [0], [0], [1], [0, 0, 1, 1], [], []>} : vector<32x144xbf16>, vector<144x98xbf16>, vector<32x98xf32> -> vector<32x98xf32>
    %98 = vector.broadcast %1 : vector<32x1xf32> to vector<32x98xf32>
    %99 = arith.addf %97, %98 : vector<32x98xf32>
    %cst_44 = arith.constant 5.000000e-01 : f32
    %100 = vector.broadcast %cst_44 : f32 to vector<32x98xf32>
    %101 = arith.mulf %100, %99 : vector<32x98xf32>
    %cst_45 = arith.constant 0.707106769 : f32
    %102 = vector.broadcast %cst_45 : f32 to vector<32x98xf32>
    %103 = arith.mulf %99, %102 : vector<32x98xf32>
    %cst_46 = arith.constant 0.000000e+00 : f32
    %104 = vector.broadcast %cst_46 : f32 to vector<32x98xf32>
    %105 = arith.cmpf oge, %103, %104 : vector<32x98xf32>
    %cst_47 = arith.constant 1.000000e+00 : f32
    %cst_48 = arith.constant -1.000000e+00 : f32
    %106 = vector.broadcast %cst_47 : f32 to vector<32x98xf32>
    %107 = vector.broadcast %cst_48 : f32 to vector<32x98xf32>
    %108 = arith.select %105, %106, %107 : vector<32x98xi1>, vector<32x98xf32>
    %109 = math.absf %103 : vector<32x98xf32>
    %cst_49 = arith.constant 0.327591091 : f32
    %110 = vector.broadcast %cst_49 : f32 to vector<32x98xf32>
    %111 = arith.mulf %110, %109 : vector<32x98xf32>
    %cst_50 = arith.constant 1.000000e+00 : f32
    %112 = vector.broadcast %cst_50 : f32 to vector<32x98xf32>
    %113 = arith.addf %112, %111 : vector<32x98xf32>
    %cst_51 = arith.constant 1.000000e+00 : f32
    %114 = vector.broadcast %cst_51 : f32 to vector<32x98xf32>
    %115 = arith.divf %114, %113 : vector<32x98xf32>
    %cst_52 = arith.constant 1.06140542 : f32
    %116 = vector.broadcast %cst_52 : f32 to vector<32x98xf32>
    %117 = arith.mulf %116, %115 : vector<32x98xf32>
    %cst_53 = arith.constant -1.45315206 : f32
    %118 = vector.broadcast %cst_53 : f32 to vector<32x98xf32>
    %119 = arith.addf %117, %118 : vector<32x98xf32>
    %120 = arith.mulf %119, %115 : vector<32x98xf32>
    %cst_54 = arith.constant 1.42141378 : f32
    %121 = vector.broadcast %cst_54 : f32 to vector<32x98xf32>
    %122 = arith.addf %120, %121 : vector<32x98xf32>
    %123 = arith.mulf %122, %115 : vector<32x98xf32>
    %cst_55 = arith.constant -0.284496725 : f32
    %124 = vector.broadcast %cst_55 : f32 to vector<32x98xf32>
    %125 = arith.addf %123, %124 : vector<32x98xf32>
    %126 = arith.mulf %125, %115 : vector<32x98xf32>
    %cst_56 = arith.constant 0.254829586 : f32
    %127 = vector.broadcast %cst_56 : f32 to vector<32x98xf32>
    %128 = arith.addf %126, %127 : vector<32x98xf32>
    %129 = arith.mulf %128, %115 : vector<32x98xf32>
    %cst_57 = arith.constant 0.000000e+00 : f32
    %130 = vector.broadcast %cst_57 : f32 to vector<32x98xf32>
    %131 = arith.subf %130, %109 : vector<32x98xf32>
    %132 = arith.mulf %131, %109 : vector<32x98xf32>
    %133 = math.exp %132 : vector<32x98xf32>
    %134 = arith.mulf %129, %133 : vector<32x98xf32>
    %cst_58 = arith.constant 1.000000e+00 : f32
    %135 = vector.broadcast %cst_58 : f32 to vector<32x98xf32>
    %136 = arith.subf %135, %134 : vector<32x98xf32>
    %137 = arith.mulf %108, %136 : vector<32x98xf32>
    %cst_59 = arith.constant 1.000000e+00 : f32
    %138 = vector.broadcast %cst_59 : f32 to vector<32x98xf32>
    %139 = arith.addf %138, %137 : vector<32x98xf32>
    %140 = arith.mulf %101, %139 : vector<32x98xf32>
    %c3 = arith.constant 3 : index
    %c0_60 = arith.constant 0 : index
    %c0_61 = arith.constant 0 : index
    %141 = vector.load %arg1[%c3, %c0_60, %c0_61] : memref<4x144x98xbf16, #tpu.memory_space<vmem>>, vector<1x144x98xbf16>
    %142 = vector.shape_cast %141 : vector<1x144x98xbf16> to vector<144x98xbf16>
    %cst_62 = arith.constant dense<0.000000e+00> : vector<32x98xf32>
    %143 = tpu.matmul %0, %142, %cst_62 {dimension_numbers = #tpu.dot_dimension_numbers<[1], [0], [0], [1], [0, 0, 1, 1], [], []>} : vector<32x144xbf16>, vector<144x98xbf16>, vector<32x98xf32> -> vector<32x98xf32>
    %144 = vector.broadcast %1 : vector<32x1xf32> to vector<32x98xf32>
    %145 = arith.addf %143, %144 : vector<32x98xf32>
    %cst_63 = arith.constant 5.000000e-01 : f32
    %146 = vector.broadcast %cst_63 : f32 to vector<32x98xf32>
    %147 = arith.mulf %146, %145 : vector<32x98xf32>
    %cst_64 = arith.constant 0.707106769 : f32
    %148 = vector.broadcast %cst_64 : f32 to vector<32x98xf32>
    %149 = arith.mulf %145, %148 : vector<32x98xf32>
    %cst_65 = arith.constant 0.000000e+00 : f32
    %150 = vector.broadcast %cst_65 : f32 to vector<32x98xf32>
    %151 = arith.cmpf oge, %149, %150 : vector<32x98xf32>
    %cst_66 = arith.constant 1.000000e+00 : f32
    %cst_67 = arith.constant -1.000000e+00 : f32
    %152 = vector.broadcast %cst_66 : f32 to vector<32x98xf32>
    %153 = vector.broadcast %cst_67 : f32 to vector<32x98xf32>
    %154 = arith.select %151, %152, %153 : vector<32x98xi1>, vector<32x98xf32>
    %155 = math.absf %149 : vector<32x98xf32>
    %cst_68 = arith.constant 0.327591091 : f32
    %156 = vector.broadcast %cst_68 : f32 to vector<32x98xf32>
    %157 = arith.mulf %156, %155 : vector<32x98xf32>
    %cst_69 = arith.constant 1.000000e+00 : f32
    %158 = vector.broadcast %cst_69 : f32 to vector<32x98xf32>
    %159 = arith.addf %158, %157 : vector<32x98xf32>
    %cst_70 = arith.constant 1.000000e+00 : f32
    %160 = vector.broadcast %cst_70 : f32 to vector<32x98xf32>
    %161 = arith.divf %160, %159 : vector<32x98xf32>
    %cst_71 = arith.constant 1.06140542 : f32
    %162 = vector.broadcast %cst_71 : f32 to vector<32x98xf32>
    %163 = arith.mulf %162, %161 : vector<32x98xf32>
    %cst_72 = arith.constant -1.45315206 : f32
    %164 = vector.broadcast %cst_72 : f32 to vector<32x98xf32>
    %165 = arith.addf %163, %164 : vector<32x98xf32>
    %166 = arith.mulf %165, %161 : vector<32x98xf32>
    %cst_73 = arith.constant 1.42141378 : f32
    %167 = vector.broadcast %cst_73 : f32 to vector<32x98xf32>
    %168 = arith.addf %166, %167 : vector<32x98xf32>
    %169 = arith.mulf %168, %161 : vector<32x98xf32>
    %cst_74 = arith.constant -0.284496725 : f32
    %170 = vector.broadcast %cst_74 : f32 to vector<32x98xf32>
    %171 = arith.addf %169, %170 : vector<32x98xf32>
    %172 = arith.mulf %171, %161 : vector<32x98xf32>
    %cst_75 = arith.constant 0.254829586 : f32
    %173 = vector.broadcast %cst_75 : f32 to vector<32x98xf32>
    %174 = arith.addf %172, %173 : vector<32x98xf32>
    %175 = arith.mulf %174, %161 : vector<32x98xf32>
    %cst_76 = arith.constant 0.000000e+00 : f32
    %176 = vector.broadcast %cst_76 : f32 to vector<32x98xf32>
    %177 = arith.subf %176, %155 : vector<32x98xf32>
    %178 = arith.mulf %177, %155 : vector<32x98xf32>
    %179 = math.exp %178 : vector<32x98xf32>
    %180 = arith.mulf %175, %179 : vector<32x98xf32>
    %cst_77 = arith.constant 1.000000e+00 : f32
    %181 = vector.broadcast %cst_77 : f32 to vector<32x98xf32>
    %182 = arith.subf %181, %180 : vector<32x98xf32>
    %183 = arith.mulf %154, %182 : vector<32x98xf32>
    %cst_78 = arith.constant 1.000000e+00 : f32
    %184 = vector.broadcast %cst_78 : f32 to vector<32x98xf32>
    %185 = arith.addf %184, %183 : vector<32x98xf32>
    %186 = arith.mulf %147, %185 : vector<32x98xf32>
    %187 = arith.maximumf %140, %186 : vector<32x98xf32>
    %188 = arith.maximumf %94, %187 : vector<32x98xf32>
    %189 = arith.truncf %188 : vector<32x98xf32> to vector<32x98xbf16>
    %c0_79 = arith.constant 0 : index
    %c0_80 = arith.constant 0 : index
    %190 = vector.load %arg4[%c0_79, %c0_80] : memref<32x98xbf16, #tpu.memory_space<vmem>>, vector<32x98xbf16>
    tpu.vector_store %arg4[%c0_79, %c0_80], %189 {strides = array<i32>} : memref<32x98xbf16, #tpu.memory_space<vmem>>, vector<32x98xbf16>,
    return
  }
  func.func @transform_0(%arg0: i32) -> (i32, i32, i32) {
    %c0_i32 = arith.constant 0 : i32
    %c0_i32_0 = arith.constant 0 : i32
    %c0_i32_1 = arith.constant 0 : i32
    return %c0_i32, %c0_i32_0, %arg0 : i32, i32, i32
  }
  func.func @transform_1(%arg0: i32) -> (i32, i32) {
    %c0_i32 = arith.constant 0 : i32
    %c0_i32_0 = arith.constant 0 : i32
    %c0_i32_1 = arith.constant 0 : i32
    return %c0_i32, %c0_i32_0 : i32, i32
  }
  func.func @transform_2(%arg0: i32) -> (i32, i32) {
    %c0_i32 = arith.constant 0 : i32
    %c0_i32_0 = arith.constant 0 : i32
    %c0_i32_1 = arith.constant 0 : i32
    return %c0_i32, %c0_i32_0 : i32, i32
  }
  func.func @transform_3(%arg0: i32) -> (i32, i32) {
    %c0_i32 = arith.constant 0 : i32
    %c0_i32_0 = arith.constant 0 : i32
    return %c0_i32, %arg0 : i32, i32
  }
}

module attributes {stable_mosaic.version = 11 : i64} {
  func.func @_fc_fused_kernel(%arg0: i32, %arg1: memref<1568x2xbf16, #tpu.memory_space<vmem>>, %arg2: memref<64x1568xbf16, #tpu.memory_space<vmem>>, %arg3: memref<64x1xf32, #tpu.memory_space<vmem>>, %arg4: memref<8x64xbf16, #tpu.memory_space<vmem>>, %arg5: memref<8x1xf32, #tpu.memory_space<vmem>>, %arg6: memref<8x2xf32, #tpu.memory_space<vmem>>) attributes {dimension_semantics = [#tpu.dimension_semantics<parallel>], iteration_bounds = array<i64: 1>, scalar_prefetch = 0 : i64, scratch_operands = 0 : i64, tpu.core_type = #tpu.core_type<tc>, window_params = [{transform_indices = @transform_0, window_bounds = array<i64: 1568, 2>}, {pipeline_mode = #tpu.pipeline_mode<synchronous>, transform_indices = @transform_1, window_bounds = array<i64: 64, 1568>}, {pipeline_mode = #tpu.pipeline_mode<synchronous>, transform_indices = @transform_2, window_bounds = array<i64: 64, 1>}, {pipeline_mode = #tpu.pipeline_mode<synchronous>, transform_indices = @transform_3, window_bounds = array<i64: 8, 64>}, {pipeline_mode = #tpu.pipeline_mode<synchronous>, transform_indices = @transform_4, window_bounds = array<i64: 8, 1>}, {transform_indices = @transform_5, window_bounds = array<i64: 8, 2>}]} {
    %c0 = arith.constant 0 : index
    %c0_0 = arith.constant 0 : index
    %0 = vector.load %arg2[%c0, %c0_0] : memref<64x1568xbf16, #tpu.memory_space<vmem>>, vector<64x1568xbf16>
    %c0_1 = arith.constant 0 : index
    %c0_2 = arith.constant 0 : index
    %1 = vector.load %arg1[%c0_1, %c0_2] : memref<1568x2xbf16, #tpu.memory_space<vmem>>, vector<1568x2xbf16>
    %cst = arith.constant dense<0.000000e+00> : vector<64x2xf32>
    %2 = tpu.matmul %0, %1, %cst {dimension_numbers = #tpu.dot_dimension_numbers<[1], [0], [0], [1], [0, 0, 1, 1], [], []>} : vector<64x1568xbf16>, vector<1568x2xbf16>, vector<64x2xf32> -> vector<64x2xf32>
    %c0_3 = arith.constant 0 : index
    %c0_4 = arith.constant 0 : index
    %3 = vector.load %arg3[%c0_3, %c0_4] : memref<64x1xf32, #tpu.memory_space<vmem>>, vector<64x1xf32>
    %4 = vector.broadcast %3 : vector<64x1xf32> to vector<64x2xf32>
    %5 = arith.addf %2, %4 : vector<64x2xf32>
    %cst_5 = arith.constant 5.000000e-01 : f32
    %6 = vector.broadcast %cst_5 : f32 to vector<64x2xf32>
    %7 = arith.mulf %6, %5 : vector<64x2xf32>
    %cst_6 = arith.constant 0.707106769 : f32
    %8 = vector.broadcast %cst_6 : f32 to vector<64x2xf32>
    %9 = arith.mulf %5, %8 : vector<64x2xf32>
    %cst_7 = arith.constant 0.000000e+00 : f32
    %10 = vector.broadcast %cst_7 : f32 to vector<64x2xf32>
    %11 = arith.cmpf oge, %9, %10 : vector<64x2xf32>
    %cst_8 = arith.constant 1.000000e+00 : f32
    %cst_9 = arith.constant -1.000000e+00 : f32
    %12 = vector.broadcast %cst_8 : f32 to vector<64x2xf32>
    %13 = vector.broadcast %cst_9 : f32 to vector<64x2xf32>
    %14 = arith.select %11, %12, %13 : vector<64x2xi1>, vector<64x2xf32>
    %15 = math.absf %9 : vector<64x2xf32>
    %cst_10 = arith.constant 0.327591091 : f32
    %16 = vector.broadcast %cst_10 : f32 to vector<64x2xf32>
    %17 = arith.mulf %16, %15 : vector<64x2xf32>
    %cst_11 = arith.constant 1.000000e+00 : f32
    %18 = vector.broadcast %cst_11 : f32 to vector<64x2xf32>
    %19 = arith.addf %18, %17 : vector<64x2xf32>
    %cst_12 = arith.constant 1.000000e+00 : f32
    %20 = vector.broadcast %cst_12 : f32 to vector<64x2xf32>
    %21 = arith.divf %20, %19 : vector<64x2xf32>
    %cst_13 = arith.constant 1.06140542 : f32
    %22 = vector.broadcast %cst_13 : f32 to vector<64x2xf32>
    %23 = arith.mulf %22, %21 : vector<64x2xf32>
    %cst_14 = arith.constant -1.45315206 : f32
    %24 = vector.broadcast %cst_14 : f32 to vector<64x2xf32>
    %25 = arith.addf %23, %24 : vector<64x2xf32>
    %26 = arith.mulf %25, %21 : vector<64x2xf32>
    %cst_15 = arith.constant 1.42141378 : f32
    %27 = vector.broadcast %cst_15 : f32 to vector<64x2xf32>
    %28 = arith.addf %26, %27 : vector<64x2xf32>
    %29 = arith.mulf %28, %21 : vector<64x2xf32>
    %cst_16 = arith.constant -0.284496725 : f32
    %30 = vector.broadcast %cst_16 : f32 to vector<64x2xf32>
    %31 = arith.addf %29, %30 : vector<64x2xf32>
    %32 = arith.mulf %31, %21 : vector<64x2xf32>
    %cst_17 = arith.constant 0.254829586 : f32
    %33 = vector.broadcast %cst_17 : f32 to vector<64x2xf32>
    %34 = arith.addf %32, %33 : vector<64x2xf32>
    %35 = arith.mulf %34, %21 : vector<64x2xf32>
    %cst_18 = arith.constant 0.000000e+00 : f32
    %36 = vector.broadcast %cst_18 : f32 to vector<64x2xf32>
    %37 = arith.subf %36, %15 : vector<64x2xf32>
    %38 = arith.mulf %37, %15 : vector<64x2xf32>
    %39 = math.exp %38 : vector<64x2xf32>
    %40 = arith.mulf %35, %39 : vector<64x2xf32>
    %cst_19 = arith.constant 1.000000e+00 : f32
    %41 = vector.broadcast %cst_19 : f32 to vector<64x2xf32>
    %42 = arith.subf %41, %40 : vector<64x2xf32>
    %43 = arith.mulf %14, %42 : vector<64x2xf32>
    %cst_20 = arith.constant 1.000000e+00 : f32
    %44 = vector.broadcast %cst_20 : f32 to vector<64x2xf32>
    %45 = arith.addf %44, %43 : vector<64x2xf32>
    %46 = arith.mulf %7, %45 : vector<64x2xf32>
    %47 = arith.truncf %46 : vector<64x2xf32> to vector<64x2xbf16>
    %c0_21 = arith.constant 0 : index
    %c0_22 = arith.constant 0 : index
    %48 = vector.load %arg4[%c0_21, %c0_22] : memref<8x64xbf16, #tpu.memory_space<vmem>>, vector<8x64xbf16>
    %cst_23 = arith.constant dense<0.000000e+00> : vector<8x2xf32>
    %49 = tpu.matmul %48, %47, %cst_23 {dimension_numbers = #tpu.dot_dimension_numbers<[1], [0], [0], [1], [0, 0, 1, 1], [], []>} : vector<8x64xbf16>, vector<64x2xbf16>, vector<8x2xf32> -> vector<8x2xf32>
    %c0_24 = arith.constant 0 : index
    %c0_25 = arith.constant 0 : index
    %50 = vector.load %arg5[%c0_24, %c0_25] : memref<8x1xf32, #tpu.memory_space<vmem>>, vector<8x1xf32>
    %51 = vector.broadcast %50 : vector<8x1xf32> to vector<8x2xf32>
    %52 = arith.addf %49, %51 : vector<8x2xf32>
    %c0_26 = arith.constant 0 : index
    %c0_27 = arith.constant 0 : index
    %53 = vector.load %arg6[%c0_26, %c0_27] : memref<8x2xf32, #tpu.memory_space<vmem>>, vector<8x2xf32>
    tpu.vector_store %arg6[%c0_26, %c0_27], %52 {strides = array<i32>} : memref<8x2xf32, #tpu.memory_space<vmem>>, vector<8x2xf32>,
    return
  }
  func.func @transform_0(%arg0: i32) -> (i32, i32) {
    %c0_i32 = arith.constant 0 : i32
    %c0_i32_0 = arith.constant 0 : i32
    return %c0_i32, %arg0 : i32, i32
  }
  func.func @transform_1(%arg0: i32) -> (i32, i32) {
    %c0_i32 = arith.constant 0 : i32
    %c0_i32_0 = arith.constant 0 : i32
    %c0_i32_1 = arith.constant 0 : i32
    return %c0_i32, %c0_i32_0 : i32, i32
  }
  func.func @transform_2(%arg0: i32) -> (i32, i32) {
    %c0_i32 = arith.constant 0 : i32
    %c0_i32_0 = arith.constant 0 : i32
    %c0_i32_1 = arith.constant 0 : i32
    return %c0_i32, %c0_i32_0 : i32, i32
  }
  func.func @transform_3(%arg0: i32) -> (i32, i32) {
    %c0_i32 = arith.constant 0 : i32
    %c0_i32_0 = arith.constant 0 : i32
    %c0_i32_1 = arith.constant 0 : i32
    return %c0_i32, %c0_i32_0 : i32, i32
  }
  func.func @transform_4(%arg0: i32) -> (i32, i32) {
    %c0_i32 = arith.constant 0 : i32
    %c0_i32_0 = arith.constant 0 : i32
    %c0_i32_1 = arith.constant 0 : i32
    return %c0_i32, %c0_i32_0 : i32, i32
  }
  func.func @transform_5(%arg0: i32) -> (i32, i32) {
    %c0_i32 = arith.constant 0 : i32
    %c0_i32_0 = arith.constant 0 : i32
    return %c0_i32, %arg0 : i32, i32
  }
}

</mosaic_0001>

<llo_original>
// kernel: forward.3
$region0: #{forward.3}
  #allocation0 [shape = 'u32[]', space=smem, size = 0x4, offset = 0x4, fixed_abs, tag = 'smem constant byte address 0x4 - core index']
  #allocation1 [shape = 'u32[144,128]{1,0:T(1,128)}', space=vmem, size = 0x12000, scoped, tag = 'internal scratch']
  %s0 = inlined_call_operand.vmem [shape: bf16[4,27,450], index: 0, kind: input, shape index: {}]
  %s1 = inlined_call_operand.vmem [shape: bf16[16,27], index: 1, kind: input, shape index: {}]
  %s2 = inlined_call_operand.vmem [shape: f32[16,1], index: 2, kind: input, shape index: {}]
  %s3 = inlined_call_operand.vmem [shape: bf16[16,450], index: 3, kind: output, shape index: {}]
  %s4 = sld [smem:[#allocation0]]
  $region22: #{forward.3} parent=0
    _
  %s6 = ssub.s32 1, %s4
  %s7 = scalar_select 0, %s6, %s4
  // Predicated region
  $region2: #{forward.3} parent=0 // pred_check
    _
  $region3: #{forward.3} parent=0 // pred_check_branch
    %9 = sbr.rel (0) target = $region5
  $region4: #{forward.3} parent=0 // pred_region
    _
  $region5: #{forward.3} parent=0 // pred_fallthru
    _
  // Predicated region
  $region6: #{forward.3} parent=0 // pred_check
    _
  $region7: #{forward.3} parent=0 // pred_check_branch
    %11 = sbr.rel (0) target = $region9
  $region8: #{forward.3} parent=0 // pred_region
    _
  $region9: #{forward.3} parent=0 // pred_fallthru
    _
  // Predicated region
  $region10: #{forward.3} parent=0 // pred_check
    _
  $region11: #{forward.3} parent=0 // pred_check_branch
    %13 = sbr.rel (0) target = $region13
  $region12: #{forward.3} parent=0 // pred_region
    _
  $region13: #{forward.3} parent=0 // pred_fallthru
    _
  %v15 = vld [vmem:[%s1] sm:$0xf]
  %v16 = vld [vmem:[%s1 + $0x4] sm:$0xf]
  %v17 = vld [vmem:[%s2] sm:$0xff]
  %v18 = vld [vmem:[%s2 + $0x8] sm:$0xff]
  %v19 = vld [vmem:[%s0] sm:$0xff]
  %v20 = vld [vmem:[%s0 + $0x8] sm:$0xff]
  %v21 = vld [vmem:[%s0 + $0x10] sm:$0xff]
  %v22 = vld [vmem:[%s0 + $0x18] sm:$0xff]
  %v23 = vld [vmem:[%s0 + $0x20] sm:$0xff]
  %v24 = vld [vmem:[%s0 + $0x28] sm:$0xff]
  %v25 = vld [vmem:[%s0 + $0x30] sm:$0x33]
  %v26 = vld [vmem:[%s0 + $0x38] sm:$0x33]
  %28 = vset.pattern.permute.xlu0 0
  %29 = vperm.xlu0 %28, %v17
  %v30 = vpop.permute.xlu0 %29
  %33 = vset.pattern.permute.xlu0 0
  %34 = vperm.xlu0 %33, %v18
  %v35 = vpop.permute.xlu0 %34
  %v39 = vunpack.c.l.b16 %v15
  %v40 = vunpack.c.l.b16 %v16
  %v41 = vpack.c.b16 %v40, %v39
  %v50 = vunpack.c.l.b16 %v19
  %v51 = vunpack.c.h.b16 %v19
  %v52 = vunpack.c.l.b16 %v20
  %v53 = vunpack.c.h.b16 %v20
  %v54 = vunpack.c.l.b16 %v21
  %v55 = vunpack.c.h.b16 %v21
  %v56 = vunpack.c.l.b16 %v22
  %v57 = vunpack.c.h.b16 %v22
  %v58 = vunpack.c.l.b16 %v23
  %v59 = vunpack.c.h.b16 %v23
  %v60 = vunpack.c.l.b16 %v24
  %v61 = vunpack.c.h.b16 %v24
  %v62 = vunpack.c.l.b16 %v25
  %v63 = vunpack.c.h.b16 %v25
  %v64 = vunpack.c.l.b16 %v26
  %v65 = vunpack.c.h.b16 %v26
  %v66 = vpack.c.b16 %v54, %v50
  %v67 = vpack.c.b16 %v55, %v51
  %v68 = vpack.c.b16 %v56, %v52
  %v69 = vpack.c.b16 %v57, %v53
  %v70 = vpack.c.b16 %v62, %v58
  %v71 = vpack.c.b16 %v63, %v59
  %v72 = vpack.c.b16 %v64, %v60
  %v73 = vpack.c.b16 %v65, %v61
  %vm78 = vcmask 220160
  %v80 = vsel %vm78, %v41, 0
  %vm82 = vcmask 1044480
  %vm83 = vcmask 1045504
  %v84 = vsel %vm82, 4294967295, 65535
  %v85 = vsel %vm83, %v84, 0
  %v87 = vand.u32 %v70, %v85
  %v90 = vand.u32 %v71, %v85
  %v93 = vand.u32 %v72, %v85
  %v96 = vand.u32 %v73, %v85
  %98 = vmatprep.subr.bf16.mxu0 0
  %99 = vmatpush1.bf16.msra.mxu0 0
  %100 = vmatprep.subr.bf16.mxu0 0
  %101 = vmatpush1.bf16.msra.mxu0 0
  %102 = vmatprep.subr.bf16.mxu0 0
  %103 = vmatpush1.bf16.msra.mxu0 0
  %104 = vmatprep.subr.bf16.mxu0 0
  %105 = vmatpush1.bf16.msra.mxu0 0
  %106 = vmatprep.subr.bf16.mxu0 0
  %107 = vmatpush1.bf16.msra.mxu0 0
  %108 = vmatprep.subr.bf16.mxu0 0
  %109 = vmatpush1.bf16.msra.mxu0 0
  %110 = vmatprep.subr.bf16.mxu0 %v90
  %111 = vmatpush1.bf16.msra.mxu0 %v87
  %112 = vmatprep.subr.bf16.mxu0 %v67
  %113 = vmatpush1.bf16.msra.mxu0 %v66
  %114 = vmatprep.subr.bf16.mxu0 0
  %115 = vmatpush2.bf16.msra.mxu0 0
  %116 = vmatprep.subr.bf16.mxu0 0
  %117 = vmatpush2.bf16.msra.mxu0 0
  %118 = vmatprep.subr.bf16.mxu0 0
  %119 = vmatpush2.bf16.msra.mxu0 0
  %120 = vmatprep.subr.bf16.mxu0 0
  %121 = vmatpush2.bf16.msra.mxu0 0
  %122 = vmatprep.subr.bf16.mxu0 0
  %123 = vmatpush2.bf16.msra.mxu0 0
  %124 = vmatprep.subr.bf16.mxu0 0
  %125 = vmatpush2.bf16.msra.mxu0 0
  %126 = vmatprep.subr.bf16.mxu0 0
  %127 = vmatpush2.bf16.msra.mxu0 0
  %128 = vmatprep.subr.bf16.mxu0 0
  %129 = vmatpush2.bf16.msra.mxu0 0
  %130 = vmatprep.mubr.bf16.mxu0 0
  %131 = vmatmul.mubr.bf16.gmra.mxu0 %v80
  %v132 = vpop.f32.mrf.mxu0
  %v133 = vadd.f32 %v30, %v132
  %v134 = vpop.f32.mrf.mxu0
  %v135 = vadd.f32 %v30, %v134
  %v136 = vpop.f32.mrf.mxu0
  %v137 = vadd.f32 %v35, %v136
  %v138 = vpop.f32.mrf.mxu0
  %v139 = vadd.f32 %v35, %v138
  %140 = vdwg.mxu0
  %141 = vmatprep.subr.bf16.mxu0 0
  %142 = vmatpush1.bf16.msra.mxu0 0
  %143 = vmatprep.subr.bf16.mxu0 0
  %144 = vmatpush1.bf16.msra.mxu0 0
  %145 = vmatprep.subr.bf16.mxu0 0
  %146 = vmatpush1.bf16.msra.mxu0 0
  %147 = vmatprep.subr.bf16.mxu0 0
  %148 = vmatpush1.bf16.msra.mxu0 0
  %149 = vmatprep.subr.bf16.mxu0 0
  %150 = vmatpush1.bf16.msra.mxu0 0
  %151 = vmatprep.subr.bf16.mxu0 0
  %152 = vmatpush1.bf16.msra.mxu0 0
  %153 = vmatprep.subr.bf16.mxu0 %v96
  %154 = vmatpush1.bf16.msra.mxu0 %v93
  %155 = vmatprep.subr.bf16.mxu0 %v69
  %156 = vmatpush1.bf16.msra.mxu0 %v68
  %157 = vmatprep.subr.bf16.mxu0 0
  %158 = vmatpush2.bf16.msra.mxu0 0
  %159 = vmatprep.subr.bf16.mxu0 0
  %160 = vmatpush2.bf16.msra.mxu0 0
  %161 = vmatprep.subr.bf16.mxu0 0
  %162 = vmatpush2.bf16.msra.mxu0 0
  %163 = vmatprep.subr.bf16.mxu0 0
  %164 = vmatpush2.bf16.msra.mxu0 0
  %165 = vmatprep.subr.bf16.mxu0 0
  %166 = vmatpush2.bf16.msra.mxu0 0
  %167 = vmatprep.subr.bf16.mxu0 0
  %168 = vmatpush2.bf16.msra.mxu0 0
  %169 = vmatprep.subr.bf16.mxu0 0
  %170 = vmatpush2.bf16.msra.mxu0 0
  %171 = vmatprep.subr.bf16.mxu0 0
  %172 = vmatpush2.bf16.msra.mxu0 0
  %173 = vmatprep.mubr.bf16.mxu0 0
  %174 = vmatmul.mubr.bf16.gmra.mxu0 %v80
  %v175 = vpop.f32.mrf.mxu0
  %v176 = vadd.f32 %v30, %v175
  %v177 = vpop.f32.mrf.mxu0
  %v178 = vadd.f32 %v30, %v177
  %v179 = vpop.f32.mrf.mxu0
  %v180 = vadd.f32 %v35, %v179
  %v181 = vpop.f32.mrf.mxu0
  %v182 = vadd.f32 %v35, %v181
  %183 = vdwg.mxu0
  %v184 = vmul.f32 %v133, 0.5
  %v185 = vmul.f32 %v135, 0.5
  %v186 = vmul.f32 %v176, 0.5
  %v187 = vmul.f32 %v178, 0.5
  %v188 = vmul.f32 %v137, 0.5
  %v189 = vmul.f32 %v139, 0.5
  %v190 = vmul.f32 %v180, 0.5
  %v191 = vmul.f32 %v182, 0.5
  %v192 = vmul.f32 %v133, 0.70710677
  %v193 = vmul.f32 %v135, 0.70710677
  %v194 = vmul.f32 %v176, 0.70710677
  %v195 = vmul.f32 %v178, 0.70710677
  %v196 = vmul.f32 %v137, 0.70710677
  %v197 = vmul.f32 %v139, 0.70710677
  %v198 = vmul.f32 %v180, 0.70710677
  %v199 = vmul.f32 %v182, 0.70710677
  %vm200 = vcmp.ge.f32.partialorder %v192, 0.0
  %vm201 = vcmp.ge.f32.partialorder %v193, 0.0
  %vm202 = vcmp.ge.f32.partialorder %v194, 0.0
  %vm203 = vcmp.ge.f32.partialorder %v195, 0.0
  %vm204 = vcmp.ge.f32.partialorder %v196, 0.0
  %vm205 = vcmp.ge.f32.partialorder %v197, 0.0
  %vm206 = vcmp.ge.f32.partialorder %v198, 0.0
  %vm207 = vcmp.ge.f32.partialorder %v199, 0.0
  %v208 = vsel %vm200, 1.0, -1.0
  %v209 = vsel %vm201, 1.0, -1.0
  %v210 = vsel %vm202, 1.0, -1.0
  %v211 = vsel %vm203, 1.0, -1.0
  %v212 = vsel %vm204, 1.0, -1.0
  %v213 = vsel %vm205, 1.0, -1.0
  %v214 = vsel %vm206, 1.0, -1.0
  %v215 = vsel %vm207, 1.0, -1.0
  %v216 = vand.u32 2147483647, %v192
  %v217 = vand.u32 2147483647, %v193
  %v218 = vand.u32 2147483647, %v194
  %v219 = vand.u32 2147483647, %v195
  %v220 = vand.u32 2147483647, %v196
  %v221 = vand.u32 2147483647, %v197
  %v222 = vand.u32 2147483647, %v198
  %v223 = vand.u32 2147483647, %v199
  %v224 = vmul.f32 %v216, 0.3275911
  %v225 = vmul.f32 %v217, 0.3275911
  %v226 = vmul.f32 %v218, 0.3275911
  %v227 = vmul.f32 %v219, 0.3275911
  %v228 = vmul.f32 %v220, 0.3275911
  %v229 = vmul.f32 %v221, 0.3275911
  %v230 = vmul.f32 %v222, 0.3275911
  %v231 = vmul.f32 %v223, 0.3275911
  %v232 = vadd.f32 %v224, 1.0
  %v233 = vadd.f32 %v225, 1.0
  %v234 = vadd.f32 %v226, 1.0
  %v235 = vadd.f32 %v227, 1.0
  %v236 = vadd.f32 %v228, 1.0
  %v237 = vadd.f32 %v229, 1.0
  %v238 = vadd.f32 %v230, 1.0
  %v239 = vadd.f32 %v231, 1.0
  %v240 = vrcp.pop %v232
  %v241 = vmul.f32 1.0, %v240
  %v242 = vrcp.pop %v233
  %v243 = vmul.f32 1.0, %v242
  %v244 = vrcp.pop %v234
  %v245 = vmul.f32 1.0, %v244
  %v246 = vrcp.pop %v235
  %v247 = vmul.f32 1.0, %v246
  %v248 = vrcp.pop %v236
  %v249 = vmul.f32 1.0, %v248
  %v250 = vrcp.pop %v237
  %v251 = vmul.f32 1.0, %v250
  %v252 = vrcp.pop %v238
  %v253 = vmul.f32 1.0, %v252
  %v254 = vrcp.pop %v239
  %v255 = vmul.f32 1.0, %v254
  %v256 = vmul.f32 %v241, 1.0614054
  %v257 = vmul.f32 %v243, 1.0614054
  %v258 = vmul.f32 %v245, 1.0614054
  %v259 = vmul.f32 %v247, 1.0614054
  %v260 = vmul.f32 %v249, 1.0614054
  %v261 = vmul.f32 %v251, 1.0614054
  %v262 = vmul.f32 %v253, 1.0614054
  %v263 = vmul.f32 %v255, 1.0614054
  %v264 = vadd.f32 %v256, -1.4531521
  %v265 = vadd.f32 %v257, -1.4531521
  %v266 = vadd.f32 %v258, -1.4531521
  %v267 = vadd.f32 %v259, -1.4531521
  %v268 = vadd.f32 %v260, -1.4531521
  %v269 = vadd.f32 %v261, -1.4531521
  %v270 = vadd.f32 %v262, -1.4531521
  %v271 = vadd.f32 %v263, -1.4531521
  %v272 = vmul.f32 %v264, %v241
  %v273 = vmul.f32 %v265, %v243
  %v274 = vmul.f32 %v266, %v245
  %v275 = vmul.f32 %v267, %v247
  %v276 = vmul.f32 %v268, %v249
  %v277 = vmul.f32 %v269, %v251
  %v278 = vmul.f32 %v270, %v253
  %v279 = vmul.f32 %v271, %v255
  %v280 = vadd.f32 %v272, 1.4214138
  %v281 = vadd.f32 %v273, 1.4214138
  %v282 = vadd.f32 %v274, 1.4214138
  %v283 = vadd.f32 %v275, 1.4214138
  %v284 = vadd.f32 %v276, 1.4214138
  %v285 = vadd.f32 %v277, 1.4214138
  %v286 = vadd.f32 %v278, 1.4214138
  %v287 = vadd.f32 %v279, 1.4214138
  %v288 = vmul.f32 %v280, %v241
  %v289 = vmul.f32 %v281, %v243
  %v290 = vmul.f32 %v282, %v245
  %v291 = vmul.f32 %v283, %v247
  %v292 = vmul.f32 %v284, %v249
  %v293 = vmul.f32 %v285, %v251
  %v294 = vmul.f32 %v286, %v253
  %v295 = vmul.f32 %v287, %v255
  %v296 = vadd.f32 %v288, -0.28449672
  %v297 = vadd.f32 %v289, -0.28449672
  %v298 = vadd.f32 %v290, -0.28449672
  %v299 = vadd.f32 %v291, -0.28449672
  %v300 = vadd.f32 %v292, -0.28449672
  %v301 = vadd.f32 %v293, -0.28449672
  %v302 = vadd.f32 %v294, -0.28449672
  %v303 = vadd.f32 %v295, -0.28449672
  %v304 = vmul.f32 %v296, %v241
  %v305 = vmul.f32 %v297, %v243
  %v306 = vmul.f32 %v298, %v245
  %v307 = vmul.f32 %v299, %v247
  %v308 = vmul.f32 %v300, %v249
  %v309 = vmul.f32 %v301, %v251
  %v310 = vmul.f32 %v302, %v253
  %v311 = vmul.f32 %v303, %v255
  %v312 = vadd.f32 %v304, 0.2548296
  %v313 = vadd.f32 %v305, 0.2548296
  %v314 = vadd.f32 %v306, 0.2548296
  %v315 = vadd.f32 %v307, 0.2548296
  %v316 = vadd.f32 %v308, 0.2548296
  %v317 = vadd.f32 %v309, 0.2548296
  %v318 = vadd.f32 %v310, 0.2548296
  %v319 = vadd.f32 %v311, 0.2548296
  %v320 = vmul.f32 %v312, %v241
  %v321 = vmul.f32 %v313, %v243
  %v322 = vmul.f32 %v314, %v245
  %v323 = vmul.f32 %v315, %v247
  %v324 = vmul.f32 %v316, %v249
  %v325 = vmul.f32 %v317, %v251
  %v326 = vmul.f32 %v318, %v253
  %v327 = vmul.f32 %v319, %v255
  %v328 = vsub.f32 0.0, %v216
  %v329 = vsub.f32 0.0, %v217
  %v330 = vsub.f32 0.0, %v218
  %v331 = vsub.f32 0.0, %v219
  %v332 = vsub.f32 0.0, %v220
  %v333 = vsub.f32 0.0, %v221
  %v334 = vsub.f32 0.0, %v222
  %v335 = vsub.f32 0.0, %v223
  %v336 = vmul.f32 %v328, %v216
  %v337 = vmul.f32 %v329, %v217
  %v338 = vmul.f32 %v330, %v218
  %v339 = vmul.f32 %v331, %v219
  %v340 = vmul.f32 %v332, %v220
  %v341 = vmul.f32 %v333, %v221
  %v342 = vmul.f32 %v334, %v222
  %v343 = vmul.f32 %v335, %v223
  %v344 = vmul.f32 %v336, 1.442695
  %v345 = vpow.pop %v344
  %v346 = vmul.f32 %v337, 1.442695
  %v347 = vpow.pop %v346
  %v348 = vmul.f32 %v338, 1.442695
  %v349 = vpow.pop %v348
  %v350 = vmul.f32 %v339, 1.442695
  %v351 = vpow.pop %v350
  %v352 = vmul.f32 %v340, 1.442695
  %v353 = vpow.pop %v352
  %v354 = vmul.f32 %v341, 1.442695
  %v355 = vpow.pop %v354
  %v356 = vmul.f32 %v342, 1.442695
  %v357 = vpow.pop %v356
  %v358 = vmul.f32 %v343, 1.442695
  %v359 = vpow.pop %v358
  %v360 = vmul.f32 %v320, %v345
  %v361 = vmul.f32 %v321, %v347
  %v362 = vmul.f32 %v322, %v349
  %v363 = vmul.f32 %v323, %v351
  %v364 = vmul.f32 %v324, %v353
  %v365 = vmul.f32 %v325, %v355
  %v366 = vmul.f32 %v326, %v357
  %v367 = vmul.f32 %v327, %v359
  %v368 = vsub.f32 1.0, %v360
  %v369 = vsub.f32 1.0, %v361
  %v370 = vsub.f32 1.0, %v362
  %v371 = vsub.f32 1.0, %v363
  %v372 = vsub.f32 1.0, %v364
  %v373 = vsub.f32 1.0, %v365
  %v374 = vsub.f32 1.0, %v366
  %v375 = vsub.f32 1.0, %v367
  %v376 = vmul.f32 %v208, %v368
  %v377 = vmul.f32 %v209, %v369
  %v378 = vmul.f32 %v210, %v370
  %v379 = vmul.f32 %v211, %v371
  %v380 = vmul.f32 %v212, %v372
  %v381 = vmul.f32 %v213, %v373
  %v382 = vmul.f32 %v214, %v374
  %v383 = vmul.f32 %v215, %v375
  %v384 = vadd.f32 %v376, 1.0
  %v385 = vadd.f32 %v377, 1.0
  %v386 = vadd.f32 %v378, 1.0
  %v387 = vadd.f32 %v379, 1.0
  %v388 = vadd.f32 %v380, 1.0
  %v389 = vadd.f32 %v381, 1.0
  %v390 = vadd.f32 %v382, 1.0
  %v391 = vadd.f32 %v383, 1.0
  %v392 = vmul.f32 %v184, %v384
  %v393 = vmul.f32 %v185, %v385
  %v394 = vmul.f32 %v186, %v386
  %v395 = vmul.f32 %v187, %v387
  %v396 = vmul.f32 %v188, %v388
  %v397 = vmul.f32 %v189, %v389
  %v398 = vmul.f32 %v190, %v390
  %v399 = vmul.f32 %v191, %v391
  %s400 = scalar_lea.vmem %s0, 64
  %v401 = vld [vmem:[%s400] sm:$0xff]
  %v402 = vld [vmem:[%s400 + $0x8] sm:$0xff]
  %v403 = vld [vmem:[%s400 + $0x10] sm:$0xff]
  %v404 = vld [vmem:[%s400 + $0x18] sm:$0xff]
  %v405 = vld [vmem:[%s400 + $0x20] sm:$0xff]
  %v406 = vld [vmem:[%s400 + $0x28] sm:$0xff]
  %v407 = vld [vmem:[%s400 + $0x30] sm:$0x33]
  %v408 = vld [vmem:[%s400 + $0x38] sm:$0x33]
  %v417 = vunpack.c.l.b16 %v401
  %v418 = vunpack.c.h.b16 %v401
  %v419 = vunpack.c.l.b16 %v402
  %v420 = vunpack.c.h.b16 %v402
  %v421 = vunpack.c.l.b16 %v403
  %v422 = vunpack.c.h.b16 %v403
  %v423 = vunpack.c.l.b16 %v404
  %v424 = vunpack.c.h.b16 %v404
  %v425 = vunpack.c.l.b16 %v405
  %v426 = vunpack.c.h.b16 %v405
  %v427 = vunpack.c.l.b16 %v406
  %v428 = vunpack.c.h.b16 %v406
  %v429 = vunpack.c.l.b16 %v407
  %v430 = vunpack.c.h.b16 %v407
  %v431 = vunpack.c.l.b16 %v408
  %v432 = vunpack.c.h.b16 %v408
  %v433 = vpack.c.b16 %v421, %v417
  %v434 = vpack.c.b16 %v422, %v418
  %v435 = vpack.c.b16 %v423, %v419
  %v436 = vpack.c.b16 %v424, %v420
  %v437 = vpack.c.b16 %v429, %v425
  %v438 = vpack.c.b16 %v430, %v426
  %v439 = vpack.c.b16 %v431, %v427
  %v440 = vpack.c.b16 %v432, %v428
  %v446 = vand.u32 %v437, %v85
  %v449 = vand.u32 %v438, %v85
  %v452 = vand.u32 %v439, %v85
  %v455 = vand.u32 %v440, %v85
  %457 = vmatprep.subr.bf16.mxu0 0
  %458 = vmatpush1.bf16.msra.mxu0 0
  %459 = vmatprep.subr.bf16.mxu0 0
  %460 = vmatpush1.bf16.msra.mxu0 0
  %461 = vmatprep.subr.bf16.mxu0 0
  %462 = vmatpush1.bf16.msra.mxu0 0
  %463 = vmatprep.subr.bf16.mxu0 0
  %464 = vmatpush1.bf16.msra.mxu0 0
  %465 = vmatprep.subr.bf16.mxu0 0
  %466 = vmatpush1.bf16.msra.mxu0 0
  %467 = vmatprep.subr.bf16.mxu0 0
  %468 = vmatpush1.bf16.msra.mxu0 0
  %469 = vmatprep.subr.bf16.mxu0 %v449
  %470 = vmatpush1.bf16.msra.mxu0 %v446
  %471 = vmatprep.subr.bf16.mxu0 %v434
  %472 = vmatpush1.bf16.msra.mxu0 %v433
  %473 = vmatprep.subr.bf16.mxu0 0
  %474 = vmatpush2.bf16.msra.mxu0 0
  %475 = vmatprep.subr.bf16.mxu0 0
  %476 = vmatpush2.bf16.msra.mxu0 0
  %477 = vmatprep.subr.bf16.mxu0 0
  %478 = vmatpush2.bf16.msra.mxu0 0
  %479 = vmatprep.subr.bf16.mxu0 0
  %480 = vmatpush2.bf16.msra.mxu0 0
  %481 = vmatprep.subr.bf16.mxu0 0
  %482 = vmatpush2.bf16.msra.mxu0 0
  %483 = vmatprep.subr.bf16.mxu0 0
  %484 = vmatpush2.bf16.msra.mxu0 0
  %485 = vmatprep.subr.bf16.mxu0 0
  %486 = vmatpush2.bf16.msra.mxu0 0
  %487 = vmatprep.subr.bf16.mxu0 0
  %488 = vmatpush2.bf16.msra.mxu0 0
  %489 = vmatprep.mubr.bf16.mxu0 0
  %490 = vmatmul.mubr.bf16.gmra.mxu0 %v80
  %v491 = vpop.f32.mrf.mxu0
  %v492 = vadd.f32 %v30, %v491
  %v493 = vpop.f32.mrf.mxu0
  %v494 = vadd.f32 %v30, %v493
  %v495 = vpop.f32.mrf.mxu0
  %v496 = vadd.f32 %v35, %v495
  %v497 = vpop.f32.mrf.mxu0
  %v498 = vadd.f32 %v35, %v497
  %499 = vdwg.mxu0
  %500 = vmatprep.subr.bf16.mxu0 0
  %501 = vmatpush1.bf16.msra.mxu0 0
  %502 = vmatprep.subr.bf16.mxu0 0
  %503 = vmatpush1.bf16.msra.mxu0 0
  %504 = vmatprep.subr.bf16.mxu0 0
  %505 = vmatpush1.bf16.msra.mxu0 0
  %506 = vmatprep.subr.bf16.mxu0 0
  %507 = vmatpush1.bf16.msra.mxu0 0
  %508 = vmatprep.subr.bf16.mxu0 0
  %509 = vmatpush1.bf16.msra.mxu0 0
  %510 = vmatprep.subr.bf16.mxu0 0
  %511 = vmatpush1.bf16.msra.mxu0 0
  %512 = vmatprep.subr.bf16.mxu0 %v455
  %513 = vmatpush1.bf16.msra.mxu0 %v452
  %514 = vmatprep.subr.bf16.mxu0 %v436
  %515 = vmatpush1.bf16.msra.mxu0 %v435
  %516 = vmatprep.subr.bf16.mxu0 0
  %517 = vmatpush2.bf16.msra.mxu0 0
  %518 = vmatprep.subr.bf16.mxu0 0
  %519 = vmatpush2.bf16.msra.mxu0 0
  %520 = vmatprep.subr.bf16.mxu0 0
  %521 = vmatpush2.bf16.msra.mxu0 0
  %522 = vmatprep.subr.bf16.mxu0 0
  %523 = vmatpush2.bf16.msra.mxu0 0
  %524 = vmatprep.subr.bf16.mxu0 0
  %525 = vmatpush2.bf16.msra.mxu0 0
  %526 = vmatprep.subr.bf16.mxu0 0
  %527 = vmatpush2.bf16.msra.mxu0 0
  %528 = vmatprep.subr.bf16.mxu0 0
  %529 = vmatpush2.bf16.msra.mxu0 0
  %530 = vmatprep.subr.bf16.mxu0 0
  %531 = vmatpush2.bf16.msra.mxu0 0
  %532 = vmatprep.mubr.bf16.mxu0 0
  %533 = vmatmul.mubr.bf16.gmra.mxu0 %v80
  %v534 = vpop.f32.mrf.mxu0
  %v535 = vadd.f32 %v30, %v534
  %v536 = vpop.f32.mrf.mxu0
  %v537 = vadd.f32 %v30, %v536
  %v538 = vpop.f32.mrf.mxu0
  %v539 = vadd.f32 %v35, %v538
  %v540 = vpop.f32.mrf.mxu0
  %v541 = vadd.f32 %v35, %v540
  %542 = vdwg.mxu0
  %v543 = vmul.f32 %v492, 0.5
  %v544 = vmul.f32 %v494, 0.5
  %v545 = vmul.f32 %v535, 0.5
  %v546 = vmul.f32 %v537, 0.5
  %v547 = vmul.f32 %v496, 0.5
  %v548 = vmul.f32 %v498, 0.5
  %v549 = vmul.f32 %v539, 0.5
  %v550 = vmul.f32 %v541, 0.5
  %v551 = vmul.f32 %v492, 0.70710677
  %v552 = vmul.f32 %v494, 0.70710677
  %v553 = vmul.f32 %v535, 0.70710677
  %v554 = vmul.f32 %v537, 0.70710677
  %v555 = vmul.f32 %v496, 0.70710677
  %v556 = vmul.f32 %v498, 0.70710677
  %v557 = vmul.f32 %v539, 0.70710677
  %v558 = vmul.f32 %v541, 0.70710677
  %vm559 = vcmp.ge.f32.partialorder %v551, 0.0
  %vm560 = vcmp.ge.f32.partialorder %v552, 0.0
  %vm561 = vcmp.ge.f32.partialorder %v553, 0.0
  %vm562 = vcmp.ge.f32.partialorder %v554, 0.0
  %vm563 = vcmp.ge.f32.partialorder %v555, 0.0
  %vm564 = vcmp.ge.f32.partialorder %v556, 0.0
  %vm565 = vcmp.ge.f32.partialorder %v557, 0.0
  %vm566 = vcmp.ge.f32.partialorder %v558, 0.0
  %v567 = vsel %vm559, 1.0, -1.0
  %v568 = vsel %vm560, 1.0, -1.0
  %v569 = vsel %vm561, 1.0, -1.0
  %v570 = vsel %vm562, 1.0, -1.0
  %v571 = vsel %vm563, 1.0, -1.0
  %v572 = vsel %vm564, 1.0, -1.0
  %v573 = vsel %vm565, 1.0, -1.0
  %v574 = vsel %vm566, 1.0, -1.0
  %v575 = vand.u32 2147483647, %v551
  %v576 = vand.u32 2147483647, %v552
  %v577 = vand.u32 2147483647, %v553
  %v578 = vand.u32 2147483647, %v554
  %v579 = vand.u32 2147483647, %v555
  %v580 = vand.u32 2147483647, %v556
  %v581 = vand.u32 2147483647, %v557
  %v582 = vand.u32 2147483647, %v558
  %v583 = vmul.f32 %v575, 0.3275911
  %v584 = vmul.f32 %v576, 0.3275911
  %v585 = vmul.f32 %v577, 0.3275911
  %v586 = vmul.f32 %v578, 0.3275911
  %v587 = vmul.f32 %v579, 0.3275911
  %v588 = vmul.f32 %v580, 0.3275911
  %v589 = vmul.f32 %v581, 0.3275911
  %v590 = vmul.f32 %v582, 0.3275911
  %v591 = vadd.f32 %v583, 1.0
  %v592 = vadd.f32 %v584, 1.0
  %v593 = vadd.f32 %v585, 1.0
  %v594 = vadd.f32 %v586, 1.0
  %v595 = vadd.f32 %v587, 1.0
  %v596 = vadd.f32 %v588, 1.0
  %v597 = vadd.f32 %v589, 1.0
  %v598 = vadd.f32 %v590, 1.0
  %v599 = vrcp.pop %v591
  %v600 = vmul.f32 1.0, %v599
  %v601 = vrcp.pop %v592
  %v602 = vmul.f32 1.0, %v601
  %v603 = vrcp.pop %v593
  %v604 = vmul.f32 1.0, %v603
  %v605 = vrcp.pop %v594
  %v606 = vmul.f32 1.0, %v605
  %v607 = vrcp.pop %v595
  %v608 = vmul.f32 1.0, %v607
  %v609 = vrcp.pop %v596
  %v610 = vmul.f32 1.0, %v609
  %v611 = vrcp.pop %v597
  %v612 = vmul.f32 1.0, %v611
  %v613 = vrcp.pop %v598
  %v614 = vmul.f32 1.0, %v613
  %v615 = vmul.f32 %v600, 1.0614054
  %v616 = vmul.f32 %v602, 1.0614054
  %v617 = vmul.f32 %v604, 1.0614054
  %v618 = vmul.f32 %v606, 1.0614054
  %v619 = vmul.f32 %v608, 1.0614054
  %v620 = vmul.f32 %v610, 1.0614054
  %v621 = vmul.f32 %v612, 1.0614054
  %v622 = vmul.f32 %v614, 1.0614054
  %v623 = vadd.f32 %v615, -1.4531521
  %v624 = vadd.f32 %v616, -1.4531521
  %v625 = vadd.f32 %v617, -1.4531521
  %v626 = vadd.f32 %v618, -1.4531521
  %v627 = vadd.f32 %v619, -1.4531521
  %v628 = vadd.f32 %v620, -1.4531521
  %v629 = vadd.f32 %v621, -1.4531521
  %v630 = vadd.f32 %v622, -1.4531521
  %v631 = vmul.f32 %v623, %v600
  %v632 = vmul.f32 %v624, %v602
  %v633 = vmul.f32 %v625, %v604
  %v634 = vmul.f32 %v626, %v606
  %v635 = vmul.f32 %v627, %v608
  %v636 = vmul.f32 %v628, %v610
  %v637 = vmul.f32 %v629, %v612
  %v638 = vmul.f32 %v630, %v614
  %v639 = vadd.f32 %v631, 1.4214138
  %v640 = vadd.f32 %v632, 1.4214138
  %v641 = vadd.f32 %v633, 1.4214138
  %v642 = vadd.f32 %v634, 1.4214138
  %v643 = vadd.f32 %v635, 1.4214138
  %v644 = vadd.f32 %v636, 1.4214138
  %v645 = vadd.f32 %v637, 1.4214138
  %v646 = vadd.f32 %v638, 1.4214138
  %v647 = vmul.f32 %v639, %v600
  %v648 = vmul.f32 %v640, %v602
  %v649 = vmul.f32 %v641, %v604
  %v650 = vmul.f32 %v642, %v606
  %v651 = vmul.f32 %v643, %v608
  %v652 = vmul.f32 %v644, %v610
  %v653 = vmul.f32 %v645, %v612
  %v654 = vmul.f32 %v646, %v614
  %v655 = vadd.f32 %v647, -0.28449672
  %v656 = vadd.f32 %v648, -0.28449672
  %v657 = vadd.f32 %v649, -0.28449672
  %v658 = vadd.f32 %v650, -0.28449672
  %v659 = vadd.f32 %v651, -0.28449672
  %v660 = vadd.f32 %v652, -0.28449672
  %v661 = vadd.f32 %v653, -0.28449672
  %v662 = vadd.f32 %v654, -0.28449672
  %v663 = vmul.f32 %v655, %v600
  %v664 = vmul.f32 %v656, %v602
  %v665 = vmul.f32 %v657, %v604
  %v666 = vmul.f32 %v658, %v606
  %v667 = vmul.f32 %v659, %v608
  %v668 = vmul.f32 %v660, %v610
  %v669 = vmul.f32 %v661, %v612
  %v670 = vmul.f32 %v662, %v614
  %v671 = vadd.f32 %v663, 0.2548296
  %v672 = vadd.f32 %v664, 0.2548296
  %v673 = vadd.f32 %v665, 0.2548296
  %v674 = vadd.f32 %v666, 0.2548296
  %v675 = vadd.f32 %v667, 0.2548296
  %v676 = vadd.f32 %v668, 0.2548296
  %v677 = vadd.f32 %v669, 0.2548296
  %v678 = vadd.f32 %v670, 0.2548296
  %v679 = vmul.f32 %v671, %v600
  %v680 = vmul.f32 %v672, %v602
  %v681 = vmul.f32 %v673, %v604
  %v682 = vmul.f32 %v674, %v606
  %v683 = vmul.f32 %v675, %v608
  %v684 = vmul.f32 %v676, %v610
  %v685 = vmul.f32 %v677, %v612
  %v686 = vmul.f32 %v678, %v614
  %v687 = vsub.f32 0.0, %v575
  %v688 = vsub.f32 0.0, %v576
  %v689 = vsub.f32 0.0, %v577
  %v690 = vsub.f32 0.0, %v578
  %v691 = vsub.f32 0.0, %v579
  %v692 = vsub.f32 0.0, %v580
  %v693 = vsub.f32 0.0, %v581
  %v694 = vsub.f32 0.0, %v582
  %v695 = vmul.f32 %v687, %v575
  %v696 = vmul.f32 %v688, %v576
  %v697 = vmul.f32 %v689, %v577
  %v698 = vmul.f32 %v690, %v578
  %v699 = vmul.f32 %v691, %v579
  %v700 = vmul.f32 %v692, %v580
  %v701 = vmul.f32 %v693, %v581
  %v702 = vmul.f32 %v694, %v582
  %v703 = vmul.f32 %v695, 1.442695
  %v704 = vpow.pop %v703
  %v705 = vmul.f32 %v696, 1.442695
  %v706 = vpow.pop %v705
  %v707 = vmul.f32 %v697, 1.442695
  %v708 = vpow.pop %v707
  %v709 = vmul.f32 %v698, 1.442695
  %v710 = vpow.pop %v709
  %v711 = vmul.f32 %v699, 1.442695
  %v712 = vpow.pop %v711
  %v713 = vmul.f32 %v700, 1.442695
  %v714 = vpow.pop %v713
  %v715 = vmul.f32 %v701, 1.442695
  %v716 = vpow.pop %v715
  %v717 = vmul.f32 %v702, 1.442695
  %v718 = vpow.pop %v717
  %v719 = vmul.f32 %v679, %v704
  %v720 = vmul.f32 %v680, %v706
  %v721 = vmul.f32 %v681, %v708
  %v722 = vmul.f32 %v682, %v710
  %v723 = vmul.f32 %v683, %v712
  %v724 = vmul.f32 %v684, %v714
  %v725 = vmul.f32 %v685, %v716
  %v726 = vmul.f32 %v686, %v718
  %v727 = vsub.f32 1.0, %v719
  %v728 = vsub.f32 1.0, %v720
  %v729 = vsub.f32 1.0, %v721
  %v730 = vsub.f32 1.0, %v722
  %v731 = vsub.f32 1.0, %v723
  %v732 = vsub.f32 1.0, %v724
  %v733 = vsub.f32 1.0, %v725
  %v734 = vsub.f32 1.0, %v726
  %v735 = vmul.f32 %v567, %v727
  %v736 = vmul.f32 %v568, %v728
  %v737 = vmul.f32 %v569, %v729
  %v738 = vmul.f32 %v570, %v730
  %v739 = vmul.f32 %v571, %v731
  %v740 = vmul.f32 %v572, %v732
  %v741 = vmul.f32 %v573, %v733
  %v742 = vmul.f32 %v574, %v734
  %v743 = vadd.f32 %v735, 1.0
  %v744 = vadd.f32 %v736, 1.0
  %v745 = vadd.f32 %v737, 1.0
  %v746 = vadd.f32 %v738, 1.0
  %v747 = vadd.f32 %v739, 1.0
  %v748 = vadd.f32 %v740, 1.0
  %v749 = vadd.f32 %v741, 1.0
  %v750 = vadd.f32 %v742, 1.0
  %v751 = vmul.f32 %v543, %v743
  %v752 = vmul.f32 %v544, %v744
  %v753 = vmul.f32 %v545, %v745
  %v754 = vmul.f32 %v546, %v746
  %v755 = vmul.f32 %v547, %v747
  %v756 = vmul.f32 %v548, %v748
  %v757 = vmul.f32 %v549, %v749
  %v758 = vmul.f32 %v550, %v750
  %v759 = vmax.f32 %v392, %v751
  %v760 = vmax.f32 %v393, %v752
  %v761 = vmax.f32 %v394, %v753
  %v762 = vmax.f32 %v395, %v754
  %v763 = vmax.f32 %v396, %v755
  %v764 = vmax.f32 %v397, %v756
  %v765 = vmax.f32 %v398, %v757
  %v766 = vmax.f32 %v399, %v758
  %s767 = scalar_lea.vmem %s0, 128
  %v768 = vld [vmem:[%s767] sm:$0xff]
  %v769 = vld [vmem:[%s767 + $0x8] sm:$0xff]
  %v770 = vld [vmem:[%s767 + $0x10] sm:$0xff]
  %v771 = vld [vmem:[%s767 + $0x18] sm:$0xff]
  %v772 = vld [vmem:[%s767 + $0x20] sm:$0xff]
  %v773 = vld [vmem:[%s767 + $0x28] sm:$0xff]
  %v774 = vld [vmem:[%s767 + $0x30] sm:$0x33]
  %v775 = vld [vmem:[%s767 + $0x38] sm:$0x33]
  %v784 = vunpack.c.l.b16 %v768
  %v785 = vunpack.c.h.b16 %v768
  %v786 = vunpack.c.l.b16 %v769
  %v787 = vunpack.c.h.b16 %v769
  %v788 = vunpack.c.l.b16 %v770
  %v789 = vunpack.c.h.b16 %v770
  %v790 = vunpack.c.l.b16 %v771
  %v791 = vunpack.c.h.b16 %v771
  %v792 = vunpack.c.l.b16 %v772
  %v793 = vunpack.c.h.b16 %v772
  %v794 = vunpack.c.l.b16 %v773
  %v795 = vunpack.c.h.b16 %v773
  %v796 = vunpack.c.l.b16 %v774
  %v797 = vunpack.c.h.b16 %v774
  %v798 = vunpack.c.l.b16 %v775
  %v799 = vunpack.c.h.b16 %v775
  %v800 = vpack.c.b16 %v788, %v784
  %v801 = vpack.c.b16 %v789, %v785
  %v802 = vpack.c.b16 %v790, %v786
  %v803 = vpack.c.b16 %v791, %v787
  %v804 = vpack.c.b16 %v796, %v792
  %v805 = vpack.c.b16 %v797, %v793
  %v806 = vpack.c.b16 %v798, %v794
  %v807 = vpack.c.b16 %v799, %v795
  %v813 = vand.u32 %v804, %v85
  %v816 = vand.u32 %v805, %v85
  %v819 = vand.u32 %v806, %v85
  %v822 = vand.u32 %v807, %v85
  %824 = vmatprep.subr.bf16.mxu0 0
  %825 = vmatpush1.bf16.msra.mxu0 0
  %826 = vmatprep.subr.bf16.mxu0 0
  %827 = vmatpush1.bf16.msra.mxu0 0
  %828 = vmatprep.subr.bf16.mxu0 0
  %829 = vmatpush1.bf16.msra.mxu0 0
  %830 = vmatprep.subr.bf16.mxu0 0
  %831 = vmatpush1.bf16.msra.mxu0 0
  %832 = vmatprep.subr.bf16.mxu0 0
  %833 = vmatpush1.bf16.msra.mxu0 0
  %834 = vmatprep.subr.bf16.mxu0 0
  %835 = vmatpush1.bf16.msra.mxu0 0
  %836 = vmatprep.subr.bf16.mxu0 %v816
  %837 = vmatpush1.bf16.msra.mxu0 %v813
  %838 = vmatprep.subr.bf16.mxu0 %v801
  %839 = vmatpush1.bf16.msra.mxu0 %v800
  %840 = vmatprep.subr.bf16.mxu0 0
  %841 = vmatpush2.bf16.msra.mxu0 0
  %842 = vmatprep.subr.bf16.mxu0 0
  %843 = vmatpush2.bf16.msra.mxu0 0
  %844 = vmatprep.subr.bf16.mxu0 0
  %845 = vmatpush2.bf16.msra.mxu0 0
  %846 = vmatprep.subr.bf16.mxu0 0
  %847 = vmatpush2.bf16.msra.mxu0 0
  %848 = vmatprep.subr.bf16.mxu0 0
  %849 = vmatpush2.bf16.msra.mxu0 0
  %850 = vmatprep.subr.bf16.mxu0 0
  %851 = vmatpush2.bf16.msra.mxu0 0
  %852 = vmatprep.subr.bf16.mxu0 0
  %853 = vmatpush2.bf16.msra.mxu0 0
  %854 = vmatprep.subr.bf16.mxu0 0
  %855 = vmatpush2.bf16.msra.mxu0 0
  %856 = vmatprep.mubr.bf16.mxu0 0
  %857 = vmatmul.mubr.bf16.gmra.mxu0 %v80
  %v858 = vpop.f32.mrf.mxu0
  %v859 = vadd.f32 %v30, %v858
  %v860 = vpop.f32.mrf.mxu0
  %v861 = vadd.f32 %v30, %v860
  %v862 = vpop.f32.mrf.mxu0
  %v863 = vadd.f32 %v35, %v862
  %v864 = vpop.f32.mrf.mxu0
  %v865 = vadd.f32 %v35, %v864
  %866 = vdwg.mxu0
  %867 = vmatprep.subr.bf16.mxu0 0
  %868 = vmatpush1.bf16.msra.mxu0 0
  %869 = vmatprep.subr.bf16.mxu0 0
  %870 = vmatpush1.bf16.msra.mxu0 0
  %871 = vmatprep.subr.bf16.mxu0 0
  %872 = vmatpush1.bf16.msra.mxu0 0
  %873 = vmatprep.subr.bf16.mxu0 0
  %874 = vmatpush1.bf16.msra.mxu0 0
  %875 = vmatprep.subr.bf16.mxu0 0
  %876 = vmatpush1.bf16.msra.mxu0 0
  %877 = vmatprep.subr.bf16.mxu0 0
  %878 = vmatpush1.bf16.msra.mxu0 0
  %879 = vmatprep.subr.bf16.mxu0 %v822
  %880 = vmatpush1.bf16.msra.mxu0 %v819
  %881 = vmatprep.subr.bf16.mxu0 %v803
  %882 = vmatpush1.bf16.msra.mxu0 %v802
  %883 = vmatprep.subr.bf16.mxu0 0
  %884 = vmatpush2.bf16.msra.mxu0 0
  %885 = vmatprep.subr.bf16.mxu0 0
  %886 = vmatpush2.bf16.msra.mxu0 0
  %887 = vmatprep.subr.bf16.mxu0 0
  %888 = vmatpush2.bf16.msra.mxu0 0
  %889 = vmatprep.subr.bf16.mxu0 0
  %890 = vmatpush2.bf16.msra.mxu0 0
  %891 = vmatprep.subr.bf16.mxu0 0
  %892 = vmatpush2.bf16.msra.mxu0 0
  %893 = vmatprep.subr.bf16.mxu0 0
  %894 = vmatpush2.bf16.msra.mxu0 0
  %895 = vmatprep.subr.bf16.mxu0 0
  %896 = vmatpush2.bf16.msra.mxu0 0
  %897 = vmatprep.subr.bf16.mxu0 0
  %898 = vmatpush2.bf16.msra.mxu0 0
  %899 = vmatprep.mubr.bf16.mxu0 0
  %900 = vmatmul.mubr.bf16.gmra.mxu0 %v80
  %v901 = vpop.f32.mrf.mxu0
  %v902 = vadd.f32 %v30, %v901
  %v903 = vpop.f32.mrf.mxu0
  %v904 = vadd.f32 %v30, %v903
  %v905 = vpop.f32.mrf.mxu0
  %v906 = vadd.f32 %v35, %v905
  %v907 = vpop.f32.mrf.mxu0
  %v908 = vadd.f32 %v35, %v907
  %909 = vdwg.mxu0
  %v910 = vmul.f32 %v859, 0.5
  %v911 = vmul.f32 %v861, 0.5
  %v912 = vmul.f32 %v902, 0.5
  %v913 = vmul.f32 %v904, 0.5
  %v914 = vmul.f32 %v863, 0.5
  %v915 = vmul.f32 %v865, 0.5
  %v916 = vmul.f32 %v906, 0.5
  %v917 = vmul.f32 %v908, 0.5
  %v918 = vmul.f32 %v859, 0.70710677
  %v919 = vmul.f32 %v861, 0.70710677
  %v920 = vmul.f32 %v902, 0.70710677
  %v921 = vmul.f32 %v904, 0.70710677
  %v922 = vmul.f32 %v863, 0.70710677
  %v923 = vmul.f32 %v865, 0.70710677
  %v924 = vmul.f32 %v906, 0.70710677
  %v925 = vmul.f32 %v908, 0.70710677
  %vm926 = vcmp.ge.f32.partialorder %v918, 0.0
  %vm927 = vcmp.ge.f32.partialorder %v919, 0.0
  %vm928 = vcmp.ge.f32.partialorder %v920, 0.0
  %vm929 = vcmp.ge.f32.partialorder %v921, 0.0
  %vm930 = vcmp.ge.f32.partialorder %v922, 0.0
  %vm931 = vcmp.ge.f32.partialorder %v923, 0.0
  %vm932 = vcmp.ge.f32.partialorder %v924, 0.0
  %vm933 = vcmp.ge.f32.partialorder %v925, 0.0
  %v934 = vsel %vm926, 1.0, -1.0
  %v935 = vsel %vm927, 1.0, -1.0
  %v936 = vsel %vm928, 1.0, -1.0
  %v937 = vsel %vm929, 1.0, -1.0
  %v938 = vsel %vm930, 1.0, -1.0
  %v939 = vsel %vm931, 1.0, -1.0
  %v940 = vsel %vm932, 1.0, -1.0
  %v941 = vsel %vm933, 1.0, -1.0
  %v942 = vand.u32 2147483647, %v918
  %v943 = vand.u32 2147483647, %v919
  %v944 = vand.u32 2147483647, %v920
  %v945 = vand.u32 2147483647, %v921
  %v946 = vand.u32 2147483647, %v922
  %v947 = vand.u32 2147483647, %v923
  %v948 = vand.u32 2147483647, %v924
  %v949 = vand.u32 2147483647, %v925
  %v950 = vmul.f32 %v942, 0.3275911
  %v951 = vmul.f32 %v943, 0.3275911
  %v952 = vmul.f32 %v944, 0.3275911
  %v953 = vmul.f32 %v945, 0.3275911
  %v954 = vmul.f32 %v946, 0.3275911
  %v955 = vmul.f32 %v947, 0.3275911
  %v956 = vmul.f32 %v948, 0.3275911
  %v957 = vmul.f32 %v949, 0.3275911
  %v958 = vadd.f32 %v950, 1.0
  %v959 = vadd.f32 %v951, 1.0
  %v960 = vadd.f32 %v952, 1.0
  %v961 = vadd.f32 %v953, 1.0
  %v962 = vadd.f32 %v954, 1.0
  %v963 = vadd.f32 %v955, 1.0
  %v964 = vadd.f32 %v956, 1.0
  %v965 = vadd.f32 %v957, 1.0
  %v966 = vrcp.pop %v958
  %v967 = vmul.f32 1.0, %v966
  %v968 = vrcp.pop %v959
  %v969 = vmul.f32 1.0, %v968
  %v970 = vrcp.pop %v960
  %v971 = vmul.f32 1.0, %v970
  %v972 = vrcp.pop %v961
  %v973 = vmul.f32 1.0, %v972
  %v974 = vrcp.pop %v962
  %v975 = vmul.f32 1.0, %v974
  %v976 = vrcp.pop %v963
  %v977 = vmul.f32 1.0, %v976
  %v978 = vrcp.pop %v964
  %v979 = vmul.f32 1.0, %v978
  %v980 = vrcp.pop %v965
  %v981 = vmul.f32 1.0, %v980
  %v982 = vmul.f32 %v967, 1.0614054
  %v983 = vmul.f32 %v969, 1.0614054
  %v984 = vmul.f32 %v971, 1.0614054
  %v985 = vmul.f32 %v973, 1.0614054
  %v986 = vmul.f32 %v975, 1.0614054
  %v987 = vmul.f32 %v977, 1.0614054
  %v988 = vmul.f32 %v979, 1.0614054
  %v989 = vmul.f32 %v981, 1.0614054
  %v990 = vadd.f32 %v982, -1.4531521
  %v991 = vadd.f32 %v983, -1.4531521
  %v992 = vadd.f32 %v984, -1.4531521
  %v993 = vadd.f32 %v985, -1.4531521
  %v994 = vadd.f32 %v986, -1.4531521
  %v995 = vadd.f32 %v987, -1.4531521
  %v996 = vadd.f32 %v988, -1.4531521
  %v997 = vadd.f32 %v989, -1.4531521
  %v998 = vmul.f32 %v990, %v967
  %v999 = vmul.f32 %v991, %v969
  %v1000 = vmul.f32 %v992, %v971
  %v1001 = vmul.f32 %v993, %v973
  %v1002 = vmul.f32 %v994, %v975
  %v1003 = vmul.f32 %v995, %v977
  %v1004 = vmul.f32 %v996, %v979
  %v1005 = vmul.f32 %v997, %v981
  %v1006 = vadd.f32 %v998, 1.4214138
  %v1007 = vadd.f32 %v999, 1.4214138
  %v1008 = vadd.f32 %v1000, 1.4214138
  %v1009 = vadd.f32 %v1001, 1.4214138
  %v1010 = vadd.f32 %v1002, 1.4214138
  %v1011 = vadd.f32 %v1003, 1.4214138
  %v1012 = vadd.f32 %v1004, 1.4214138
  %v1013 = vadd.f32 %v1005, 1.4214138
  %v1014 = vmul.f32 %v1006, %v967
  %v1015 = vmul.f32 %v1007, %v969
  %v1016 = vmul.f32 %v1008, %v971
  %v1017 = vmul.f32 %v1009, %v973
  %v1018 = vmul.f32 %v1010, %v975
  %v1019 = vmul.f32 %v1011, %v977
  %v1020 = vmul.f32 %v1012, %v979
  %v1021 = vmul.f32 %v1013, %v981
  %v1022 = vadd.f32 %v1014, -0.28449672
  %v1023 = vadd.f32 %v1015, -0.28449672
  %v1024 = vadd.f32 %v1016, -0.28449672
  %v1025 = vadd.f32 %v1017, -0.28449672
  %v1026 = vadd.f32 %v1018, -0.28449672
  %v1027 = vadd.f32 %v1019, -0.28449672
  %v1028 = vadd.f32 %v1020, -0.28449672
  %v1029 = vadd.f32 %v1021, -0.28449672
  %v1030 = vmul.f32 %v1022, %v967
  %v1031 = vmul.f32 %v1023, %v969
  %v1032 = vmul.f32 %v1024, %v971
  %v1033 = vmul.f32 %v1025, %v973
  %v1034 = vmul.f32 %v1026, %v975
  %v1035 = vmul.f32 %v1027, %v977
  %v1036 = vmul.f32 %v1028, %v979
  %v1037 = vmul.f32 %v1029, %v981
  %v1038 = vadd.f32 %v1030, 0.2548296
  %v1039 = vadd.f32 %v1031, 0.2548296
  %v1040 = vadd.f32 %v1032, 0.2548296
  %v1041 = vadd.f32 %v1033, 0.2548296
  %v1042 = vadd.f32 %v1034, 0.2548296
  %v1043 = vadd.f32 %v1035, 0.2548296
  %v1044 = vadd.f32 %v1036, 0.2548296
  %v1045 = vadd.f32 %v1037, 0.2548296
  %v1046 = vmul.f32 %v1038, %v967
  %v1047 = vmul.f32 %v1039, %v969
  %v1048 = vmul.f32 %v1040, %v971
  %v1049 = vmul.f32 %v1041, %v973
  %v1050 = vmul.f32 %v1042, %v975
  %v1051 = vmul.f32 %v1043, %v977
  %v1052 = vmul.f32 %v1044, %v979
  %v1053 = vmul.f32 %v1045, %v981
  %v1054 = vsub.f32 0.0, %v942
  %v1055 = vsub.f32 0.0, %v943
  %v1056 = vsub.f32 0.0, %v944
  %v1057 = vsub.f32 0.0, %v945
  %v1058 = vsub.f32 0.0, %v946
  %v1059 = vsub.f32 0.0, %v947
  %v1060 = vsub.f32 0.0, %v948
  %v1061 = vsub.f32 0.0, %v949
  %v1062 = vmul.f32 %v1054, %v942
  %v1063 = vmul.f32 %v1055, %v943
  %v1064 = vmul.f32 %v1056, %v944
  %v1065 = vmul.f32 %v1057, %v945
  %v1066 = vmul.f32 %v1058, %v946
  %v1067 = vmul.f32 %v1059, %v947
  %v1068 = vmul.f32 %v1060, %v948
  %v1069 = vmul.f32 %v1061, %v949
  %v1070 = vmul.f32 %v1062, 1.442695
  %v1071 = vpow.pop %v1070
  %v1072 = vmul.f32 %v1063, 1.442695
  %v1073 = vpow.pop %v1072
  %v1074 = vmul.f32 %v1064, 1.442695
  %v1075 = vpow.pop %v1074
  %v1076 = vmul.f32 %v1065, 1.442695
  %v1077 = vpow.pop %v1076
  %v1078 = vmul.f32 %v1066, 1.442695
  %v1079 = vpow.pop %v1078
  %v1080 = vmul.f32 %v1067, 1.442695
  %v1081 = vpow.pop %v1080
  %v1082 = vmul.f32 %v1068, 1.442695
  %v1083 = vpow.pop %v1082
  %v1084 = vmul.f32 %v1069, 1.442695
  %v1085 = vpow.pop %v1084
  %v1086 = vmul.f32 %v1046, %v1071
  %v1087 = vmul.f32 %v1047, %v1073
  %v1088 = vmul.f32 %v1048, %v1075
  %v1089 = vmul.f32 %v1049, %v1077
  %v1090 = vmul.f32 %v1050, %v1079
  %v1091 = vmul.f32 %v1051, %v1081
  %v1092 = vmul.f32 %v1052, %v1083
  %v1093 = vmul.f32 %v1053, %v1085
  %v1094 = vsub.f32 1.0, %v1086
  %v1095 = vsub.f32 1.0, %v1087
  %v1096 = vsub.f32 1.0, %v1088
  %v1097 = vsub.f32 1.0, %v1089
  %v1098 = vsub.f32 1.0, %v1090
  %v1099 = vsub.f32 1.0, %v1091
  %v1100 = vsub.f32 1.0, %v1092
  %v1101 = vsub.f32 1.0, %v1093
  %v1102 = vmul.f32 %v934, %v1094
  %v1103 = vmul.f32 %v935, %v1095
  %v1104 = vmul.f32 %v936, %v1096
  %v1105 = vmul.f32 %v937, %v1097
  %v1106 = vmul.f32 %v938, %v1098
  %v1107 = vmul.f32 %v939, %v1099
  %v1108 = vmul.f32 %v940, %v1100
  %v1109 = vmul.f32 %v941, %v1101
  %v1110 = vadd.f32 %v1102, 1.0
  %v1111 = vadd.f32 %v1103, 1.0
  %v1112 = vadd.f32 %v1104, 1.0
  %v1113 = vadd.f32 %v1105, 1.0
  %v1114 = vadd.f32 %v1106, 1.0
  %v1115 = vadd.f32 %v1107, 1.0
  %v1116 = vadd.f32 %v1108, 1.0
  %v1117 = vadd.f32 %v1109, 1.0
  %v1118 = vmul.f32 %v910, %v1110
  %v1119 = vmul.f32 %v911, %v1111
  %v1120 = vmul.f32 %v912, %v1112
  %v1121 = vmul.f32 %v913, %v1113
  %v1122 = vmul.f32 %v914, %v1114
  %v1123 = vmul.f32 %v915, %v1115
  %v1124 = vmul.f32 %v916, %v1116
  %v1125 = vmul.f32 %v917, %v1117
  %s1126 = scalar_lea.vmem %s0, 192
  %v1127 = vld [vmem:[%s1126] sm:$0xff]
  %v1128 = vld [vmem:[%s1126 + $0x8] sm:$0xff]
  %v1129 = vld [vmem:[%s1126 + $0x10] sm:$0xff]
  %v1130 = vld [vmem:[%s1126 + $0x18] sm:$0xff]
  %v1131 = vld [vmem:[%s1126 + $0x20] sm:$0xff]
  %v1132 = vld [vmem:[%s1126 + $0x28] sm:$0xff]
  %v1133 = vld [vmem:[%s1126 + $0x30] sm:$0x33]
  %v1134 = vld [vmem:[%s1126 + $0x38] sm:$0x33]
  %v1143 = vunpack.c.l.b16 %v1127
  %v1144 = vunpack.c.h.b16 %v1127
  %v1145 = vunpack.c.l.b16 %v1128
  %v1146 = vunpack.c.h.b16 %v1128
  %v1147 = vunpack.c.l.b16 %v1129
  %v1148 = vunpack.c.h.b16 %v1129
  %v1149 = vunpack.c.l.b16 %v1130
  %v1150 = vunpack.c.h.b16 %v1130
  %v1151 = vunpack.c.l.b16 %v1131
  %v1152 = vunpack.c.h.b16 %v1131
  %v1153 = vunpack.c.l.b16 %v1132
  %v1154 = vunpack.c.h.b16 %v1132
  %v1155 = vunpack.c.l.b16 %v1133
  %v1156 = vunpack.c.h.b16 %v1133
  %v1157 = vunpack.c.l.b16 %v1134
  %v1158 = vunpack.c.h.b16 %v1134
  %v1159 = vpack.c.b16 %v1147, %v1143
  %v1160 = vpack.c.b16 %v1148, %v1144
  %v1161 = vpack.c.b16 %v1149, %v1145
  %v1162 = vpack.c.b16 %v1150, %v1146
  %v1163 = vpack.c.b16 %v1155, %v1151
  %v1164 = vpack.c.b16 %v1156, %v1152
  %v1165 = vpack.c.b16 %v1157, %v1153
  %v1166 = vpack.c.b16 %v1158, %v1154
  %v1172 = vand.u32 %v1163, %v85
  %v1175 = vand.u32 %v1164, %v85
  %v1178 = vand.u32 %v1165, %v85
  %v1181 = vand.u32 %v1166, %v85
  %1183 = vmatprep.subr.bf16.mxu0 0
  %1184 = vmatpush1.bf16.msra.mxu0 0
  %1185 = vmatprep.subr.bf16.mxu0 0
  %1186 = vmatpush1.bf16.msra.mxu0 0
  %1187 = vmatprep.subr.bf16.mxu0 0
  %1188 = vmatpush1.bf16.msra.mxu0 0
  %1189 = vmatprep.subr.bf16.mxu0 0
  %1190 = vmatpush1.bf16.msra.mxu0 0
  %1191 = vmatprep.subr.bf16.mxu0 0
  %1192 = vmatpush1.bf16.msra.mxu0 0
  %1193 = vmatprep.subr.bf16.mxu0 0
  %1194 = vmatpush1.bf16.msra.mxu0 0
  %1195 = vmatprep.subr.bf16.mxu0 %v1175
  %1196 = vmatpush1.bf16.msra.mxu0 %v1172
  %1197 = vmatprep.subr.bf16.mxu0 %v1160
  %1198 = vmatpush1.bf16.msra.mxu0 %v1159
  %1199 = vmatprep.subr.bf16.mxu0 0
  %1200 = vmatpush2.bf16.msra.mxu0 0
  %1201 = vmatprep.subr.bf16.mxu0 0
  %1202 = vmatpush2.bf16.msra.mxu0 0
  %1203 = vmatprep.subr.bf16.mxu0 0
  %1204 = vmatpush2.bf16.msra.mxu0 0
  %1205 = vmatprep.subr.bf16.mxu0 0
  %1206 = vmatpush2.bf16.msra.mxu0 0
  %1207 = vmatprep.subr.bf16.mxu0 0
  %1208 = vmatpush2.bf16.msra.mxu0 0
  %1209 = vmatprep.subr.bf16.mxu0 0
  %1210 = vmatpush2.bf16.msra.mxu0 0
  %1211 = vmatprep.subr.bf16.mxu0 0
  %1212 = vmatpush2.bf16.msra.mxu0 0
  %1213 = vmatprep.subr.bf16.mxu0 0
  %1214 = vmatpush2.bf16.msra.mxu0 0
  %1215 = vmatprep.mubr.bf16.mxu0 0
  %1216 = vmatmul.mubr.bf16.gmra.mxu0 %v80
  %v1217 = vpop.f32.mrf.mxu0
  %v1218 = vadd.f32 %v30, %v1217
  %v1219 = vpop.f32.mrf.mxu0
  %v1220 = vadd.f32 %v30, %v1219
  %v1221 = vpop.f32.mrf.mxu0
  %v1222 = vadd.f32 %v35, %v1221
  %v1223 = vpop.f32.mrf.mxu0
  %v1224 = vadd.f32 %v35, %v1223
  %1225 = vdwg.mxu0
  %1226 = vmatprep.subr.bf16.mxu0 0
  %1227 = vmatpush1.bf16.msra.mxu0 0
  %1228 = vmatprep.subr.bf16.mxu0 0
  %1229 = vmatpush1.bf16.msra.mxu0 0
  %1230 = vmatprep.subr.bf16.mxu0 0
  %1231 = vmatpush1.bf16.msra.mxu0 0
  %1232 = vmatprep.subr.bf16.mxu0 0
  %1233 = vmatpush1.bf16.msra.mxu0 0
  %1234 = vmatprep.subr.bf16.mxu0 0
  %1235 = vmatpush1.bf16.msra.mxu0 0
  %1236 = vmatprep.subr.bf16.mxu0 0
  %1237 = vmatpush1.bf16.msra.mxu0 0
  %1238 = vmatprep.subr.bf16.mxu0 %v1181
  %1239 = vmatpush1.bf16.msra.mxu0 %v1178
  %1240 = vmatprep.subr.bf16.mxu0 %v1162
  %1241 = vmatpush1.bf16.msra.mxu0 %v1161
  %1242 = vmatprep.subr.bf16.mxu0 0
  %1243 = vmatpush2.bf16.msra.mxu0 0
  %1244 = vmatprep.subr.bf16.mxu0 0
  %1245 = vmatpush2.bf16.msra.mxu0 0
  %1246 = vmatprep.subr.bf16.mxu0 0
  %1247 = vmatpush2.bf16.msra.mxu0 0
  %1248 = vmatprep.subr.bf16.mxu0 0
  %1249 = vmatpush2.bf16.msra.mxu0 0
  %1250 = vmatprep.subr.bf16.mxu0 0
  %1251 = vmatpush2.bf16.msra.mxu0 0
  %1252 = vmatprep.subr.bf16.mxu0 0
  %1253 = vmatpush2.bf16.msra.mxu0 0
  %1254 = vmatprep.subr.bf16.mxu0 0
  %1255 = vmatpush2.bf16.msra.mxu0 0
  %1256 = vmatprep.subr.bf16.mxu0 0
  %1257 = vmatpush2.bf16.msra.mxu0 0
  %1258 = vmatprep.mubr.bf16.mxu0 0
  %1259 = vmatmul.mubr.bf16.gmra.mxu0 %v80
  %v1260 = vpop.f32.mrf.mxu0
  %v1261 = vadd.f32 %v30, %v1260
  %v1262 = vpop.f32.mrf.mxu0
  %v1263 = vadd.f32 %v30, %v1262
  %v1264 = vpop.f32.mrf.mxu0
  %v1265 = vadd.f32 %v35, %v1264
  %v1266 = vpop.f32.mrf.mxu0
  %v1267 = vadd.f32 %v35, %v1266
  %1268 = vdwg.mxu0
  %v1269 = vmul.f32 %v1218, 0.5
  %v1270 = vmul.f32 %v1220, 0.5
  %v1271 = vmul.f32 %v1261, 0.5
  %v1272 = vmul.f32 %v1263, 0.5
  %v1273 = vmul.f32 %v1222, 0.5
  %v1274 = vmul.f32 %v1224, 0.5
  %v1275 = vmul.f32 %v1265, 0.5
  %v1276 = vmul.f32 %v1267, 0.5
  %v1277 = vmul.f32 %v1218, 0.70710677
  %v1278 = vmul.f32 %v1220, 0.70710677
  %v1279 = vmul.f32 %v1261, 0.70710677
  %v1280 = vmul.f32 %v1263, 0.70710677
  %v1281 = vmul.f32 %v1222, 0.70710677
  %v1282 = vmul.f32 %v1224, 0.70710677
  %v1283 = vmul.f32 %v1265, 0.70710677
  %v1284 = vmul.f32 %v1267, 0.70710677
  %vm1285 = vcmp.ge.f32.partialorder %v1277, 0.0
  %vm1286 = vcmp.ge.f32.partialorder %v1278, 0.0
  %vm1287 = vcmp.ge.f32.partialorder %v1279, 0.0
  %vm1288 = vcmp.ge.f32.partialorder %v1280, 0.0
  %vm1289 = vcmp.ge.f32.partialorder %v1281, 0.0
  %vm1290 = vcmp.ge.f32.partialorder %v1282, 0.0
  %vm1291 = vcmp.ge.f32.partialorder %v1283, 0.0
  %vm1292 = vcmp.ge.f32.partialorder %v1284, 0.0
  %v1293 = vsel %vm1285, 1.0, -1.0
  %v1294 = vsel %vm1286, 1.0, -1.0
  %v1295 = vsel %vm1287, 1.0, -1.0
  %v1296 = vsel %vm1288, 1.0, -1.0
  %v1297 = vsel %vm1289, 1.0, -1.0
  %v1298 = vsel %vm1290, 1.0, -1.0
  %v1299 = vsel %vm1291, 1.0, -1.0
  %v1300 = vsel %vm1292, 1.0, -1.0
  %v1301 = vand.u32 2147483647, %v1277
  %v1302 = vand.u32 2147483647, %v1278
  %v1303 = vand.u32 2147483647, %v1279
  %v1304 = vand.u32 2147483647, %v1280
  %v1305 = vand.u32 2147483647, %v1281
  %v1306 = vand.u32 2147483647, %v1282
  %v1307 = vand.u32 2147483647, %v1283
  %v1308 = vand.u32 2147483647, %v1284
  %v1309 = vmul.f32 %v1301, 0.3275911
  %v1310 = vmul.f32 %v1302, 0.3275911
  %v1311 = vmul.f32 %v1303, 0.3275911
  %v1312 = vmul.f32 %v1304, 0.3275911
  %v1313 = vmul.f32 %v1305, 0.3275911
  %v1314 = vmul.f32 %v1306, 0.3275911
  %v1315 = vmul.f32 %v1307, 0.3275911
  %v1316 = vmul.f32 %v1308, 0.3275911
  %v1317 = vadd.f32 %v1309, 1.0
  %v1318 = vadd.f32 %v1310, 1.0
  %v1319 = vadd.f32 %v1311, 1.0
  %v1320 = vadd.f32 %v1312, 1.0
  %v1321 = vadd.f32 %v1313, 1.0
  %v1322 = vadd.f32 %v1314, 1.0
  %v1323 = vadd.f32 %v1315, 1.0
  %v1324 = vadd.f32 %v1316, 1.0
  %v1325 = vrcp.pop %v1317
  %v1326 = vmul.f32 1.0, %v1325
  %v1327 = vrcp.pop %v1318
  %v1328 = vmul.f32 1.0, %v1327
  %v1329 = vrcp.pop %v1319
  %v1330 = vmul.f32 1.0, %v1329
  %v1331 = vrcp.pop %v1320
  %v1332 = vmul.f32 1.0, %v1331
  %v1333 = vrcp.pop %v1321
  %v1334 = vmul.f32 1.0, %v1333
  %v1335 = vrcp.pop %v1322
  %v1336 = vmul.f32 1.0, %v1335
  %v1337 = vrcp.pop %v1323
  %v1338 = vmul.f32 1.0, %v1337
  %v1339 = vrcp.pop %v1324
  %v1340 = vmul.f32 1.0, %v1339
  %v1341 = vmul.f32 %v1326, 1.0614054
  %v1342 = vmul.f32 %v1328, 1.0614054
  %v1343 = vmul.f32 %v1330, 1.0614054
  %v1344 = vmul.f32 %v1332, 1.0614054
  %v1345 = vmul.f32 %v1334, 1.0614054
  %v1346 = vmul.f32 %v1336, 1.0614054
  %v1347 = vmul.f32 %v1338, 1.0614054
  %v1348 = vmul.f32 %v1340, 1.0614054
  %v1349 = vadd.f32 %v1341, -1.4531521
  %v1350 = vadd.f32 %v1342, -1.4531521
  %v1351 = vadd.f32 %v1343, -1.4531521
  %v1352 = vadd.f32 %v1344, -1.4531521
  %v1353 = vadd.f32 %v1345, -1.4531521
  %v1354 = vadd.f32 %v1346, -1.4531521
  %v1355 = vadd.f32 %v1347, -1.4531521
  %v1356 = vadd.f32 %v1348, -1.4531521
  %v1357 = vmul.f32 %v1349, %v1326
  %v1358 = vmul.f32 %v1350, %v1328
  %v1359 = vmul.f32 %v1351, %v1330
  %v1360 = vmul.f32 %v1352, %v1332
  %v1361 = vmul.f32 %v1353, %v1334
  %v1362 = vmul.f32 %v1354, %v1336
  %v1363 = vmul.f32 %v1355, %v1338
  %v1364 = vmul.f32 %v1356, %v1340
  %v1365 = vadd.f32 %v1357, 1.4214138
  %v1366 = vadd.f32 %v1358, 1.4214138
  %v1367 = vadd.f32 %v1359, 1.4214138
  %v1368 = vadd.f32 %v1360, 1.4214138
  %v1369 = vadd.f32 %v1361, 1.4214138
  %v1370 = vadd.f32 %v1362, 1.4214138
  %v1371 = vadd.f32 %v1363, 1.4214138
  %v1372 = vadd.f32 %v1364, 1.4214138
  %v1373 = vmul.f32 %v1365, %v1326
  %v1374 = vmul.f32 %v1366, %v1328
  %v1375 = vmul.f32 %v1367, %v1330
  %v1376 = vmul.f32 %v1368, %v1332
  %v1377 = vmul.f32 %v1369, %v1334
  %v1378 = vmul.f32 %v1370, %v1336
  %v1379 = vmul.f32 %v1371, %v1338
  %v1380 = vmul.f32 %v1372, %v1340
  %v1381 = vadd.f32 %v1373, -0.28449672
  %v1382 = vadd.f32 %v1374, -0.28449672
  %v1383 = vadd.f32 %v1375, -0.28449672
  %v1384 = vadd.f32 %v1376, -0.28449672
  %v1385 = vadd.f32 %v1377, -0.28449672
  %v1386 = vadd.f32 %v1378, -0.28449672
  %v1387 = vadd.f32 %v1379, -0.28449672
  %v1388 = vadd.f32 %v1380, -0.28449672
  %v1389 = vmul.f32 %v1381, %v1326
  %v1390 = vmul.f32 %v1382, %v1328
  %v1391 = vmul.f32 %v1383, %v1330
  %v1392 = vmul.f32 %v1384, %v1332
  %v1393 = vmul.f32 %v1385, %v1334
  %v1394 = vmul.f32 %v1386, %v1336
  %v1395 = vmul.f32 %v1387, %v1338
  %v1396 = vmul.f32 %v1388, %v1340
  %v1397 = vadd.f32 %v1389, 0.2548296
  %v1398 = vadd.f32 %v1390, 0.2548296
  %v1399 = vadd.f32 %v1391, 0.2548296
  %v1400 = vadd.f32 %v1392, 0.2548296
  %v1401 = vadd.f32 %v1393, 0.2548296
  %v1402 = vadd.f32 %v1394, 0.2548296
  %v1403 = vadd.f32 %v1395, 0.2548296
  %v1404 = vadd.f32 %v1396, 0.2548296
  %v1405 = vmul.f32 %v1397, %v1326
  %v1406 = vmul.f32 %v1398, %v1328
  %v1407 = vmul.f32 %v1399, %v1330
  %v1408 = vmul.f32 %v1400, %v1332
  %v1409 = vmul.f32 %v1401, %v1334
  %v1410 = vmul.f32 %v1402, %v1336
  %v1411 = vmul.f32 %v1403, %v1338
  %v1412 = vmul.f32 %v1404, %v1340
  %v1413 = vsub.f32 0.0, %v1301
  %v1414 = vsub.f32 0.0, %v1302
  %v1415 = vsub.f32 0.0, %v1303
  %v1416 = vsub.f32 0.0, %v1304
  %v1417 = vsub.f32 0.0, %v1305
  %v1418 = vsub.f32 0.0, %v1306
  %v1419 = vsub.f32 0.0, %v1307
  %v1420 = vsub.f32 0.0, %v1308
  %v1421 = vmul.f32 %v1413, %v1301
  %v1422 = vmul.f32 %v1414, %v1302
  %v1423 = vmul.f32 %v1415, %v1303
  %v1424 = vmul.f32 %v1416, %v1304
  %v1425 = vmul.f32 %v1417, %v1305
  %v1426 = vmul.f32 %v1418, %v1306
  %v1427 = vmul.f32 %v1419, %v1307
  %v1428 = vmul.f32 %v1420, %v1308
  %v1429 = vmul.f32 %v1421, 1.442695
  %v1430 = vpow.pop %v1429
  %v1431 = vmul.f32 %v1422, 1.442695
  %v1432 = vpow.pop %v1431
  %v1433 = vmul.f32 %v1423, 1.442695
  %v1434 = vpow.pop %v1433
  %v1435 = vmul.f32 %v1424, 1.442695
  %v1436 = vpow.pop %v1435
  %v1437 = vmul.f32 %v1425, 1.442695
  %v1438 = vpow.pop %v1437
  %v1439 = vmul.f32 %v1426, 1.442695
  %v1440 = vpow.pop %v1439
  %v1441 = vmul.f32 %v1427, 1.442695
  %v1442 = vpow.pop %v1441
  %v1443 = vmul.f32 %v1428, 1.442695
  %v1444 = vpow.pop %v1443
  %v1445 = vmul.f32 %v1405, %v1430
  %v1446 = vmul.f32 %v1406, %v1432
  %v1447 = vmul.f32 %v1407, %v1434
  %v1448 = vmul.f32 %v1408, %v1436
  %v1449 = vmul.f32 %v1409, %v1438
  %v1450 = vmul.f32 %v1410, %v1440
  %v1451 = vmul.f32 %v1411, %v1442
  %v1452 = vmul.f32 %v1412, %v1444
  %v1453 = vsub.f32 1.0, %v1445
  %v1454 = vsub.f32 1.0, %v1446
  %v1455 = vsub.f32 1.0, %v1447
  %v1456 = vsub.f32 1.0, %v1448
  %v1457 = vsub.f32 1.0, %v1449
  %v1458 = vsub.f32 1.0, %v1450
  %v1459 = vsub.f32 1.0, %v1451
  %v1460 = vsub.f32 1.0, %v1452
  %v1461 = vmul.f32 %v1293, %v1453
  %v1462 = vmul.f32 %v1294, %v1454
  %v1463 = vmul.f32 %v1295, %v1455
  %v1464 = vmul.f32 %v1296, %v1456
  %v1465 = vmul.f32 %v1297, %v1457
  %v1466 = vmul.f32 %v1298, %v1458
  %v1467 = vmul.f32 %v1299, %v1459
  %v1468 = vmul.f32 %v1300, %v1460
  %v1469 = vadd.f32 %v1461, 1.0
  %v1470 = vadd.f32 %v1462, 1.0
  %v1471 = vadd.f32 %v1463, 1.0
  %v1472 = vadd.f32 %v1464, 1.0
  %v1473 = vadd.f32 %v1465, 1.0
  %v1474 = vadd.f32 %v1466, 1.0
  %v1475 = vadd.f32 %v1467, 1.0
  %v1476 = vadd.f32 %v1468, 1.0
  %v1477 = vmul.f32 %v1269, %v1469
  %v1478 = vmul.f32 %v1270, %v1470
  %v1479 = vmul.f32 %v1271, %v1471
  %v1480 = vmul.f32 %v1272, %v1472
  %v1481 = vmul.f32 %v1273, %v1473
  %v1482 = vmul.f32 %v1274, %v1474
  %v1483 = vmul.f32 %v1275, %v1475
  %v1484 = vmul.f32 %v1276, %v1476
  %v1485 = vmax.f32 %v1118, %v1477
  %v1486 = vmax.f32 %v1119, %v1478
  %v1487 = vmax.f32 %v1120, %v1479
  %v1488 = vmax.f32 %v1121, %v1480
  %v1489 = vmax.f32 %v1122, %v1481
  %v1490 = vmax.f32 %v1123, %v1482
  %v1491 = vmax.f32 %v1124, %v1483
  %v1492 = vmax.f32 %v1125, %v1484
  %v1493 = vmax.f32 %v759, %v1485
  %v1494 = vmax.f32 %v760, %v1486
  %v1495 = vmax.f32 %v761, %v1487
  %v1496 = vmax.f32 %v762, %v1488
  %v1497 = vmax.f32 %v763, %v1489
  %v1498 = vmax.f32 %v764, %v1490
  %v1499 = vmax.f32 %v765, %v1491
  %v1500 = vmax.f32 %v766, %v1492
  %v1501 = vpack.c.bf16 %v1497, %v1493
  %v1502 = vpack.c.bf16 %v1498, %v1494
  %v1503 = vpack.c.bf16 %v1499, %v1495
  %v1504 = vpack.c.bf16 %v1500, %v1496
  %v1509 = vunpack.c.l.b16 %v1501
  %v1510 = vunpack.c.l.b16 %v1502
  %v1511 = vunpack.c.l.b16 %v1503
  %v1512 = vunpack.c.l.b16 %v1504
  %v1513 = vunpack.c.h.b16 %v1501
  %v1514 = vunpack.c.h.b16 %v1502
  %v1515 = vunpack.c.h.b16 %v1503
  %v1516 = vunpack.c.h.b16 %v1504
  %v1517 = vpack.c.b16 %v1510, %v1509
  %v1518 = vpack.c.b16 %v1512, %v1511
  %v1519 = vpack.c.b16 %v1514, %v1513
  %v1520 = vpack.c.b16 %v1516, %v1515
  %1525 = vst [vmem:[%s3] sm:$0xff] %v1517
  %vm1526 = vcmask 1043456
  %vm1527 = vcmask 539652
  %vm1528 = vmor %vm1527, %vm1526
  %1529 = vst.msk [vmem:[%s3 + $0x8] sm:$0xff] %vm1528, %v1518
  %1530 = vst [vmem:[%s3 + $0x10] sm:$0xff] %v1519
  %1531 = vst.msk [vmem:[%s3 + $0x18] sm:$0xff] %vm1528, %v1520
  // Predicated region
  $region14: #{forward.3} parent=0 // pred_check
    _
  $region15: #{forward.3} parent=0 // pred_check_branch
    %1533 = sbr.rel (0) target = $region17
  $region16: #{forward.3} parent=0 // pred_region
    _
  $region17: #{forward.3} parent=0 // pred_fallthru
    _
  // Predicated region
  $region18: #{forward.3} parent=0 // pred_check
    _
  $region19: #{forward.3} parent=0 // pred_check_branch
    %1535 = sbr.rel (0) target = $region21
  $region20: #{forward.3} parent=0 // pred_region
    _
  $region21: #{forward.3} parent=0 // pred_fallthru
    _

// kernel: forward.4
$region0: #{forward.4}
  #allocation0 [shape = 'u32[]', space=smem, size = 0x4, offset = 0x4, fixed_abs, tag = 'smem constant byte address 0x4 - core index']
  #allocation1 [shape = 'u32[144,128]{1,0:T(1,128)}', space=vmem, size = 0x12000, scoped, tag = 'internal scratch']
  %s0 = inlined_call_operand.vmem [shape: bf16[4,144,98], index: 0, kind: input, shape index: {}]
  %s1 = inlined_call_operand.vmem [shape: bf16[32,144], index: 1, kind: input, shape index: {}]
  %s2 = inlined_call_operand.vmem [shape: f32[32,1], index: 2, kind: input, shape index: {}]
  %s3 = inlined_call_operand.vmem [shape: bf16[32,98], index: 3, kind: output, shape index: {}]
  %s4 = sld [smem:[#allocation0]]
  $region22: #{forward.4} parent=0
    _
  %s6 = ssub.s32 1, %s4
  %s7 = scalar_select 0, %s6, %s4
  // Predicated region
  $region2: #{forward.4} parent=0 // pred_check
    _
  $region3: #{forward.4} parent=0 // pred_check_branch
    %9 = sbr.rel (0) target = $region5
  $region4: #{forward.4} parent=0 // pred_region
    _
  $region5: #{forward.4} parent=0 // pred_fallthru
    _
  // Predicated region
  $region6: #{forward.4} parent=0 // pred_check
    _
  $region7: #{forward.4} parent=0 // pred_check_branch
    %11 = sbr.rel (0) target = $region9
  $region8: #{forward.4} parent=0 // pred_region
    _
  $region9: #{forward.4} parent=0 // pred_fallthru
    _
  // Predicated region
  $region10: #{forward.4} parent=0 // pred_check
    _
  $region11: #{forward.4} parent=0 // pred_check_branch
    %13 = sbr.rel (0) target = $region13
  $region12: #{forward.4} parent=0 // pred_region
    _
  $region13: #{forward.4} parent=0 // pred_fallthru
    _
  %v15 = vld [vmem:[%s1] sm:$0xff]
  %v16 = vld [vmem:[%s1 + $0x8] sm:$0xff]
  %v17 = vld [vmem:[%s1 + $0x10] sm:$0xff]
  %v18 = vld [vmem:[%s1 + $0x18] sm:$0xff]
  %v19 = vld [vmem:[%s2] sm:$0xff]
  %v20 = vld [vmem:[%s2 + $0x8] sm:$0xff]
  %v21 = vld [vmem:[%s2 + $0x10] sm:$0xff]
  %v22 = vld [vmem:[%s2 + $0x18] sm:$0xff]
  %v23 = vld [vmem:[%s0] sm:$0xf]
  %v24 = vld [vmem:[%s0 + $0x4] sm:$0xf]
  %v25 = vld [vmem:[%s0 + $0x8] sm:$0xf]
  %v26 = vld [vmem:[%s0 + $0xc] sm:$0xf]
  %v27 = vld [vmem:[%s0 + $0x10] sm:$0xf]
  %v28 = vld [vmem:[%s0 + $0x14] sm:$0xf]
  %v29 = vld [vmem:[%s0 + $0x18] sm:$0xf]
  %v30 = vld [vmem:[%s0 + $0x1c] sm:$0xf]
  %v31 = vld [vmem:[%s0 + $0x20] sm:$0xf]
  %v32 = vld [vmem:[%s0 + $0x24] sm:$0xf]
  %v33 = vld [vmem:[%s0 + $0x28] sm:$0xf]
  %v34 = vld [vmem:[%s0 + $0x2c] sm:$0xf]
  %v35 = vld [vmem:[%s0 + $0x30] sm:$0xf]
  %v36 = vld [vmem:[%s0 + $0x34] sm:$0xf]
  %v37 = vld [vmem:[%s0 + $0x38] sm:$0xf]
  %v38 = vld [vmem:[%s0 + $0x3c] sm:$0xf]
  %v39 = vld [vmem:[%s0 + $0x40] sm:$0xf]
  %v40 = vld [vmem:[%s0 + $0x44] sm:$0xf]
  %42 = vset.pattern.permute.xlu0 0
  %43 = vperm.xlu0 %42, %v19
  %v44 = vpop.permute.xlu0 %43
  %47 = vset.pattern.permute.xlu0 0
  %48 = vperm.xlu0 %47, %v20
  %v49 = vpop.permute.xlu0 %48
  %52 = vset.pattern.permute.xlu0 0
  %53 = vperm.xlu0 %52, %v21
  %v54 = vpop.permute.xlu0 %53
  %57 = vset.pattern.permute.xlu0 0
  %58 = vperm.xlu0 %57, %v22
  %v59 = vpop.permute.xlu0 %58
  %v65 = vunpack.c.l.b16 %v15
  %v66 = vunpack.c.h.b16 %v15
  %v67 = vunpack.c.l.b16 %v16
  %v68 = vunpack.c.h.b16 %v16
  %v69 = vunpack.c.l.b16 %v17
  %v70 = vunpack.c.h.b16 %v17
  %v71 = vunpack.c.l.b16 %v18
  %v72 = vunpack.c.h.b16 %v18
  %v73 = vpack.c.b16 %v67, %v65
  %v74 = vpack.c.b16 %v68, %v66
  %v75 = vpack.c.b16 %v71, %v69
  %v76 = vpack.c.b16 %v72, %v70
  %v97 = vunpack.c.l.b16 %v23
  %v98 = vunpack.c.l.b16 %v24
  %v99 = vunpack.c.l.b16 %v25
  %v100 = vunpack.c.l.b16 %v26
  %v101 = vunpack.c.l.b16 %v27
  %v102 = vunpack.c.l.b16 %v28
  %v103 = vunpack.c.l.b16 %v29
  %v104 = vunpack.c.l.b16 %v30
  %v105 = vunpack.c.l.b16 %v31
  %v106 = vunpack.c.l.b16 %v32
  %v107 = vunpack.c.l.b16 %v33
  %v108 = vunpack.c.l.b16 %v34
  %v109 = vunpack.c.l.b16 %v35
  %v110 = vunpack.c.l.b16 %v36
  %v111 = vunpack.c.l.b16 %v37
  %v112 = vunpack.c.l.b16 %v38
  %v113 = vunpack.c.l.b16 %v39
  %v114 = vunpack.c.l.b16 %v40
  %v115 = vpack.c.b16 %v98, %v97
  %v116 = vpack.c.b16 %v100, %v99
  %v117 = vpack.c.b16 %v102, %v101
  %v118 = vpack.c.b16 %v104, %v103
  %v119 = vpack.c.b16 %v106, %v105
  %v120 = vpack.c.b16 %v108, %v107
  %v121 = vpack.c.b16 %v110, %v109
  %v122 = vpack.c.b16 %v112, %v111
  %v123 = vpack.c.b16 %v114, %v113
  %vm133 = vcmask 130048
  %v135 = vsel %vm133, %v74, 0
  %v138 = vsel %vm133, %v76, 0
  %140 = vmatprep.subr.bf16.mxu0 0
  %141 = vmatpush1.bf16.msra.mxu0 %v122
  %142 = vmatprep.subr.bf16.mxu0 0
  %143 = vmatpush1.bf16.msra.mxu0 %v121
  %144 = vmatprep.subr.bf16.mxu0 0
  %145 = vmatpush1.bf16.msra.mxu0 %v120
  %146 = vmatprep.subr.bf16.mxu0 0
  %147 = vmatpush1.bf16.msra.mxu0 %v119
  %148 = vmatprep.subr.bf16.mxu0 0
  %149 = vmatpush1.bf16.msra.mxu0 %v118
  %150 = vmatprep.subr.bf16.mxu0 0
  %151 = vmatpush1.bf16.msra.mxu0 %v117
  %152 = vmatprep.subr.bf16.mxu0 0
  %153 = vmatpush1.bf16.msra.mxu0 %v116
  %154 = vmatprep.subr.bf16.mxu0 0
  %155 = vmatpush1.bf16.msra.mxu0 %v115
  %156 = vmatprep.subr.bf16.mxu0 0
  %157 = vmatpush2.bf16.msra.mxu0 0
  %158 = vmatprep.subr.bf16.mxu0 0
  %159 = vmatpush2.bf16.msra.mxu0 0
  %160 = vmatprep.subr.bf16.mxu0 0
  %161 = vmatpush2.bf16.msra.mxu0 0
  %162 = vmatprep.subr.bf16.mxu0 0
  %163 = vmatpush2.bf16.msra.mxu0 0
  %164 = vmatprep.subr.bf16.mxu0 0
  %165 = vmatpush2.bf16.msra.mxu0 0
  %166 = vmatprep.subr.bf16.mxu0 0
  %167 = vmatpush2.bf16.msra.mxu0 0
  %168 = vmatprep.subr.bf16.mxu0 0
  %169 = vmatpush2.bf16.msra.mxu0 0
  %170 = vmatprep.subr.bf16.mxu0 0
  %171 = vmatpush2.bf16.msra.mxu0 %v123
  %172 = vmatprep.mubr.bf16.mxu0 %v135
  %173 = vmatmul.mubr.bf16.gmra.mxu0 %v73
  %v174 = vpop.f32.mrf.mxu0
  %v175 = vadd.f32 %v44, %v174
  %v176 = vpop.f32.mrf.mxu0
  %v177 = vpop.f32.mrf.mxu0
  %v178 = vadd.f32 %v49, %v177
  %v179 = vpop.f32.mrf.mxu0
  %180 = vmatprep.mubr.bf16.mxu0 %v138
  %181 = vmatmul.mubr.bf16.gmra.mxu0 %v75
  %v182 = vpop.f32.mrf.mxu0
  %v183 = vadd.f32 %v54, %v182
  %v184 = vpop.f32.mrf.mxu0
  %v185 = vpop.f32.mrf.mxu0
  %v186 = vadd.f32 %v59, %v185
  %v187 = vpop.f32.mrf.mxu0
  %188 = vdwg.mxu0
  %v189 = vmul.f32 %v175, 0.5
  %v190 = vmul.f32 %v178, 0.5
  %v191 = vmul.f32 %v183, 0.5
  %v192 = vmul.f32 %v186, 0.5
  %v193 = vmul.f32 %v175, 0.70710677
  %v194 = vmul.f32 %v178, 0.70710677
  %v195 = vmul.f32 %v183, 0.70710677
  %v196 = vmul.f32 %v186, 0.70710677
  %vm197 = vcmp.ge.f32.partialorder %v193, 0.0
  %vm198 = vcmp.ge.f32.partialorder %v194, 0.0
  %vm199 = vcmp.ge.f32.partialorder %v195, 0.0
  %vm200 = vcmp.ge.f32.partialorder %v196, 0.0
  %v201 = vsel %vm197, 1.0, -1.0
  %v202 = vsel %vm198, 1.0, -1.0
  %v203 = vsel %vm199, 1.0, -1.0
  %v204 = vsel %vm200, 1.0, -1.0
  %v205 = vand.u32 2147483647, %v193
  %v206 = vand.u32 2147483647, %v194
  %v207 = vand.u32 2147483647, %v195
  %v208 = vand.u32 2147483647, %v196
  %v209 = vmul.f32 %v205, 0.3275911
  %v210 = vmul.f32 %v206, 0.3275911
  %v211 = vmul.f32 %v207, 0.3275911
  %v212 = vmul.f32 %v208, 0.3275911
  %v213 = vadd.f32 %v209, 1.0
  %v214 = vadd.f32 %v210, 1.0
  %v215 = vadd.f32 %v211, 1.0
  %v216 = vadd.f32 %v212, 1.0
  %v217 = vrcp.pop %v213
  %v218 = vmul.f32 1.0, %v217
  %v219 = vrcp.pop %v214
  %v220 = vmul.f32 1.0, %v219
  %v221 = vrcp.pop %v215
  %v222 = vmul.f32 1.0, %v221
  %v223 = vrcp.pop %v216
  %v224 = vmul.f32 1.0, %v223
  %v225 = vmul.f32 %v218, 1.0614054
  %v226 = vmul.f32 %v220, 1.0614054
  %v227 = vmul.f32 %v222, 1.0614054
  %v228 = vmul.f32 %v224, 1.0614054
  %v229 = vadd.f32 %v225, -1.4531521
  %v230 = vadd.f32 %v226, -1.4531521
  %v231 = vadd.f32 %v227, -1.4531521
  %v232 = vadd.f32 %v228, -1.4531521
  %v233 = vmul.f32 %v229, %v218
  %v234 = vmul.f32 %v230, %v220
  %v235 = vmul.f32 %v231, %v222
  %v236 = vmul.f32 %v232, %v224
  %v237 = vadd.f32 %v233, 1.4214138
  %v238 = vadd.f32 %v234, 1.4214138
  %v239 = vadd.f32 %v235, 1.4214138
  %v240 = vadd.f32 %v236, 1.4214138
  %v241 = vmul.f32 %v237, %v218
  %v242 = vmul.f32 %v238, %v220
  %v243 = vmul.f32 %v239, %v222
  %v244 = vmul.f32 %v240, %v224
  %v245 = vadd.f32 %v241, -0.28449672
  %v246 = vadd.f32 %v242, -0.28449672
  %v247 = vadd.f32 %v243, -0.28449672
  %v248 = vadd.f32 %v244, -0.28449672
  %v249 = vmul.f32 %v245, %v218
  %v250 = vmul.f32 %v246, %v220
  %v251 = vmul.f32 %v247, %v222
  %v252 = vmul.f32 %v248, %v224
  %v253 = vadd.f32 %v249, 0.2548296
  %v254 = vadd.f32 %v250, 0.2548296
  %v255 = vadd.f32 %v251, 0.2548296
  %v256 = vadd.f32 %v252, 0.2548296
  %v257 = vmul.f32 %v253, %v218
  %v258 = vmul.f32 %v254, %v220
  %v259 = vmul.f32 %v255, %v222
  %v260 = vmul.f32 %v256, %v224
  %v261 = vsub.f32 0.0, %v205
  %v262 = vsub.f32 0.0, %v206
  %v263 = vsub.f32 0.0, %v207
  %v264 = vsub.f32 0.0, %v208
  %v265 = vmul.f32 %v261, %v205
  %v266 = vmul.f32 %v262, %v206
  %v267 = vmul.f32 %v263, %v207
  %v268 = vmul.f32 %v264, %v208
  %v269 = vmul.f32 %v265, 1.442695
  %v270 = vpow.pop %v269
  %v271 = vmul.f32 %v266, 1.442695
  %v272 = vpow.pop %v271
  %v273 = vmul.f32 %v267, 1.442695
  %v274 = vpow.pop %v273
  %v275 = vmul.f32 %v268, 1.442695
  %v276 = vpow.pop %v275
  %v277 = vmul.f32 %v257, %v270
  %v278 = vmul.f32 %v258, %v272
  %v279 = vmul.f32 %v259, %v274
  %v280 = vmul.f32 %v260, %v276
  %v281 = vsub.f32 1.0, %v277
  %v282 = vsub.f32 1.0, %v278
  %v283 = vsub.f32 1.0, %v279
  %v284 = vsub.f32 1.0, %v280
  %v285 = vmul.f32 %v201, %v281
  %v286 = vmul.f32 %v202, %v282
  %v287 = vmul.f32 %v203, %v283
  %v288 = vmul.f32 %v204, %v284
  %v289 = vadd.f32 %v285, 1.0
  %v290 = vadd.f32 %v286, 1.0
  %v291 = vadd.f32 %v287, 1.0
  %v292 = vadd.f32 %v288, 1.0
  %v293 = vmul.f32 %v189, %v289
  %v294 = vmul.f32 %v190, %v290
  %v295 = vmul.f32 %v191, %v291
  %v296 = vmul.f32 %v192, %v292
  %s297 = scalar_lea.vmem %s0, 72
  %v298 = vld [vmem:[%s297] sm:$0xf]
  %v299 = vld [vmem:[%s297 + $0x4] sm:$0xf]
  %v300 = vld [vmem:[%s297 + $0x8] sm:$0xf]
  %v301 = vld [vmem:[%s297 + $0xc] sm:$0xf]
  %v302 = vld [vmem:[%s297 + $0x10] sm:$0xf]
  %v303 = vld [vmem:[%s297 + $0x14] sm:$0xf]
  %v304 = vld [vmem:[%s297 + $0x18] sm:$0xf]
  %v305 = vld [vmem:[%s297 + $0x1c] sm:$0xf]
  %v306 = vld [vmem:[%s297 + $0x20] sm:$0xf]
  %v307 = vld [vmem:[%s297 + $0x24] sm:$0xf]
  %v308 = vld [vmem:[%s297 + $0x28] sm:$0xf]
  %v309 = vld [vmem:[%s297 + $0x2c] sm:$0xf]
  %v310 = vld [vmem:[%s297 + $0x30] sm:$0xf]
  %v311 = vld [vmem:[%s297 + $0x34] sm:$0xf]
  %v312 = vld [vmem:[%s297 + $0x38] sm:$0xf]
  %v313 = vld [vmem:[%s297 + $0x3c] sm:$0xf]
  %v314 = vld [vmem:[%s297 + $0x40] sm:$0xf]
  %v315 = vld [vmem:[%s297 + $0x44] sm:$0xf]
  %v334 = vunpack.c.l.b16 %v298
  %v335 = vunpack.c.l.b16 %v299
  %v336 = vunpack.c.l.b16 %v300
  %v337 = vunpack.c.l.b16 %v301
  %v338 = vunpack.c.l.b16 %v302
  %v339 = vunpack.c.l.b16 %v303
  %v340 = vunpack.c.l.b16 %v304
  %v341 = vunpack.c.l.b16 %v305
  %v342 = vunpack.c.l.b16 %v306
  %v343 = vunpack.c.l.b16 %v307
  %v344 = vunpack.c.l.b16 %v308
  %v345 = vunpack.c.l.b16 %v309
  %v346 = vunpack.c.l.b16 %v310
  %v347 = vunpack.c.l.b16 %v311
  %v348 = vunpack.c.l.b16 %v312
  %v349 = vunpack.c.l.b16 %v313
  %v350 = vunpack.c.l.b16 %v314
  %v351 = vunpack.c.l.b16 %v315
  %v352 = vpack.c.b16 %v335, %v334
  %v353 = vpack.c.b16 %v337, %v336
  %v354 = vpack.c.b16 %v339, %v338
  %v355 = vpack.c.b16 %v341, %v340
  %v356 = vpack.c.b16 %v343, %v342
  %v357 = vpack.c.b16 %v345, %v344
  %v358 = vpack.c.b16 %v347, %v346
  %v359 = vpack.c.b16 %v349, %v348
  %v360 = vpack.c.b16 %v351, %v350
  %370 = vmatprep.subr.bf16.mxu0 0
  %371 = vmatpush1.bf16.msra.mxu0 %v359
  %372 = vmatprep.subr.bf16.mxu0 0
  %373 = vmatpush1.bf16.msra.mxu0 %v358
  %374 = vmatprep.subr.bf16.mxu0 0
  %375 = vmatpush1.bf16.msra.mxu0 %v357
  %376 = vmatprep.subr.bf16.mxu0 0
  %377 = vmatpush1.bf16.msra.mxu0 %v356
  %378 = vmatprep.subr.bf16.mxu0 0
  %379 = vmatpush1.bf16.msra.mxu0 %v355
  %380 = vmatprep.subr.bf16.mxu0 0
  %381 = vmatpush1.bf16.msra.mxu0 %v354
  %382 = vmatprep.subr.bf16.mxu0 0
  %383 = vmatpush1.bf16.msra.mxu0 %v353
  %384 = vmatprep.subr.bf16.mxu0 0
  %385 = vmatpush1.bf16.msra.mxu0 %v352
  %386 = vmatprep.subr.bf16.mxu0 0
  %387 = vmatpush2.bf16.msra.mxu0 0
  %388 = vmatprep.subr.bf16.mxu0 0
  %389 = vmatpush2.bf16.msra.mxu0 0
  %390 = vmatprep.subr.bf16.mxu0 0
  %391 = vmatpush2.bf16.msra.mxu0 0
  %392 = vmatprep.subr.bf16.mxu0 0
  %393 = vmatpush2.bf16.msra.mxu0 0
  %394 = vmatprep.subr.bf16.mxu0 0
  %395 = vmatpush2.bf16.msra.mxu0 0
  %396 = vmatprep.subr.bf16.mxu0 0
  %397 = vmatpush2.bf16.msra.mxu0 0
  %398 = vmatprep.subr.bf16.mxu0 0
  %399 = vmatpush2.bf16.msra.mxu0 0
  %400 = vmatprep.subr.bf16.mxu0 0
  %401 = vmatpush2.bf16.msra.mxu0 %v360
  %402 = vmatprep.mubr.bf16.mxu0 %v135
  %403 = vmatmul.mubr.bf16.gmra.mxu0 %v73
  %v404 = vpop.f32.mrf.mxu0
  %v405 = vadd.f32 %v44, %v404
  %v406 = vpop.f32.mrf.mxu0
  %v407 = vpop.f32.mrf.mxu0
  %v408 = vadd.f32 %v49, %v407
  %v409 = vpop.f32.mrf.mxu0
  %410 = vmatprep.mubr.bf16.mxu0 %v138
  %411 = vmatmul.mubr.bf16.gmra.mxu0 %v75
  %v412 = vpop.f32.mrf.mxu0
  %v413 = vadd.f32 %v54, %v412
  %v414 = vpop.f32.mrf.mxu0
  %v415 = vpop.f32.mrf.mxu0
  %v416 = vadd.f32 %v59, %v415
  %v417 = vpop.f32.mrf.mxu0
  %418 = vdwg.mxu0
  %v419 = vmul.f32 %v405, 0.5
  %v420 = vmul.f32 %v408, 0.5
  %v421 = vmul.f32 %v413, 0.5
  %v422 = vmul.f32 %v416, 0.5
  %v423 = vmul.f32 %v405, 0.70710677
  %v424 = vmul.f32 %v408, 0.70710677
  %v425 = vmul.f32 %v413, 0.70710677
  %v426 = vmul.f32 %v416, 0.70710677
  %vm427 = vcmp.ge.f32.partialorder %v423, 0.0
  %vm428 = vcmp.ge.f32.partialorder %v424, 0.0
  %vm429 = vcmp.ge.f32.partialorder %v425, 0.0
  %vm430 = vcmp.ge.f32.partialorder %v426, 0.0
  %v431 = vsel %vm427, 1.0, -1.0
  %v432 = vsel %vm428, 1.0, -1.0
  %v433 = vsel %vm429, 1.0, -1.0
  %v434 = vsel %vm430, 1.0, -1.0
  %v435 = vand.u32 2147483647, %v423
  %v436 = vand.u32 2147483647, %v424
  %v437 = vand.u32 2147483647, %v425
  %v438 = vand.u32 2147483647, %v426
  %v439 = vmul.f32 %v435, 0.3275911
  %v440 = vmul.f32 %v436, 0.3275911
  %v441 = vmul.f32 %v437, 0.3275911
  %v442 = vmul.f32 %v438, 0.3275911
  %v443 = vadd.f32 %v439, 1.0
  %v444 = vadd.f32 %v440, 1.0
  %v445 = vadd.f32 %v441, 1.0
  %v446 = vadd.f32 %v442, 1.0
  %v447 = vrcp.pop %v443
  %v448 = vmul.f32 1.0, %v447
  %v449 = vrcp.pop %v444
  %v450 = vmul.f32 1.0, %v449
  %v451 = vrcp.pop %v445
  %v452 = vmul.f32 1.0, %v451
  %v453 = vrcp.pop %v446
  %v454 = vmul.f32 1.0, %v453
  %v455 = vmul.f32 %v448, 1.0614054
  %v456 = vmul.f32 %v450, 1.0614054
  %v457 = vmul.f32 %v452, 1.0614054
  %v458 = vmul.f32 %v454, 1.0614054
  %v459 = vadd.f32 %v455, -1.4531521
  %v460 = vadd.f32 %v456, -1.4531521
  %v461 = vadd.f32 %v457, -1.4531521
  %v462 = vadd.f32 %v458, -1.4531521
  %v463 = vmul.f32 %v459, %v448
  %v464 = vmul.f32 %v460, %v450
  %v465 = vmul.f32 %v461, %v452
  %v466 = vmul.f32 %v462, %v454
  %v467 = vadd.f32 %v463, 1.4214138
  %v468 = vadd.f32 %v464, 1.4214138
  %v469 = vadd.f32 %v465, 1.4214138
  %v470 = vadd.f32 %v466, 1.4214138
  %v471 = vmul.f32 %v467, %v448
  %v472 = vmul.f32 %v468, %v450
  %v473 = vmul.f32 %v469, %v452
  %v474 = vmul.f32 %v470, %v454
  %v475 = vadd.f32 %v471, -0.28449672
  %v476 = vadd.f32 %v472, -0.28449672
  %v477 = vadd.f32 %v473, -0.28449672
  %v478 = vadd.f32 %v474, -0.28449672
  %v479 = vmul.f32 %v475, %v448
  %v480 = vmul.f32 %v476, %v450
  %v481 = vmul.f32 %v477, %v452
  %v482 = vmul.f32 %v478, %v454
  %v483 = vadd.f32 %v479, 0.2548296
  %v484 = vadd.f32 %v480, 0.2548296
  %v485 = vadd.f32 %v481, 0.2548296
  %v486 = vadd.f32 %v482, 0.2548296
  %v487 = vmul.f32 %v483, %v448
  %v488 = vmul.f32 %v484, %v450
  %v489 = vmul.f32 %v485, %v452
  %v490 = vmul.f32 %v486, %v454
  %v491 = vsub.f32 0.0, %v435
  %v492 = vsub.f32 0.0, %v436
  %v493 = vsub.f32 0.0, %v437
  %v494 = vsub.f32 0.0, %v438
  %v495 = vmul.f32 %v491, %v435
  %v496 = vmul.f32 %v492, %v436
  %v497 = vmul.f32 %v493, %v437
  %v498 = vmul.f32 %v494, %v438
  %v499 = vmul.f32 %v495, 1.442695
  %v500 = vpow.pop %v499
  %v501 = vmul.f32 %v496, 1.442695
  %v502 = vpow.pop %v501
  %v503 = vmul.f32 %v497, 1.442695
  %v504 = vpow.pop %v503
  %v505 = vmul.f32 %v498, 1.442695
  %v506 = vpow.pop %v505
  %v507 = vmul.f32 %v487, %v500
  %v508 = vmul.f32 %v488, %v502
  %v509 = vmul.f32 %v489, %v504
  %v510 = vmul.f32 %v490, %v506
  %v511 = vsub.f32 1.0, %v507
  %v512 = vsub.f32 1.0, %v508
  %v513 = vsub.f32 1.0, %v509
  %v514 = vsub.f32 1.0, %v510
  %v515 = vmul.f32 %v431, %v511
  %v516 = vmul.f32 %v432, %v512
  %v517 = vmul.f32 %v433, %v513
  %v518 = vmul.f32 %v434, %v514
  %v519 = vadd.f32 %v515, 1.0
  %v520 = vadd.f32 %v516, 1.0
  %v521 = vadd.f32 %v517, 1.0
  %v522 = vadd.f32 %v518, 1.0
  %v523 = vmul.f32 %v419, %v519
  %v524 = vmul.f32 %v420, %v520
  %v525 = vmul.f32 %v421, %v521
  %v526 = vmul.f32 %v422, %v522
  %v527 = vmax.f32 %v293, %v523
  %v528 = vmax.f32 %v294, %v524
  %v529 = vmax.f32 %v295, %v525
  %v530 = vmax.f32 %v296, %v526
  %s531 = scalar_lea.vmem %s0, 144
  %v532 = vld [vmem:[%s531] sm:$0xf]
  %v533 = vld [vmem:[%s531 + $0x4] sm:$0xf]
  %v534 = vld [vmem:[%s531 + $0x8] sm:$0xf]
  %v535 = vld [vmem:[%s531 + $0xc] sm:$0xf]
  %v536 = vld [vmem:[%s531 + $0x10] sm:$0xf]
  %v537 = vld [vmem:[%s531 + $0x14] sm:$0xf]
  %v538 = vld [vmem:[%s531 + $0x18] sm:$0xf]
  %v539 = vld [vmem:[%s531 + $0x1c] sm:$0xf]
  %v540 = vld [vmem:[%s531 + $0x20] sm:$0xf]
  %v541 = vld [vmem:[%s531 + $0x24] sm:$0xf]
  %v542 = vld [vmem:[%s531 + $0x28] sm:$0xf]
  %v543 = vld [vmem:[%s531 + $0x2c] sm:$0xf]
  %v544 = vld [vmem:[%s531 + $0x30] sm:$0xf]
  %v545 = vld [vmem:[%s531 + $0x34] sm:$0xf]
  %v546 = vld [vmem:[%s531 + $0x38] sm:$0xf]
  %v547 = vld [vmem:[%s531 + $0x3c] sm:$0xf]
  %v548 = vld [vmem:[%s531 + $0x40] sm:$0xf]
  %v549 = vld [vmem:[%s531 + $0x44] sm:$0xf]
  %v568 = vunpack.c.l.b16 %v532
  %v569 = vunpack.c.l.b16 %v533
  %v570 = vunpack.c.l.b16 %v534
  %v571 = vunpack.c.l.b16 %v535
  %v572 = vunpack.c.l.b16 %v536
  %v573 = vunpack.c.l.b16 %v537
  %v574 = vunpack.c.l.b16 %v538
  %v575 = vunpack.c.l.b16 %v539
  %v576 = vunpack.c.l.b16 %v540
  %v577 = vunpack.c.l.b16 %v541
  %v578 = vunpack.c.l.b16 %v542
  %v579 = vunpack.c.l.b16 %v543
  %v580 = vunpack.c.l.b16 %v544
  %v581 = vunpack.c.l.b16 %v545
  %v582 = vunpack.c.l.b16 %v546
  %v583 = vunpack.c.l.b16 %v547
  %v584 = vunpack.c.l.b16 %v548
  %v585 = vunpack.c.l.b16 %v549
  %v586 = vpack.c.b16 %v569, %v568
  %v587 = vpack.c.b16 %v571, %v570
  %v588 = vpack.c.b16 %v573, %v572
  %v589 = vpack.c.b16 %v575, %v574
  %v590 = vpack.c.b16 %v577, %v576
  %v591 = vpack.c.b16 %v579, %v578
  %v592 = vpack.c.b16 %v581, %v580
  %v593 = vpack.c.b16 %v583, %v582
  %v594 = vpack.c.b16 %v585, %v584
  %604 = vmatprep.subr.bf16.mxu0 0
  %605 = vmatpush1.bf16.msra.mxu0 %v593
  %606 = vmatprep.subr.bf16.mxu0 0
  %607 = vmatpush1.bf16.msra.mxu0 %v592
  %608 = vmatprep.subr.bf16.mxu0 0
  %609 = vmatpush1.bf16.msra.mxu0 %v591
  %610 = vmatprep.subr.bf16.mxu0 0
  %611 = vmatpush1.bf16.msra.mxu0 %v590
  %612 = vmatprep.subr.bf16.mxu0 0
  %613 = vmatpush1.bf16.msra.mxu0 %v589
  %614 = vmatprep.subr.bf16.mxu0 0
  %615 = vmatpush1.bf16.msra.mxu0 %v588
  %616 = vmatprep.subr.bf16.mxu0 0
  %617 = vmatpush1.bf16.msra.mxu0 %v587
  %618 = vmatprep.subr.bf16.mxu0 0
  %619 = vmatpush1.bf16.msra.mxu0 %v586
  %620 = vmatprep.subr.bf16.mxu0 0
  %621 = vmatpush2.bf16.msra.mxu0 0
  %622 = vmatprep.subr.bf16.mxu0 0
  %623 = vmatpush2.bf16.msra.mxu0 0
  %624 = vmatprep.subr.bf16.mxu0 0
  %625 = vmatpush2.bf16.msra.mxu0 0
  %626 = vmatprep.subr.bf16.mxu0 0
  %627 = vmatpush2.bf16.msra.mxu0 0
  %628 = vmatprep.subr.bf16.mxu0 0
  %629 = vmatpush2.bf16.msra.mxu0 0
  %630 = vmatprep.subr.bf16.mxu0 0
  %631 = vmatpush2.bf16.msra.mxu0 0
  %632 = vmatprep.subr.bf16.mxu0 0
  %633 = vmatpush2.bf16.msra.mxu0 0
  %634 = vmatprep.subr.bf16.mxu0 0
  %635 = vmatpush2.bf16.msra.mxu0 %v594
  %636 = vmatprep.mubr.bf16.mxu0 %v135
  %637 = vmatmul.mubr.bf16.gmra.mxu0 %v73
  %v638 = vpop.f32.mrf.mxu0
  %v639 = vadd.f32 %v44, %v638
  %v640 = vpop.f32.mrf.mxu0
  %v641 = vpop.f32.mrf.mxu0
  %v642 = vadd.f32 %v49, %v641
  %v643 = vpop.f32.mrf.mxu0
  %644 = vmatprep.mubr.bf16.mxu0 %v138
  %645 = vmatmul.mubr.bf16.gmra.mxu0 %v75
  %v646 = vpop.f32.mrf.mxu0
  %v647 = vadd.f32 %v54, %v646
  %v648 = vpop.f32.mrf.mxu0
  %v649 = vpop.f32.mrf.mxu0
  %v650 = vadd.f32 %v59, %v649
  %v651 = vpop.f32.mrf.mxu0
  %652 = vdwg.mxu0
  %v653 = vmul.f32 %v639, 0.5
  %v654 = vmul.f32 %v642, 0.5
  %v655 = vmul.f32 %v647, 0.5
  %v656 = vmul.f32 %v650, 0.5
  %v657 = vmul.f32 %v639, 0.70710677
  %v658 = vmul.f32 %v642, 0.70710677
  %v659 = vmul.f32 %v647, 0.70710677
  %v660 = vmul.f32 %v650, 0.70710677
  %vm661 = vcmp.ge.f32.partialorder %v657, 0.0
  %vm662 = vcmp.ge.f32.partialorder %v658, 0.0
  %vm663 = vcmp.ge.f32.partialorder %v659, 0.0
  %vm664 = vcmp.ge.f32.partialorder %v660, 0.0
  %v665 = vsel %vm661, 1.0, -1.0
  %v666 = vsel %vm662, 1.0, -1.0
  %v667 = vsel %vm663, 1.0, -1.0
  %v668 = vsel %vm664, 1.0, -1.0
  %v669 = vand.u32 2147483647, %v657
  %v670 = vand.u32 2147483647, %v658
  %v671 = vand.u32 2147483647, %v659
  %v672 = vand.u32 2147483647, %v660
  %v673 = vmul.f32 %v669, 0.3275911
  %v674 = vmul.f32 %v670, 0.3275911
  %v675 = vmul.f32 %v671, 0.3275911
  %v676 = vmul.f32 %v672, 0.3275911
  %v677 = vadd.f32 %v673, 1.0
  %v678 = vadd.f32 %v674, 1.0
  %v679 = vadd.f32 %v675, 1.0
  %v680 = vadd.f32 %v676, 1.0
  %v681 = vrcp.pop %v677
  %v682 = vmul.f32 1.0, %v681
  %v683 = vrcp.pop %v678
  %v684 = vmul.f32 1.0, %v683
  %v685 = vrcp.pop %v679
  %v686 = vmul.f32 1.0, %v685
  %v687 = vrcp.pop %v680
  %v688 = vmul.f32 1.0, %v687
  %v689 = vmul.f32 %v682, 1.0614054
  %v690 = vmul.f32 %v684, 1.0614054
  %v691 = vmul.f32 %v686, 1.0614054
  %v692 = vmul.f32 %v688, 1.0614054
  %v693 = vadd.f32 %v689, -1.4531521
  %v694 = vadd.f32 %v690, -1.4531521
  %v695 = vadd.f32 %v691, -1.4531521
  %v696 = vadd.f32 %v692, -1.4531521
  %v697 = vmul.f32 %v693, %v682
  %v698 = vmul.f32 %v694, %v684
  %v699 = vmul.f32 %v695, %v686
  %v700 = vmul.f32 %v696, %v688
  %v701 = vadd.f32 %v697, 1.4214138
  %v702 = vadd.f32 %v698, 1.4214138
  %v703 = vadd.f32 %v699, 1.4214138
  %v704 = vadd.f32 %v700, 1.4214138
  %v705 = vmul.f32 %v701, %v682
  %v706 = vmul.f32 %v702, %v684
  %v707 = vmul.f32 %v703, %v686
  %v708 = vmul.f32 %v704, %v688
  %v709 = vadd.f32 %v705, -0.28449672
  %v710 = vadd.f32 %v706, -0.28449672
  %v711 = vadd.f32 %v707, -0.28449672
  %v712 = vadd.f32 %v708, -0.28449672
  %v713 = vmul.f32 %v709, %v682
  %v714 = vmul.f32 %v710, %v684
  %v715 = vmul.f32 %v711, %v686
  %v716 = vmul.f32 %v712, %v688
  %v717 = vadd.f32 %v713, 0.2548296
  %v718 = vadd.f32 %v714, 0.2548296
  %v719 = vadd.f32 %v715, 0.2548296
  %v720 = vadd.f32 %v716, 0.2548296
  %v721 = vmul.f32 %v717, %v682
  %v722 = vmul.f32 %v718, %v684
  %v723 = vmul.f32 %v719, %v686
  %v724 = vmul.f32 %v720, %v688
  %v725 = vsub.f32 0.0, %v669
  %v726 = vsub.f32 0.0, %v670
  %v727 = vsub.f32 0.0, %v671
  %v728 = vsub.f32 0.0, %v672
  %v729 = vmul.f32 %v725, %v669
  %v730 = vmul.f32 %v726, %v670
  %v731 = vmul.f32 %v727, %v671
  %v732 = vmul.f32 %v728, %v672
  %v733 = vmul.f32 %v729, 1.442695
  %v734 = vpow.pop %v733
  %v735 = vmul.f32 %v730, 1.442695
  %v736 = vpow.pop %v735
  %v737 = vmul.f32 %v731, 1.442695
  %v738 = vpow.pop %v737
  %v739 = vmul.f32 %v732, 1.442695
  %v740 = vpow.pop %v739
  %v741 = vmul.f32 %v721, %v734
  %v742 = vmul.f32 %v722, %v736
  %v743 = vmul.f32 %v723, %v738
  %v744 = vmul.f32 %v724, %v740
  %v745 = vsub.f32 1.0, %v741
  %v746 = vsub.f32 1.0, %v742
  %v747 = vsub.f32 1.0, %v743
  %v748 = vsub.f32 1.0, %v744
  %v749 = vmul.f32 %v665, %v745
  %v750 = vmul.f32 %v666, %v746
  %v751 = vmul.f32 %v667, %v747
  %v752 = vmul.f32 %v668, %v748
  %v753 = vadd.f32 %v749, 1.0
  %v754 = vadd.f32 %v750, 1.0
  %v755 = vadd.f32 %v751, 1.0
  %v756 = vadd.f32 %v752, 1.0
  %v757 = vmul.f32 %v653, %v753
  %v758 = vmul.f32 %v654, %v754
  %v759 = vmul.f32 %v655, %v755
  %v760 = vmul.f32 %v656, %v756
  %s761 = scalar_lea.vmem %s0, 216
  %v762 = vld [vmem:[%s761] sm:$0xf]
  %v763 = vld [vmem:[%s761 + $0x4] sm:$0xf]
  %v764 = vld [vmem:[%s761 + $0x8] sm:$0xf]
  %v765 = vld [vmem:[%s761 + $0xc] sm:$0xf]
  %v766 = vld [vmem:[%s761 + $0x10] sm:$0xf]
  %v767 = vld [vmem:[%s761 + $0x14] sm:$0xf]
  %v768 = vld [vmem:[%s761 + $0x18] sm:$0xf]
  %v769 = vld [vmem:[%s761 + $0x1c] sm:$0xf]
  %v770 = vld [vmem:[%s761 + $0x20] sm:$0xf]
  %v771 = vld [vmem:[%s761 + $0x24] sm:$0xf]
  %v772 = vld [vmem:[%s761 + $0x28] sm:$0xf]
  %v773 = vld [vmem:[%s761 + $0x2c] sm:$0xf]
  %v774 = vld [vmem:[%s761 + $0x30] sm:$0xf]
  %v775 = vld [vmem:[%s761 + $0x34] sm:$0xf]
  %v776 = vld [vmem:[%s761 + $0x38] sm:$0xf]
  %v777 = vld [vmem:[%s761 + $0x3c] sm:$0xf]
  %v778 = vld [vmem:[%s761 + $0x40] sm:$0xf]
  %v779 = vld [vmem:[%s761 + $0x44] sm:$0xf]
  %v798 = vunpack.c.l.b16 %v762
  %v799 = vunpack.c.l.b16 %v763
  %v800 = vunpack.c.l.b16 %v764
  %v801 = vunpack.c.l.b16 %v765
  %v802 = vunpack.c.l.b16 %v766
  %v803 = vunpack.c.l.b16 %v767
  %v804 = vunpack.c.l.b16 %v768
  %v805 = vunpack.c.l.b16 %v769
  %v806 = vunpack.c.l.b16 %v770
  %v807 = vunpack.c.l.b16 %v771
  %v808 = vunpack.c.l.b16 %v772
  %v809 = vunpack.c.l.b16 %v773
  %v810 = vunpack.c.l.b16 %v774
  %v811 = vunpack.c.l.b16 %v775
  %v812 = vunpack.c.l.b16 %v776
  %v813 = vunpack.c.l.b16 %v777
  %v814 = vunpack.c.l.b16 %v778
  %v815 = vunpack.c.l.b16 %v779
  %v816 = vpack.c.b16 %v799, %v798
  %v817 = vpack.c.b16 %v801, %v800
  %v818 = vpack.c.b16 %v803, %v802
  %v819 = vpack.c.b16 %v805, %v804
  %v820 = vpack.c.b16 %v807, %v806
  %v821 = vpack.c.b16 %v809, %v808
  %v822 = vpack.c.b16 %v811, %v810
  %v823 = vpack.c.b16 %v813, %v812
  %v824 = vpack.c.b16 %v815, %v814
  %834 = vmatprep.subr.bf16.mxu0 0
  %835 = vmatpush1.bf16.msra.mxu0 %v823
  %836 = vmatprep.subr.bf16.mxu0 0
  %837 = vmatpush1.bf16.msra.mxu0 %v822
  %838 = vmatprep.subr.bf16.mxu0 0
  %839 = vmatpush1.bf16.msra.mxu0 %v821
  %840 = vmatprep.subr.bf16.mxu0 0
  %841 = vmatpush1.bf16.msra.mxu0 %v820
  %842 = vmatprep.subr.bf16.mxu0 0
  %843 = vmatpush1.bf16.msra.mxu0 %v819
  %844 = vmatprep.subr.bf16.mxu0 0
  %845 = vmatpush1.bf16.msra.mxu0 %v818
  %846 = vmatprep.subr.bf16.mxu0 0
  %847 = vmatpush1.bf16.msra.mxu0 %v817
  %848 = vmatprep.subr.bf16.mxu0 0
  %849 = vmatpush1.bf16.msra.mxu0 %v816
  %850 = vmatprep.subr.bf16.mxu0 0
  %851 = vmatpush2.bf16.msra.mxu0 0
  %852 = vmatprep.subr.bf16.mxu0 0
  %853 = vmatpush2.bf16.msra.mxu0 0
  %854 = vmatprep.subr.bf16.mxu0 0
  %855 = vmatpush2.bf16.msra.mxu0 0
  %856 = vmatprep.subr.bf16.mxu0 0
  %857 = vmatpush2.bf16.msra.mxu0 0
  %858 = vmatprep.subr.bf16.mxu0 0
  %859 = vmatpush2.bf16.msra.mxu0 0
  %860 = vmatprep.subr.bf16.mxu0 0
  %861 = vmatpush2.bf16.msra.mxu0 0
  %862 = vmatprep.subr.bf16.mxu0 0
  %863 = vmatpush2.bf16.msra.mxu0 0
  %864 = vmatprep.subr.bf16.mxu0 0
  %865 = vmatpush2.bf16.msra.mxu0 %v824
  %866 = vmatprep.mubr.bf16.mxu0 %v135
  %867 = vmatmul.mubr.bf16.gmra.mxu0 %v73
  %v868 = vpop.f32.mrf.mxu0
  %v869 = vadd.f32 %v44, %v868
  %v870 = vpop.f32.mrf.mxu0
  %v871 = vpop.f32.mrf.mxu0
  %v872 = vadd.f32 %v49, %v871
  %v873 = vpop.f32.mrf.mxu0
  %874 = vmatprep.mubr.bf16.mxu0 %v138
  %875 = vmatmul.mubr.bf16.gmra.mxu0 %v75
  %v876 = vpop.f32.mrf.mxu0
  %v877 = vadd.f32 %v54, %v876
  %v878 = vpop.f32.mrf.mxu0
  %v879 = vpop.f32.mrf.mxu0
  %v880 = vadd.f32 %v59, %v879
  %v881 = vpop.f32.mrf.mxu0
  %882 = vdwg.mxu0
  %v883 = vmul.f32 %v869, 0.5
  %v884 = vmul.f32 %v872, 0.5
  %v885 = vmul.f32 %v877, 0.5
  %v886 = vmul.f32 %v880, 0.5
  %v887 = vmul.f32 %v869, 0.70710677
  %v888 = vmul.f32 %v872, 0.70710677
  %v889 = vmul.f32 %v877, 0.70710677
  %v890 = vmul.f32 %v880, 0.70710677
  %vm891 = vcmp.ge.f32.partialorder %v887, 0.0
  %vm892 = vcmp.ge.f32.partialorder %v888, 0.0
  %vm893 = vcmp.ge.f32.partialorder %v889, 0.0
  %vm894 = vcmp.ge.f32.partialorder %v890, 0.0
  %v895 = vsel %vm891, 1.0, -1.0
  %v896 = vsel %vm892, 1.0, -1.0
  %v897 = vsel %vm893, 1.0, -1.0
  %v898 = vsel %vm894, 1.0, -1.0
  %v899 = vand.u32 2147483647, %v887
  %v900 = vand.u32 2147483647, %v888
  %v901 = vand.u32 2147483647, %v889
  %v902 = vand.u32 2147483647, %v890
  %v903 = vmul.f32 %v899, 0.3275911
  %v904 = vmul.f32 %v900, 0.3275911
  %v905 = vmul.f32 %v901, 0.3275911
  %v906 = vmul.f32 %v902, 0.3275911
  %v907 = vadd.f32 %v903, 1.0
  %v908 = vadd.f32 %v904, 1.0
  %v909 = vadd.f32 %v905, 1.0
  %v910 = vadd.f32 %v906, 1.0
  %v911 = vrcp.pop %v907
  %v912 = vmul.f32 1.0, %v911
  %v913 = vrcp.pop %v908
  %v914 = vmul.f32 1.0, %v913
  %v915 = vrcp.pop %v909
  %v916 = vmul.f32 1.0, %v915
  %v917 = vrcp.pop %v910
  %v918 = vmul.f32 1.0, %v917
  %v919 = vmul.f32 %v912, 1.0614054
  %v920 = vmul.f32 %v914, 1.0614054
  %v921 = vmul.f32 %v916, 1.0614054
  %v922 = vmul.f32 %v918, 1.0614054
  %v923 = vadd.f32 %v919, -1.4531521
  %v924 = vadd.f32 %v920, -1.4531521
  %v925 = vadd.f32 %v921, -1.4531521
  %v926 = vadd.f32 %v922, -1.4531521
  %v927 = vmul.f32 %v923, %v912
  %v928 = vmul.f32 %v924, %v914
  %v929 = vmul.f32 %v925, %v916
  %v930 = vmul.f32 %v926, %v918
  %v931 = vadd.f32 %v927, 1.4214138
  %v932 = vadd.f32 %v928, 1.4214138
  %v933 = vadd.f32 %v929, 1.4214138
  %v934 = vadd.f32 %v930, 1.4214138
  %v935 = vmul.f32 %v931, %v912
  %v936 = vmul.f32 %v932, %v914
  %v937 = vmul.f32 %v933, %v916
  %v938 = vmul.f32 %v934, %v918
  %v939 = vadd.f32 %v935, -0.28449672
  %v940 = vadd.f32 %v936, -0.28449672
  %v941 = vadd.f32 %v937, -0.28449672
  %v942 = vadd.f32 %v938, -0.28449672
  %v943 = vmul.f32 %v939, %v912
  %v944 = vmul.f32 %v940, %v914
  %v945 = vmul.f32 %v941, %v916
  %v946 = vmul.f32 %v942, %v918
  %v947 = vadd.f32 %v943, 0.2548296
  %v948 = vadd.f32 %v944, 0.2548296
  %v949 = vadd.f32 %v945, 0.2548296
  %v950 = vadd.f32 %v946, 0.2548296
  %v951 = vmul.f32 %v947, %v912
  %v952 = vmul.f32 %v948, %v914
  %v953 = vmul.f32 %v949, %v916
  %v954 = vmul.f32 %v950, %v918
  %v955 = vsub.f32 0.0, %v899
  %v956 = vsub.f32 0.0, %v900
  %v957 = vsub.f32 0.0, %v901
  %v958 = vsub.f32 0.0, %v902
  %v959 = vmul.f32 %v955, %v899
  %v960 = vmul.f32 %v956, %v900
  %v961 = vmul.f32 %v957, %v901
  %v962 = vmul.f32 %v958, %v902
  %v963 = vmul.f32 %v959, 1.442695
  %v964 = vpow.pop %v963
  %v965 = vmul.f32 %v960, 1.442695
  %v966 = vpow.pop %v965
  %v967 = vmul.f32 %v961, 1.442695
  %v968 = vpow.pop %v967
  %v969 = vmul.f32 %v962, 1.442695
  %v970 = vpow.pop %v969
  %v971 = vmul.f32 %v951, %v964
  %v972 = vmul.f32 %v952, %v966
  %v973 = vmul.f32 %v953, %v968
  %v974 = vmul.f32 %v954, %v970
  %v975 = vsub.f32 1.0, %v971
  %v976 = vsub.f32 1.0, %v972
  %v977 = vsub.f32 1.0, %v973
  %v978 = vsub.f32 1.0, %v974
  %v979 = vmul.f32 %v895, %v975
  %v980 = vmul.f32 %v896, %v976
  %v981 = vmul.f32 %v897, %v977
  %v982 = vmul.f32 %v898, %v978
  %v983 = vadd.f32 %v979, 1.0
  %v984 = vadd.f32 %v980, 1.0
  %v985 = vadd.f32 %v981, 1.0
  %v986 = vadd.f32 %v982, 1.0
  %v987 = vmul.f32 %v883, %v983
  %v988 = vmul.f32 %v884, %v984
  %v989 = vmul.f32 %v885, %v985
  %v990 = vmul.f32 %v886, %v986
  %v991 = vmax.f32 %v757, %v987
  %v992 = vmax.f32 %v758, %v988
  %v993 = vmax.f32 %v759, %v989
  %v994 = vmax.f32 %v760, %v990
  %v995 = vmax.f32 %v527, %v991
  %v996 = vmax.f32 %v528, %v992
  %v997 = vmax.f32 %v529, %v993
  %v998 = vmax.f32 %v530, %v994
  %v999 = vpack.c.bf16 %v996, %v995
  %v1000 = vpack.c.bf16 %v998, %v997
  %v1003 = vunpack.c.l.b16 %v999
  %v1004 = vunpack.c.h.b16 %v999
  %v1005 = vunpack.c.l.b16 %v1000
  %v1006 = vunpack.c.h.b16 %v1000
  %v1007 = vpack.c.b16 %v1003, %v1003
  %v1008 = vpack.c.b16 %v1004, %v1004
  %v1009 = vpack.c.b16 %v1005, %v1005
  %v1010 = vpack.c.b16 %v1006, %v1006
  %vm1015 = vcmask 797696
  %1016 = vst.msk [vmem:[%s3] sm:$0xf] %vm1015, %v1007
  %1017 = vst.msk [vmem:[%s3 + $0x4] sm:$0xf] %vm1015, %v1008
  %1018 = vst.msk [vmem:[%s3 + $0x8] sm:$0xf] %vm1015, %v1009
  %1019 = vst.msk [vmem:[%s3 + $0xc] sm:$0xf] %vm1015, %v1010
  // Predicated region
  $region14: #{forward.4} parent=0 // pred_check
    _
  $region15: #{forward.4} parent=0 // pred_check_branch
    %1021 = sbr.rel (0) target = $region17
  $region16: #{forward.4} parent=0 // pred_region
    _
  $region17: #{forward.4} parent=0 // pred_fallthru
    _
  // Predicated region
  $region18: #{forward.4} parent=0 // pred_check
    _
  $region19: #{forward.4} parent=0 // pred_check_branch
    %1023 = sbr.rel (0) target = $region21
  $region20: #{forward.4} parent=0 // pred_region
    _
  $region21: #{forward.4} parent=0 // pred_fallthru
    _

// kernel: forward.5
$region0: #{forward.5}
  #allocation0 [shape = 'u32[]', space=smem, size = 0x4, offset = 0x4, fixed_abs, tag = 'smem constant byte address 0x4 - core index']
  #allocation1 [shape = 'u32[144,128]{1,0:T(1,128)}', space=vmem, size = 0x12000, scoped, tag = 'internal scratch']
  %s0 = inlined_call_operand.vmem [shape: bf16[1568,2], index: 0, kind: input, shape index: {}]
  %s1 = inlined_call_operand.vmem [shape: bf16[64,1568], index: 1, kind: input, shape index: {}]
  %s2 = inlined_call_operand.vmem [shape: f32[64,1], index: 2, kind: input, shape index: {}]
  %s3 = inlined_call_operand.vmem [shape: bf16[8,64], index: 3, kind: input, shape index: {}]
  %s4 = inlined_call_operand.vmem [shape: f32[8,1], index: 4, kind: input, shape index: {}]
  %s5 = inlined_call_operand.vmem [shape: f32[8,2], index: 5, kind: output, shape index: {}]
  %s6 = sld [smem:[#allocation0]]
  $region30: #{forward.5} parent=0
    _
  %s8 = ssub.s32 1, %s6
  %s9 = scalar_select 0, %s8, %s6
  // Predicated region
  $region2: #{forward.5} parent=0 // pred_check
    _
  $region3: #{forward.5} parent=0 // pred_check_branch
    %11 = sbr.rel (0) target = $region5
  $region4: #{forward.5} parent=0 // pred_region
    _
  $region5: #{forward.5} parent=0 // pred_fallthru
    _
  // Predicated region
  $region6: #{forward.5} parent=0 // pred_check
    _
  $region7: #{forward.5} parent=0 // pred_check_branch
    %13 = sbr.rel (0) target = $region9
  $region8: #{forward.5} parent=0 // pred_region
    _
  $region9: #{forward.5} parent=0 // pred_fallthru
    _
  // Predicated region
  $region10: #{forward.5} parent=0 // pred_check
    _
  $region11: #{forward.5} parent=0 // pred_check_branch
    %15 = sbr.rel (0) target = $region13
  $region12: #{forward.5} parent=0 // pred_region
    _
  $region13: #{forward.5} parent=0 // pred_fallthru
    _
  // Predicated region
  $region14: #{forward.5} parent=0 // pred_check
    _
  $region15: #{forward.5} parent=0 // pred_check_branch
    %17 = sbr.rel (0) target = $region17
  $region16: #{forward.5} parent=0 // pred_region
    _
  $region17: #{forward.5} parent=0 // pred_fallthru
    _
  // Predicated region
  $region18: #{forward.5} parent=0 // pred_check
    _
  $region19: #{forward.5} parent=0 // pred_check_branch
    %19 = sbr.rel (0) target = $region21
  $region20: #{forward.5} parent=0 // pred_region
    _
  $region21: #{forward.5} parent=0 // pred_fallthru
    _
  %v21 = vld [vmem:[%s1] sm:$0xff]
  %v22 = vld [vmem:[%s1 + $0x8] sm:$0xff]
  %v23 = vld [vmem:[%s1 + $0x10] sm:$0xff]
  %v24 = vld [vmem:[%s1 + $0x18] sm:$0xff]
  %v25 = vld [vmem:[%s1 + $0x20] sm:$0xff]
  %v26 = vld [vmem:[%s1 + $0x28] sm:$0xff]
  %v27 = vld [vmem:[%s1 + $0x30] sm:$0xf]
  %v28 = vld [vmem:[%s1 + $0x34] sm:$0xff]
  %v29 = vld [vmem:[%s1 + $0x3c] sm:$0xff]
  %v30 = vld [vmem:[%s1 + $0x44] sm:$0xff]
  %v31 = vld [vmem:[%s1 + $0x4c] sm:$0xff]
  %v32 = vld [vmem:[%s1 + $0x54] sm:$0xff]
  %v33 = vld [vmem:[%s1 + $0x5c] sm:$0xff]
  %v34 = vld [vmem:[%s1 + $0x64] sm:$0xf]
  %v35 = vld [vmem:[%s1 + $0x68] sm:$0xff]
  %v36 = vld [vmem:[%s1 + $0x70] sm:$0xff]
  %v37 = vld [vmem:[%s1 + $0x78] sm:$0xff]
  %v38 = vld [vmem:[%s1 + $0x80] sm:$0xff]
  %v39 = vld [vmem:[%s1 + $0x88] sm:$0xff]
  %v40 = vld [vmem:[%s1 + $0x90] sm:$0xff]
  %v41 = vld [vmem:[%s1 + $0x98] sm:$0xf]
  %v42 = vld [vmem:[%s1 + $0x9c] sm:$0xff]
  %v43 = vld [vmem:[%s1 + $0xa4] sm:$0xff]
  %v44 = vld [vmem:[%s1 + $0xac] sm:$0xff]
  %v45 = vld [vmem:[%s1 + $0xb4] sm:$0xff]
  %v46 = vld [vmem:[%s1 + $0xbc] sm:$0xff]
  %v47 = vld [vmem:[%s1 + $0xc4] sm:$0xff]
  %v48 = vld [vmem:[%s1 + $0xcc] sm:$0xf]
  %v49 = vld [vmem:[%s1 + $0xd0] sm:$0xff]
  %v50 = vld [vmem:[%s1 + $0xd8] sm:$0xff]
  %v51 = vld [vmem:[%s1 + $0xe0] sm:$0xff]
  %v52 = vld [vmem:[%s1 + $0xe8] sm:$0xff]
  %v53 = vld [vmem:[%s1 + $0xf0] sm:$0xff]
  %v54 = vld [vmem:[%s1 + $0xf8] sm:$0xff]
  %v55 = vld [vmem:[%s1 + $0x100] sm:$0xf]
  %v56 = vld [vmem:[%s1 + $0x104] sm:$0xff]
  %v57 = vld [vmem:[%s1 + $0x10c] sm:$0xff]
  %v58 = vld [vmem:[%s1 + $0x114] sm:$0xff]
  %v59 = vld [vmem:[%s1 + $0x11c] sm:$0xff]
  %v60 = vld [vmem:[%s1 + $0x124] sm:$0xff]
  %v61 = vld [vmem:[%s1 + $0x12c] sm:$0xff]
  %v62 = vld [vmem:[%s1 + $0x134] sm:$0xf]
  %v63 = vld [vmem:[%s1 + $0x138] sm:$0xff]
  %v64 = vld [vmem:[%s1 + $0x140] sm:$0xff]
  %v65 = vld [vmem:[%s1 + $0x148] sm:$0xff]
  %v66 = vld [vmem:[%s1 + $0x150] sm:$0xff]
  %v67 = vld [vmem:[%s1 + $0x158] sm:$0xff]
  %v68 = vld [vmem:[%s1 + $0x160] sm:$0xff]
  %v69 = vld [vmem:[%s1 + $0x168] sm:$0xf]
  %v70 = vld [vmem:[%s1 + $0x16c] sm:$0xff]
  %v71 = vld [vmem:[%s1 + $0x174] sm:$0xff]
  %v72 = vld [vmem:[%s1 + $0x17c] sm:$0xff]
  %v73 = vld [vmem:[%s1 + $0x184] sm:$0xff]
  %v74 = vld [vmem:[%s1 + $0x18c] sm:$0xff]
  %v75 = vld [vmem:[%s1 + $0x194] sm:$0xff]
  %v76 = vld [vmem:[%s1 + $0x19c] sm:$0xf]
  %v77 = vld [vmem:[%s0] sm:$0xf]
  %v78 = vld [vmem:[%s0 + $0x4] sm:$0xf]
  %v79 = vld [vmem:[%s0 + $0x8] sm:$0xf]
  %v80 = vld [vmem:[%s0 + $0xc] sm:$0xf]
  %v81 = vld [vmem:[%s0 + $0x10] sm:$0xf]
  %v82 = vld [vmem:[%s0 + $0x14] sm:$0xf]
  %v83 = vld [vmem:[%s0 + $0x18] sm:$0xf]
  %v84 = vld [vmem:[%s0 + $0x1c] sm:$0xf]
  %v85 = vld [vmem:[%s0 + $0x20] sm:$0xf]
  %v86 = vld [vmem:[%s0 + $0x24] sm:$0xf]
  %v87 = vld [vmem:[%s0 + $0x28] sm:$0xf]
  %v88 = vld [vmem:[%s0 + $0x2c] sm:$0xf]
  %v89 = vld [vmem:[%s0 + $0x30] sm:$0xf]
  %v90 = vld [vmem:[%s0 + $0x34] sm:$0xf]
  %v91 = vld [vmem:[%s0 + $0x38] sm:$0xf]
  %v92 = vld [vmem:[%s0 + $0x3c] sm:$0xf]
  %v93 = vld [vmem:[%s0 + $0x40] sm:$0xf]
  %v94 = vld [vmem:[%s0 + $0x44] sm:$0xf]
  %v95 = vld [vmem:[%s0 + $0x48] sm:$0xf]
  %v96 = vld [vmem:[%s0 + $0x4c] sm:$0xf]
  %v97 = vld [vmem:[%s0 + $0x50] sm:$0xf]
  %v98 = vld [vmem:[%s0 + $0x54] sm:$0xf]
  %v99 = vld [vmem:[%s0 + $0x58] sm:$0xf]
  %v100 = vld [vmem:[%s0 + $0x5c] sm:$0xf]
  %v101 = vld [vmem:[%s0 + $0x60] sm:$0xf]
  %v102 = vld [vmem:[%s0 + $0x64] sm:$0xf]
  %v103 = vld [vmem:[%s0 + $0x68] sm:$0xf]
  %v104 = vld [vmem:[%s0 + $0x6c] sm:$0xf]
  %v105 = vld [vmem:[%s0 + $0x70] sm:$0xf]
  %v106 = vld [vmem:[%s0 + $0x74] sm:$0xf]
  %v107 = vld [vmem:[%s0 + $0x78] sm:$0xf]
  %v108 = vld [vmem:[%s0 + $0x7c] sm:$0xf]
  %v109 = vld [vmem:[%s0 + $0x80] sm:$0xf]
  %v110 = vld [vmem:[%s0 + $0x84] sm:$0xf]
  %v111 = vld [vmem:[%s0 + $0x88] sm:$0xf]
  %v112 = vld [vmem:[%s0 + $0x8c] sm:$0xf]
  %v113 = vld [vmem:[%s0 + $0x90] sm:$0xf]
  %v114 = vld [vmem:[%s0 + $0x94] sm:$0xf]
  %v115 = vld [vmem:[%s0 + $0x98] sm:$0xf]
  %v116 = vld [vmem:[%s0 + $0x9c] sm:$0xf]
  %v117 = vld [vmem:[%s0 + $0xa0] sm:$0xf]
  %v118 = vld [vmem:[%s0 + $0xa4] sm:$0xf]
  %v119 = vld [vmem:[%s0 + $0xa8] sm:$0xf]
  %v120 = vld [vmem:[%s0 + $0xac] sm:$0xf]
  %v121 = vld [vmem:[%s0 + $0xb0] sm:$0xf]
  %v122 = vld [vmem:[%s0 + $0xb4] sm:$0xf]
  %v123 = vld [vmem:[%s0 + $0xb8] sm:$0xf]
  %v124 = vld [vmem:[%s0 + $0xbc] sm:$0xf]
  %v125 = vld [vmem:[%s0 + $0xc0] sm:$0xf]
  %v126 = vld [vmem:[%s0 + $0xc4] sm:$0xf]
  %v127 = vld [vmem:[%s0 + $0xc8] sm:$0xf]
  %v128 = vld [vmem:[%s0 + $0xcc] sm:$0xf]
  %v129 = vld [vmem:[%s0 + $0xd0] sm:$0xf]
  %v130 = vld [vmem:[%s0 + $0xd4] sm:$0xf]
  %v131 = vld [vmem:[%s0 + $0xd8] sm:$0xf]
  %v132 = vld [vmem:[%s0 + $0xdc] sm:$0xf]
  %v133 = vld [vmem:[%s0 + $0xe0] sm:$0xf]
  %v134 = vld [vmem:[%s0 + $0xe4] sm:$0xf]
  %v135 = vld [vmem:[%s0 + $0xe8] sm:$0xf]
  %v136 = vld [vmem:[%s0 + $0xec] sm:$0xf]
  %v137 = vld [vmem:[%s0 + $0xf0] sm:$0xf]
  %v138 = vld [vmem:[%s0 + $0xf4] sm:$0xf]
  %v139 = vld [vmem:[%s0 + $0xf8] sm:$0xf]
  %v140 = vld [vmem:[%s0 + $0xfc] sm:$0xf]
  %v141 = vld [vmem:[%s0 + $0x100] sm:$0xf]
  %v142 = vld [vmem:[%s0 + $0x104] sm:$0xf]
  %v143 = vld [vmem:[%s0 + $0x108] sm:$0xf]
  %v144 = vld [vmem:[%s0 + $0x10c] sm:$0xf]
  %v145 = vld [vmem:[%s0 + $0x110] sm:$0xf]
  %v146 = vld [vmem:[%s0 + $0x114] sm:$0xf]
  %v147 = vld [vmem:[%s0 + $0x118] sm:$0xf]
  %v148 = vld [vmem:[%s0 + $0x11c] sm:$0xf]
  %v149 = vld [vmem:[%s0 + $0x120] sm:$0xf]
  %v150 = vld [vmem:[%s0 + $0x124] sm:$0xf]
  %v151 = vld [vmem:[%s0 + $0x128] sm:$0xf]
  %v152 = vld [vmem:[%s0 + $0x12c] sm:$0xf]
  %v153 = vld [vmem:[%s0 + $0x130] sm:$0xf]
  %v154 = vld [vmem:[%s0 + $0x134] sm:$0xf]
  %v155 = vld [vmem:[%s0 + $0x138] sm:$0xf]
  %v156 = vld [vmem:[%s0 + $0x13c] sm:$0xf]
  %v157 = vld [vmem:[%s0 + $0x140] sm:$0xf]
  %v158 = vld [vmem:[%s0 + $0x144] sm:$0xf]
  %v159 = vld [vmem:[%s0 + $0x148] sm:$0xf]
  %v160 = vld [vmem:[%s0 + $0x14c] sm:$0xf]
  %v161 = vld [vmem:[%s0 + $0x150] sm:$0xf]
  %v162 = vld [vmem:[%s0 + $0x154] sm:$0xf]
  %v163 = vld [vmem:[%s0 + $0x158] sm:$0xf]
  %v164 = vld [vmem:[%s0 + $0x15c] sm:$0xf]
  %v165 = vld [vmem:[%s0 + $0x160] sm:$0xf]
  %v166 = vld [vmem:[%s0 + $0x164] sm:$0xf]
  %v167 = vld [vmem:[%s0 + $0x168] sm:$0xf]
  %v168 = vld [vmem:[%s0 + $0x16c] sm:$0xf]
  %v169 = vld [vmem:[%s0 + $0x170] sm:$0xf]
  %v170 = vld [vmem:[%s0 + $0x174] sm:$0xf]
  %v171 = vld [vmem:[%s0 + $0x178] sm:$0xf]
  %v172 = vld [vmem:[%s0 + $0x17c] sm:$0xf]
  %v173 = vld [vmem:[%s0 + $0x180] sm:$0xf]
  %v174 = vld [vmem:[%s0 + $0x184] sm:$0xf]
  %v175 = vld [vmem:[%s0 + $0x188] sm:$0xf]
  %v176 = vld [vmem:[%s0 + $0x18c] sm:$0xf]
  %v177 = vld [vmem:[%s0 + $0x190] sm:$0xf]
  %v178 = vld [vmem:[%s0 + $0x194] sm:$0xf]
  %v179 = vld [vmem:[%s0 + $0x198] sm:$0xf]
  %v180 = vld [vmem:[%s0 + $0x19c] sm:$0xf]
  %v181 = vld [vmem:[%s0 + $0x1a0] sm:$0xf]
  %v182 = vld [vmem:[%s0 + $0x1a4] sm:$0xf]
  %v183 = vld [vmem:[%s0 + $0x1a8] sm:$0xf]
  %v184 = vld [vmem:[%s0 + $0x1ac] sm:$0xf]
  %v185 = vld [vmem:[%s0 + $0x1b0] sm:$0xf]
  %v186 = vld [vmem:[%s0 + $0x1b4] sm:$0xf]
  %v187 = vld [vmem:[%s0 + $0x1b8] sm:$0xf]
  %v188 = vld [vmem:[%s0 + $0x1bc] sm:$0xf]
  %v189 = vld [vmem:[%s0 + $0x1c0] sm:$0xf]
  %v190 = vld [vmem:[%s0 + $0x1c4] sm:$0xf]
  %v191 = vld [vmem:[%s0 + $0x1c8] sm:$0xf]
  %v192 = vld [vmem:[%s0 + $0x1cc] sm:$0xf]
  %v193 = vld [vmem:[%s0 + $0x1d0] sm:$0xf]
  %v194 = vld [vmem:[%s0 + $0x1d4] sm:$0xf]
  %v195 = vld [vmem:[%s0 + $0x1d8] sm:$0xf]
  %v196 = vld [vmem:[%s0 + $0x1dc] sm:$0xf]
  %v197 = vld [vmem:[%s0 + $0x1e0] sm:$0xf]
  %v198 = vld [vmem:[%s0 + $0x1e4] sm:$0xf]
  %v199 = vld [vmem:[%s0 + $0x1e8] sm:$0xf]
  %v200 = vld [vmem:[%s0 + $0x1ec] sm:$0xf]
  %v201 = vld [vmem:[%s0 + $0x1f0] sm:$0xf]
  %v202 = vld [vmem:[%s0 + $0x1f4] sm:$0xf]
  %v203 = vld [vmem:[%s0 + $0x1f8] sm:$0xf]
  %v204 = vld [vmem:[%s0 + $0x1fc] sm:$0xf]
  %v205 = vld [vmem:[%s0 + $0x200] sm:$0xf]
  %v206 = vld [vmem:[%s0 + $0x204] sm:$0xf]
  %v207 = vld [vmem:[%s0 + $0x208] sm:$0xf]
  %v208 = vld [vmem:[%s0 + $0x20c] sm:$0xf]
  %v209 = vld [vmem:[%s0 + $0x210] sm:$0xf]
  %v210 = vld [vmem:[%s0 + $0x214] sm:$0xf]
  %v211 = vld [vmem:[%s0 + $0x218] sm:$0xf]
  %v212 = vld [vmem:[%s0 + $0x21c] sm:$0xf]
  %v213 = vld [vmem:[%s0 + $0x220] sm:$0xf]
  %v214 = vld [vmem:[%s0 + $0x224] sm:$0xf]
  %v215 = vld [vmem:[%s0 + $0x228] sm:$0xf]
  %v216 = vld [vmem:[%s0 + $0x22c] sm:$0xf]
  %v217 = vld [vmem:[%s0 + $0x230] sm:$0xf]
  %v218 = vld [vmem:[%s0 + $0x234] sm:$0xf]
  %v219 = vld [vmem:[%s0 + $0x238] sm:$0xf]
  %v220 = vld [vmem:[%s0 + $0x23c] sm:$0xf]
  %v221 = vld [vmem:[%s0 + $0x240] sm:$0xf]
  %v222 = vld [vmem:[%s0 + $0x244] sm:$0xf]
  %v223 = vld [vmem:[%s0 + $0x248] sm:$0xf]
  %v224 = vld [vmem:[%s0 + $0x24c] sm:$0xf]
  %v225 = vld [vmem:[%s0 + $0x250] sm:$0xf]
  %v226 = vld [vmem:[%s0 + $0x254] sm:$0xf]
  %v227 = vld [vmem:[%s0 + $0x258] sm:$0xf]
  %v228 = vld [vmem:[%s0 + $0x25c] sm:$0xf]
  %v229 = vld [vmem:[%s0 + $0x260] sm:$0xf]
  %v230 = vld [vmem:[%s0 + $0x264] sm:$0xf]
  %v231 = vld [vmem:[%s0 + $0x268] sm:$0xf]
  %v232 = vld [vmem:[%s0 + $0x26c] sm:$0xf]
  %v233 = vld [vmem:[%s0 + $0x270] sm:$0xf]
  %v234 = vld [vmem:[%s0 + $0x274] sm:$0xf]
  %v235 = vld [vmem:[%s0 + $0x278] sm:$0xf]
  %v236 = vld [vmem:[%s0 + $0x27c] sm:$0xf]
  %v237 = vld [vmem:[%s0 + $0x280] sm:$0xf]
  %v238 = vld [vmem:[%s0 + $0x284] sm:$0xf]
  %v239 = vld [vmem:[%s0 + $0x288] sm:$0xf]
  %v240 = vld [vmem:[%s0 + $0x28c] sm:$0xf]
  %v241 = vld [vmem:[%s0 + $0x290] sm:$0xf]
  %v242 = vld [vmem:[%s0 + $0x294] sm:$0xf]
  %v243 = vld [vmem:[%s0 + $0x298] sm:$0xf]
  %v244 = vld [vmem:[%s0 + $0x29c] sm:$0xf]
  %v245 = vld [vmem:[%s0 + $0x2a0] sm:$0xf]
  %v246 = vld [vmem:[%s0 + $0x2a4] sm:$0xf]
  %v247 = vld [vmem:[%s0 + $0x2a8] sm:$0xf]
  %v248 = vld [vmem:[%s0 + $0x2ac] sm:$0xf]
  %v249 = vld [vmem:[%s0 + $0x2b0] sm:$0xf]
  %v250 = vld [vmem:[%s0 + $0x2b4] sm:$0xf]
  %v251 = vld [vmem:[%s0 + $0x2b8] sm:$0xf]
  %v252 = vld [vmem:[%s0 + $0x2bc] sm:$0xf]
  %v253 = vld [vmem:[%s0 + $0x2c0] sm:$0xf]
  %v254 = vld [vmem:[%s0 + $0x2c4] sm:$0xf]
  %v255 = vld [vmem:[%s0 + $0x2c8] sm:$0xf]
  %v256 = vld [vmem:[%s0 + $0x2cc] sm:$0xf]
  %v257 = vld [vmem:[%s0 + $0x2d0] sm:$0xf]
  %v258 = vld [vmem:[%s0 + $0x2d4] sm:$0xf]
  %v259 = vld [vmem:[%s0 + $0x2d8] sm:$0xf]
  %v260 = vld [vmem:[%s0 + $0x2dc] sm:$0xf]
  %v261 = vld [vmem:[%s0 + $0x2e0] sm:$0xf]
  %v262 = vld [vmem:[%s0 + $0x2e4] sm:$0xf]
  %v263 = vld [vmem:[%s0 + $0x2e8] sm:$0xf]
  %v264 = vld [vmem:[%s0 + $0x2ec] sm:$0xf]
  %v265 = vld [vmem:[%s0 + $0x2f0] sm:$0xf]
  %v266 = vld [vmem:[%s0 + $0x2f4] sm:$0xf]
  %v267 = vld [vmem:[%s0 + $0x2f8] sm:$0xf]
  %v268 = vld [vmem:[%s0 + $0x2fc] sm:$0xf]
  %v269 = vld [vmem:[%s0 + $0x300] sm:$0xf]
  %v270 = vld [vmem:[%s0 + $0x304] sm:$0xf]
  %v271 = vld [vmem:[%s0 + $0x308] sm:$0xf]
  %v272 = vld [vmem:[%s0 + $0x30c] sm:$0xf]
  %v273 = vld [vmem:[%s2] sm:$0xff]
  %v274 = vld [vmem:[%s2 + $0x8] sm:$0xff]
  %v275 = vld [vmem:[%s2 + $0x10] sm:$0xff]
  %v276 = vld [vmem:[%s2 + $0x18] sm:$0xff]
  %v277 = vld [vmem:[%s2 + $0x20] sm:$0xff]
  %v278 = vld [vmem:[%s2 + $0x28] sm:$0xff]
  %v279 = vld [vmem:[%s2 + $0x30] sm:$0xff]
  %v280 = vld [vmem:[%s2 + $0x38] sm:$0xff]
  %282 = vset.pattern.permute.xlu0 0
  %283 = vperm.xlu0 %282, %v273
  %v284 = vpop.permute.xlu0 %283
  %287 = vset.pattern.permute.xlu0 0
  %288 = vperm.xlu0 %287, %v274
  %v289 = vpop.permute.xlu0 %288
  %292 = vset.pattern.permute.xlu0 0
  %293 = vperm.xlu0 %292, %v275
  %v294 = vpop.permute.xlu0 %293
  %297 = vset.pattern.permute.xlu0 0
  %298 = vperm.xlu0 %297, %v276
  %v299 = vpop.permute.xlu0 %298
  %302 = vset.pattern.permute.xlu0 0
  %303 = vperm.xlu0 %302, %v277
  %v304 = vpop.permute.xlu0 %303
  %307 = vset.pattern.permute.xlu0 0
  %308 = vperm.xlu0 %307, %v278
  %v309 = vpop.permute.xlu0 %308
  %312 = vset.pattern.permute.xlu0 0
  %313 = vperm.xlu0 %312, %v279
  %v314 = vpop.permute.xlu0 %313
  %317 = vset.pattern.permute.xlu0 0
  %318 = vperm.xlu0 %317, %v280
  %v319 = vpop.permute.xlu0 %318
  %v377 = vunpack.c.l.b16 %v21
  %v378 = vunpack.c.h.b16 %v21
  %v379 = vunpack.c.l.b16 %v22
  %v380 = vunpack.c.h.b16 %v22
  %v381 = vunpack.c.l.b16 %v23
  %v382 = vunpack.c.h.b16 %v23
  %v383 = vunpack.c.l.b16 %v24
  %v384 = vunpack.c.h.b16 %v24
  %v385 = vunpack.c.l.b16 %v25
  %v386 = vunpack.c.h.b16 %v25
  %v387 = vunpack.c.l.b16 %v26
  %v388 = vunpack.c.h.b16 %v26
  %v389 = vunpack.c.l.b16 %v27
  %v390 = vunpack.c.l.b16 %v28
  %v391 = vunpack.c.h.b16 %v28
  %v392 = vunpack.c.l.b16 %v29
  %v393 = vunpack.c.h.b16 %v29
  %v394 = vunpack.c.l.b16 %v30
  %v395 = vunpack.c.h.b16 %v30
  %v396 = vunpack.c.l.b16 %v31
  %v397 = vunpack.c.h.b16 %v31
  %v398 = vunpack.c.l.b16 %v32
  %v399 = vunpack.c.h.b16 %v32
  %v400 = vunpack.c.l.b16 %v33
  %v401 = vunpack.c.h.b16 %v33
  %v402 = vunpack.c.l.b16 %v34
  %v403 = vunpack.c.l.b16 %v35
  %v404 = vunpack.c.h.b16 %v35
  %v405 = vunpack.c.l.b16 %v36
  %v406 = vunpack.c.h.b16 %v36
  %v407 = vunpack.c.l.b16 %v37
  %v408 = vunpack.c.h.b16 %v37
  %v409 = vunpack.c.l.b16 %v38
  %v410 = vunpack.c.h.b16 %v38
  %v411 = vunpack.c.l.b16 %v39
  %v412 = vunpack.c.h.b16 %v39
  %v413 = vunpack.c.l.b16 %v40
  %v414 = vunpack.c.h.b16 %v40
  %v415 = vunpack.c.l.b16 %v41
  %v416 = vunpack.c.l.b16 %v42
  %v417 = vunpack.c.h.b16 %v42
  %v418 = vunpack.c.l.b16 %v43
  %v419 = vunpack.c.h.b16 %v43
  %v420 = vunpack.c.l.b16 %v44
  %v421 = vunpack.c.h.b16 %v44
  %v422 = vunpack.c.l.b16 %v45
  %v423 = vunpack.c.h.b16 %v45
  %v424 = vunpack.c.l.b16 %v46
  %v425 = vunpack.c.h.b16 %v46
  %v426 = vunpack.c.l.b16 %v47
  %v427 = vunpack.c.h.b16 %v47
  %v428 = vunpack.c.l.b16 %v48
  %v429 = vunpack.c.l.b16 %v49
  %v430 = vunpack.c.h.b16 %v49
  %v431 = vunpack.c.l.b16 %v50
  %v432 = vunpack.c.h.b16 %v50
  %v433 = vunpack.c.l.b16 %v51
  %v434 = vunpack.c.h.b16 %v51
  %v435 = vunpack.c.l.b16 %v52
  %v436 = vunpack.c.h.b16 %v52
  %v437 = vunpack.c.l.b16 %v53
  %v438 = vunpack.c.h.b16 %v53
  %v439 = vunpack.c.l.b16 %v54
  %v440 = vunpack.c.h.b16 %v54
  %v441 = vunpack.c.l.b16 %v55
  %v442 = vunpack.c.l.b16 %v56
  %v443 = vunpack.c.h.b16 %v56
  %v444 = vunpack.c.l.b16 %v57
  %v445 = vunpack.c.h.b16 %v57
  %v446 = vunpack.c.l.b16 %v58
  %v447 = vunpack.c.h.b16 %v58
  %v448 = vunpack.c.l.b16 %v59
  %v449 = vunpack.c.h.b16 %v59
  %v450 = vunpack.c.l.b16 %v60
  %v451 = vunpack.c.h.b16 %v60
  %v452 = vunpack.c.l.b16 %v61
  %v453 = vunpack.c.h.b16 %v61
  %v454 = vunpack.c.l.b16 %v62
  %v455 = vunpack.c.l.b16 %v63
  %v456 = vunpack.c.h.b16 %v63
  %v457 = vunpack.c.l.b16 %v64
  %v458 = vunpack.c.h.b16 %v64
  %v459 = vunpack.c.l.b16 %v65
  %v460 = vunpack.c.h.b16 %v65
  %v461 = vunpack.c.l.b16 %v66
  %v462 = vunpack.c.h.b16 %v66
  %v463 = vunpack.c.l.b16 %v67
  %v464 = vunpack.c.h.b16 %v67
  %v465 = vunpack.c.l.b16 %v68
  %v466 = vunpack.c.h.b16 %v68
  %v467 = vunpack.c.l.b16 %v69
  %v468 = vunpack.c.l.b16 %v70
  %v469 = vunpack.c.h.b16 %v70
  %v470 = vunpack.c.l.b16 %v71
  %v471 = vunpack.c.h.b16 %v71
  %v472 = vunpack.c.l.b16 %v72
  %v473 = vunpack.c.h.b16 %v72
  %v474 = vunpack.c.l.b16 %v73
  %v475 = vunpack.c.h.b16 %v73
  %v476 = vunpack.c.l.b16 %v74
  %v477 = vunpack.c.h.b16 %v74
  %v478 = vunpack.c.l.b16 %v75
  %v479 = vunpack.c.h.b16 %v75
  %v480 = vunpack.c.l.b16 %v76
  %v481 = vpack.c.b16 %v390, %v377
  %v482 = vpack.c.b16 %v391, %v378
  %v483 = vpack.c.b16 %v392, %v379
  %v484 = vpack.c.b16 %v393, %v380
  %v485 = vpack.c.b16 %v394, %v381
  %v486 = vpack.c.b16 %v395, %v382
  %v487 = vpack.c.b16 %v396, %v383
  %v488 = vpack.c.b16 %v397, %v384
  %v489 = vpack.c.b16 %v398, %v385
  %v490 = vpack.c.b16 %v399, %v386
  %v491 = vpack.c.b16 %v400, %v387
  %v492 = vpack.c.b16 %v401, %v388
  %v493 = vpack.c.b16 %v402, %v389
  %v494 = vpack.c.b16 %v416, %v403
  %v495 = vpack.c.b16 %v417, %v404
  %v496 = vpack.c.b16 %v418, %v405
  %v497 = vpack.c.b16 %v419, %v406
  %v498 = vpack.c.b16 %v420, %v407
  %v499 = vpack.c.b16 %v421, %v408
  %v500 = vpack.c.b16 %v422, %v409
  %v501 = vpack.c.b16 %v423, %v410
  %v502 = vpack.c.b16 %v424, %v411
  %v503 = vpack.c.b16 %v425, %v412
  %v504 = vpack.c.b16 %v426, %v413
  %v505 = vpack.c.b16 %v427, %v414
  %v506 = vpack.c.b16 %v428, %v415
  %v507 = vpack.c.b16 %v442, %v429
  %v508 = vpack.c.b16 %v443, %v430
  %v509 = vpack.c.b16 %v444, %v431
  %v510 = vpack.c.b16 %v445, %v432
  %v511 = vpack.c.b16 %v446, %v433
  %v512 = vpack.c.b16 %v447, %v434
  %v513 = vpack.c.b16 %v448, %v435
  %v514 = vpack.c.b16 %v449, %v436
  %v515 = vpack.c.b16 %v450, %v437
  %v516 = vpack.c.b16 %v451, %v438
  %v517 = vpack.c.b16 %v452, %v439
  %v518 = vpack.c.b16 %v453, %v440
  %v519 = vpack.c.b16 %v454, %v441
  %v520 = vpack.c.b16 %v468, %v455
  %v521 = vpack.c.b16 %v469, %v456
  %v522 = vpack.c.b16 %v470, %v457
  %v523 = vpack.c.b16 %v471, %v458
  %v524 = vpack.c.b16 %v472, %v459
  %v525 = vpack.c.b16 %v473, %v460
  %v526 = vpack.c.b16 %v474, %v461
  %v527 = vpack.c.b16 %v475, %v462
  %v528 = vpack.c.b16 %v476, %v463
  %v529 = vpack.c.b16 %v477, %v464
  %v530 = vpack.c.b16 %v478, %v465
  %v531 = vpack.c.b16 %v479, %v466
  %v532 = vpack.c.b16 %v480, %v467
  %v777 = vunpack.c.l.b16 %v77
  %v778 = vunpack.c.l.b16 %v78
  %v779 = vunpack.c.l.b16 %v79
  %v780 = vunpack.c.l.b16 %v80
  %v781 = vunpack.c.l.b16 %v81
  %v782 = vunpack.c.l.b16 %v82
  %v783 = vunpack.c.l.b16 %v83
  %v784 = vunpack.c.l.b16 %v84
  %v785 = vunpack.c.l.b16 %v85
  %v786 = vunpack.c.l.b16 %v86
  %v787 = vunpack.c.l.b16 %v87
  %v788 = vunpack.c.l.b16 %v88
  %v789 = vunpack.c.l.b16 %v89
  %v790 = vunpack.c.l.b16 %v90
  %v791 = vunpack.c.l.b16 %v91
  %v792 = vunpack.c.l.b16 %v92
  %v793 = vunpack.c.l.b16 %v93
  %v794 = vunpack.c.l.b16 %v94
  %v795 = vunpack.c.l.b16 %v95
  %v796 = vunpack.c.l.b16 %v96
  %v797 = vunpack.c.l.b16 %v97
  %v798 = vunpack.c.l.b16 %v98
  %v799 = vunpack.c.l.b16 %v99
  %v800 = vunpack.c.l.b16 %v100
  %v801 = vunpack.c.l.b16 %v101
  %v802 = vunpack.c.l.b16 %v102
  %v803 = vunpack.c.l.b16 %v103
  %v804 = vunpack.c.l.b16 %v104
  %v805 = vunpack.c.l.b16 %v105
  %v806 = vunpack.c.l.b16 %v106
  %v807 = vunpack.c.l.b16 %v107
  %v808 = vunpack.c.l.b16 %v108
  %v809 = vunpack.c.l.b16 %v109
  %v810 = vunpack.c.l.b16 %v110
  %v811 = vunpack.c.l.b16 %v111
  %v812 = vunpack.c.l.b16 %v112
  %v813 = vunpack.c.l.b16 %v113
  %v814 = vunpack.c.l.b16 %v114
  %v815 = vunpack.c.l.b16 %v115
  %v816 = vunpack.c.l.b16 %v116
  %v817 = vunpack.c.l.b16 %v117
  %v818 = vunpack.c.l.b16 %v118
  %v819 = vunpack.c.l.b16 %v119
  %v820 = vunpack.c.l.b16 %v120
  %v821 = vunpack.c.l.b16 %v121
  %v822 = vunpack.c.l.b16 %v122
  %v823 = vunpack.c.l.b16 %v123
  %v824 = vunpack.c.l.b16 %v124
  %v825 = vunpack.c.l.b16 %v125
  %v826 = vunpack.c.l.b16 %v126
  %v827 = vunpack.c.l.b16 %v127
  %v828 = vunpack.c.l.b16 %v128
  %v829 = vunpack.c.l.b16 %v129
  %v830 = vunpack.c.l.b16 %v130
  %v831 = vunpack.c.l.b16 %v131
  %v832 = vunpack.c.l.b16 %v132
  %v833 = vunpack.c.l.b16 %v133
  %v834 = vunpack.c.l.b16 %v134
  %v835 = vunpack.c.l.b16 %v135
  %v836 = vunpack.c.l.b16 %v136
  %v837 = vunpack.c.l.b16 %v137
  %v838 = vunpack.c.l.b16 %v138
  %v839 = vunpack.c.l.b16 %v139
  %v840 = vunpack.c.l.b16 %v140
  %v841 = vunpack.c.l.b16 %v141
  %v842 = vunpack.c.l.b16 %v142
  %v843 = vunpack.c.l.b16 %v143
  %v844 = vunpack.c.l.b16 %v144
  %v845 = vunpack.c.l.b16 %v145
  %v846 = vunpack.c.l.b16 %v146
  %v847 = vunpack.c.l.b16 %v147
  %v848 = vunpack.c.l.b16 %v148
  %v849 = vunpack.c.l.b16 %v149
  %v850 = vunpack.c.l.b16 %v150
  %v851 = vunpack.c.l.b16 %v151
  %v852 = vunpack.c.l.b16 %v152
  %v853 = vunpack.c.l.b16 %v153
  %v854 = vunpack.c.l.b16 %v154
  %v855 = vunpack.c.l.b16 %v155
  %v856 = vunpack.c.l.b16 %v156
  %v857 = vunpack.c.l.b16 %v157
  %v858 = vunpack.c.l.b16 %v158
  %v859 = vunpack.c.l.b16 %v159
  %v860 = vunpack.c.l.b16 %v160
  %v861 = vunpack.c.l.b16 %v161
  %v862 = vunpack.c.l.b16 %v162
  %v863 = vunpack.c.l.b16 %v163
  %v864 = vunpack.c.l.b16 %v164
  %v865 = vunpack.c.l.b16 %v165
  %v866 = vunpack.c.l.b16 %v166
  %v867 = vunpack.c.l.b16 %v167
  %v868 = vunpack.c.l.b16 %v168
  %v869 = vunpack.c.l.b16 %v169
  %v870 = vunpack.c.l.b16 %v170
  %v871 = vunpack.c.l.b16 %v171
  %v872 = vunpack.c.l.b16 %v172
  %v873 = vunpack.c.l.b16 %v173
  %v874 = vunpack.c.l.b16 %v174
  %v875 = vunpack.c.l.b16 %v175
  %v876 = vunpack.c.l.b16 %v176
  %v877 = vunpack.c.l.b16 %v177
  %v878 = vunpack.c.l.b16 %v178
  %v879 = vunpack.c.l.b16 %v179
  %v880 = vunpack.c.l.b16 %v180
  %v881 = vunpack.c.l.b16 %v181
  %v882 = vunpack.c.l.b16 %v182
  %v883 = vunpack.c.l.b16 %v183
  %v884 = vunpack.c.l.b16 %v184
  %v885 = vunpack.c.l.b16 %v185
  %v886 = vunpack.c.l.b16 %v186
  %v887 = vunpack.c.l.b16 %v187
  %v888 = vunpack.c.l.b16 %v188
  %v889 = vunpack.c.l.b16 %v189
  %v890 = vunpack.c.l.b16 %v190
  %v891 = vunpack.c.l.b16 %v191
  %v892 = vunpack.c.l.b16 %v192
  %v893 = vunpack.c.l.b16 %v193
  %v894 = vunpack.c.l.b16 %v194
  %v895 = vunpack.c.l.b16 %v195
  %v896 = vunpack.c.l.b16 %v196
  %v897 = vunpack.c.l.b16 %v197
  %v898 = vunpack.c.l.b16 %v198
  %v899 = vunpack.c.l.b16 %v199
  %v900 = vunpack.c.l.b16 %v200
  %v901 = vunpack.c.l.b16 %v201
  %v902 = vunpack.c.l.b16 %v202
  %v903 = vunpack.c.l.b16 %v203
  %v904 = vunpack.c.l.b16 %v204
  %v905 = vunpack.c.l.b16 %v205
  %v906 = vunpack.c.l.b16 %v206
  %v907 = vunpack.c.l.b16 %v207
  %v908 = vunpack.c.l.b16 %v208
  %v909 = vunpack.c.l.b16 %v209
  %v910 = vunpack.c.l.b16 %v210
  %v911 = vunpack.c.l.b16 %v211
  %v912 = vunpack.c.l.b16 %v212
  %v913 = vunpack.c.l.b16 %v213
  %v914 = vunpack.c.l.b16 %v214
  %v915 = vunpack.c.l.b16 %v215
  %v916 = vunpack.c.l.b16 %v216
  %v917 = vunpack.c.l.b16 %v217
  %v918 = vunpack.c.l.b16 %v218
  %v919 = vunpack.c.l.b16 %v219
  %v920 = vunpack.c.l.b16 %v220
  %v921 = vunpack.c.l.b16 %v221
  %v922 = vunpack.c.l.b16 %v222
  %v923 = vunpack.c.l.b16 %v223
  %v924 = vunpack.c.l.b16 %v224
  %v925 = vunpack.c.l.b16 %v225
  %v926 = vunpack.c.l.b16 %v226
  %v927 = vunpack.c.l.b16 %v227
  %v928 = vunpack.c.l.b16 %v228
  %v929 = vunpack.c.l.b16 %v229
  %v930 = vunpack.c.l.b16 %v230
  %v931 = vunpack.c.l.b16 %v231
  %v932 = vunpack.c.l.b16 %v232
  %v933 = vunpack.c.l.b16 %v233
  %v934 = vunpack.c.l.b16 %v234
  %v935 = vunpack.c.l.b16 %v235
  %v936 = vunpack.c.l.b16 %v236
  %v937 = vunpack.c.l.b16 %v237
  %v938 = vunpack.c.l.b16 %v238
  %v939 = vunpack.c.l.b16 %v239
  %v940 = vunpack.c.l.b16 %v240
  %v941 = vunpack.c.l.b16 %v241
  %v942 = vunpack.c.l.b16 %v242
  %v943 = vunpack.c.l.b16 %v243
  %v944 = vunpack.c.l.b16 %v244
  %v945 = vunpack.c.l.b16 %v245
  %v946 = vunpack.c.l.b16 %v246
  %v947 = vunpack.c.l.b16 %v247
  %v948 = vunpack.c.l.b16 %v248
  %v949 = vunpack.c.l.b16 %v249
  %v950 = vunpack.c.l.b16 %v250
  %v951 = vunpack.c.l.b16 %v251
  %v952 = vunpack.c.l.b16 %v252
  %v953 = vunpack.c.l.b16 %v253
  %v954 = vunpack.c.l.b16 %v254
  %v955 = vunpack.c.l.b16 %v255
  %v956 = vunpack.c.l.b16 %v256
  %v957 = vunpack.c.l.b16 %v257
  %v958 = vunpack.c.l.b16 %v258
  %v959 = vunpack.c.l.b16 %v259
  %v960 = vunpack.c.l.b16 %v260
  %v961 = vunpack.c.l.b16 %v261
  %v962 = vunpack.c.l.b16 %v262
  %v963 = vunpack.c.l.b16 %v263
  %v964 = vunpack.c.l.b16 %v264
  %v965 = vunpack.c.l.b16 %v265
  %v966 = vunpack.c.l.b16 %v266
  %v967 = vunpack.c.l.b16 %v267
  %v968 = vunpack.c.l.b16 %v268
  %v969 = vunpack.c.l.b16 %v269
  %v970 = vunpack.c.l.b16 %v270
  %v971 = vunpack.c.l.b16 %v271
  %v972 = vunpack.c.l.b16 %v272
  %v973 = vpack.c.b16 %v778, %v777
  %v974 = vpack.c.b16 %v780, %v779
  %v975 = vpack.c.b16 %v782, %v781
  %v976 = vpack.c.b16 %v784, %v783
  %v977 = vpack.c.b16 %v786, %v785
  %v978 = vpack.c.b16 %v788, %v787
  %v979 = vpack.c.b16 %v790, %v789
  %v980 = vpack.c.b16 %v792, %v791
  %v981 = vpack.c.b16 %v794, %v793
  %v982 = vpack.c.b16 %v796, %v795
  %v983 = vpack.c.b16 %v798, %v797
  %v984 = vpack.c.b16 %v800, %v799
  %v985 = vpack.c.b16 %v802, %v801
  %v986 = vpack.c.b16 %v804, %v803
  %v987 = vpack.c.b16 %v806, %v805
  %v988 = vpack.c.b16 %v808, %v807
  %v989 = vpack.c.b16 %v810, %v809
  %v990 = vpack.c.b16 %v812, %v811
  %v991 = vpack.c.b16 %v814, %v813
  %v992 = vpack.c.b16 %v816, %v815
  %v993 = vpack.c.b16 %v818, %v817
  %v994 = vpack.c.b16 %v820, %v819
  %v995 = vpack.c.b16 %v822, %v821
  %v996 = vpack.c.b16 %v824, %v823
  %v997 = vpack.c.b16 %v826, %v825
  %v998 = vpack.c.b16 %v828, %v827
  %v999 = vpack.c.b16 %v830, %v829
  %v1000 = vpack.c.b16 %v832, %v831
  %v1001 = vpack.c.b16 %v834, %v833
  %v1002 = vpack.c.b16 %v836, %v835
  %v1003 = vpack.c.b16 %v838, %v837
  %v1004 = vpack.c.b16 %v840, %v839
  %v1005 = vpack.c.b16 %v842, %v841
  %v1006 = vpack.c.b16 %v844, %v843
  %v1007 = vpack.c.b16 %v846, %v845
  %v1008 = vpack.c.b16 %v848, %v847
  %v1009 = vpack.c.b16 %v850, %v849
  %v1010 = vpack.c.b16 %v852, %v851
  %v1011 = vpack.c.b16 %v854, %v853
  %v1012 = vpack.c.b16 %v856, %v855
  %v1013 = vpack.c.b16 %v858, %v857
  %v1014 = vpack.c.b16 %v860, %v859
  %v1015 = vpack.c.b16 %v862, %v861
  %v1016 = vpack.c.b16 %v864, %v863
  %v1017 = vpack.c.b16 %v866, %v865
  %v1018 = vpack.c.b16 %v868, %v867
  %v1019 = vpack.c.b16 %v870, %v869
  %v1020 = vpack.c.b16 %v872, %v871
  %v1021 = vpack.c.b16 %v874, %v873
  %v1022 = vpack.c.b16 %v876, %v875
  %v1023 = vpack.c.b16 %v878, %v877
  %v1024 = vpack.c.b16 %v880, %v879
  %v1025 = vpack.c.b16 %v882, %v881
  %v1026 = vpack.c.b16 %v884, %v883
  %v1027 = vpack.c.b16 %v886, %v885
  %v1028 = vpack.c.b16 %v888, %v887
  %v1029 = vpack.c.b16 %v890, %v889
  %v1030 = vpack.c.b16 %v892, %v891
  %v1031 = vpack.c.b16 %v894, %v893
  %v1032 = vpack.c.b16 %v896, %v895
  %v1033 = vpack.c.b16 %v898, %v897
  %v1034 = vpack.c.b16 %v900, %v899
  %v1035 = vpack.c.b16 %v902, %v901
  %v1036 = vpack.c.b16 %v904, %v903
  %v1037 = vpack.c.b16 %v906, %v905
  %v1038 = vpack.c.b16 %v908, %v907
  %v1039 = vpack.c.b16 %v910, %v909
  %v1040 = vpack.c.b16 %v912, %v911
  %v1041 = vpack.c.b16 %v914, %v913
  %v1042 = vpack.c.b16 %v916, %v915
  %v1043 = vpack.c.b16 %v918, %v917
  %v1044 = vpack.c.b16 %v920, %v919
  %v1045 = vpack.c.b16 %v922, %v921
  %v1046 = vpack.c.b16 %v924, %v923
  %v1047 = vpack.c.b16 %v926, %v925
  %v1048 = vpack.c.b16 %v928, %v927
  %v1049 = vpack.c.b16 %v930, %v929
  %v1050 = vpack.c.b16 %v932, %v931
  %v1051 = vpack.c.b16 %v934, %v933
  %v1052 = vpack.c.b16 %v936, %v935
  %v1053 = vpack.c.b16 %v938, %v937
  %v1054 = vpack.c.b16 %v940, %v939
  %v1055 = vpack.c.b16 %v942, %v941
  %v1056 = vpack.c.b16 %v944, %v943
  %v1057 = vpack.c.b16 %v946, %v945
  %v1058 = vpack.c.b16 %v948, %v947
  %v1059 = vpack.c.b16 %v950, %v949
  %v1060 = vpack.c.b16 %v952, %v951
  %v1061 = vpack.c.b16 %v954, %v953
  %v1062 = vpack.c.b16 %v956, %v955
  %v1063 = vpack.c.b16 %v958, %v957
  %v1064 = vpack.c.b16 %v960, %v959
  %v1065 = vpack.c.b16 %v962, %v961
  %v1066 = vpack.c.b16 %v964, %v963
  %v1067 = vpack.c.b16 %v966, %v965
  %v1068 = vpack.c.b16 %v968, %v967
  %v1069 = vpack.c.b16 %v970, %v969
  %v1070 = vpack.c.b16 %v972, %v971
  %vm1169 = vcmask 261120
  %v1171 = vsel %vm1169, %v493, 0
  %v1174 = vsel %vm1169, %v506, 0
  %v1177 = vsel %vm1169, %v519, 0
  %v1180 = vsel %vm1169, %v532, 0
  %1182 = vmatprep.subr.bf16.mxu0 0
  %1183 = vmatpush1.bf16.msra.mxu0 %v980
  %1184 = vmatprep.subr.bf16.mxu0 0
  %1185 = vmatpush1.bf16.msra.mxu0 %v979
  %1186 = vmatprep.subr.bf16.mxu0 0
  %1187 = vmatpush1.bf16.msra.mxu0 %v978
  %1188 = vmatprep.subr.bf16.mxu0 0
  %1189 = vmatpush1.bf16.msra.mxu0 %v977
  %1190 = vmatprep.subr.bf16.mxu0 0
  %1191 = vmatpush1.bf16.msra.mxu0 %v976
  %1192 = vmatprep.subr.bf16.mxu0 0
  %1193 = vmatpush1.bf16.msra.mxu0 %v975
  %1194 = vmatprep.subr.bf16.mxu0 0
  %1195 = vmatpush1.bf16.msra.mxu0 %v974
  %1196 = vmatprep.subr.bf16.mxu0 0
  %1197 = vmatpush1.bf16.msra.mxu0 %v973
  %1198 = vmatprep.subr.bf16.mxu0 0
  %1199 = vmatpush2.bf16.msra.mxu0 %v988
  %1200 = vmatprep.subr.bf16.mxu0 0
  %1201 = vmatpush2.bf16.msra.mxu0 %v987
  %1202 = vmatprep.subr.bf16.mxu0 0
  %1203 = vmatpush2.bf16.msra.mxu0 %v986
  %1204 = vmatprep.subr.bf16.mxu0 0
  %1205 = vmatpush2.bf16.msra.mxu0 %v985
  %1206 = vmatprep.subr.bf16.mxu0 0
  %1207 = vmatpush2.bf16.msra.mxu0 %v984
  %1208 = vmatprep.subr.bf16.mxu0 0
  %1209 = vmatpush2.bf16.msra.mxu0 %v983
  %1210 = vmatprep.subr.bf16.mxu0 0
  %1211 = vmatpush2.bf16.msra.mxu0 %v982
  %1212 = vmatprep.subr.bf16.mxu0 0
  %1213 = vmatpush2.bf16.msra.mxu0 %v981
  %1214 = vmatprep.mubr.bf16.mxu0 %v482
  %1215 = vmatmul.mubr.bf16.gmra.mxu0 %v481
  %v1216 = vpop.f32.mrf.mxu0
  %v1217 = vadd.f32 %v284, %v1216
  %v1218 = vpop.f32.mrf.mxu0
  %v1219 = vpop.f32.mrf.mxu0
  %v1220 = vadd.f32 %v289, %v1219
  %v1221 = vpop.f32.mrf.mxu0
  %1222 = vmatprep.mubr.bf16.mxu0 %v495
  %1223 = vmatmul.mubr.bf16.gmra.mxu0 %v494
  %v1224 = vpop.f32.mrf.mxu0
  %v1225 = vadd.f32 %v294, %v1224
  %v1226 = vpop.f32.mrf.mxu0
  %v1227 = vpop.f32.mrf.mxu0
  %v1228 = vadd.f32 %v299, %v1227
  %v1229 = vpop.f32.mrf.mxu0
  %1230 = vmatprep.mubr.bf16.mxu0 %v508
  %1231 = vmatmul.mubr.bf16.gmra.mxu0 %v507
  %v1232 = vpop.f32.mrf.mxu0
  %v1233 = vadd.f32 %v304, %v1232
  %v1234 = vpop.f32.mrf.mxu0
  %v1235 = vpop.f32.mrf.mxu0
  %v1236 = vadd.f32 %v309, %v1235
  %v1237 = vpop.f32.mrf.mxu0
  %1238 = vmatprep.mubr.bf16.mxu0 %v521
  %1239 = vmatmul.mubr.bf16.gmra.mxu0 %v520
  %v1240 = vpop.f32.mrf.mxu0
  %v1241 = vadd.f32 %v314, %v1240
  %v1242 = vpop.f32.mrf.mxu0
  %v1243 = vpop.f32.mrf.mxu0
  %v1244 = vadd.f32 %v319, %v1243
  %v1245 = vpop.f32.mrf.mxu0
  %1246 = vdwg.mxu0
  %1247 = vmatprep.subr.bf16.mxu0 0
  %1248 = vmatpush1.bf16.msra.mxu0 %v996
  %1249 = vmatprep.subr.bf16.mxu0 0
  %1250 = vmatpush1.bf16.msra.mxu0 %v995
  %1251 = vmatprep.subr.bf16.mxu0 0
  %1252 = vmatpush1.bf16.msra.mxu0 %v994
  %1253 = vmatprep.subr.bf16.mxu0 0
  %1254 = vmatpush1.bf16.msra.mxu0 %v993
  %1255 = vmatprep.subr.bf16.mxu0 0
  %1256 = vmatpush1.bf16.msra.mxu0 %v992
  %1257 = vmatprep.subr.bf16.mxu0 0
  %1258 = vmatpush1.bf16.msra.mxu0 %v991
  %1259 = vmatprep.subr.bf16.mxu0 0
  %1260 = vmatpush1.bf16.msra.mxu0 %v990
  %1261 = vmatprep.subr.bf16.mxu0 0
  %1262 = vmatpush1.bf16.msra.mxu0 %v989
  %1263 = vmatprep.subr.bf16.mxu0 0
  %1264 = vmatpush2.bf16.msra.mxu0 %v1004
  %1265 = vmatprep.subr.bf16.mxu0 0
  %1266 = vmatpush2.bf16.msra.mxu0 %v1003
  %1267 = vmatprep.subr.bf16.mxu0 0
  %1268 = vmatpush2.bf16.msra.mxu0 %v1002
  %1269 = vmatprep.subr.bf16.mxu0 0
  %1270 = vmatpush2.bf16.msra.mxu0 %v1001
  %1271 = vmatprep.subr.bf16.mxu0 0
  %1272 = vmatpush2.bf16.msra.mxu0 %v1000
  %1273 = vmatprep.subr.bf16.mxu0 0
  %1274 = vmatpush2.bf16.msra.mxu0 %v999
  %1275 = vmatprep.subr.bf16.mxu0 0
  %1276 = vmatpush2.bf16.msra.mxu0 %v998
  %1277 = vmatprep.subr.bf16.mxu0 0
  %1278 = vmatpush2.bf16.msra.mxu0 %v997
  %1279 = vmatprep.mubr.bf16.mxu0 %v484
  %1280 = vmatmul.mubr.bf16.gmra.mxu0 %v483
  %v1281 = vpop.f32.mrf.mxu0
  %v1282 = vadd.f32 %v1217, %v1281
  %v1283 = vpop.f32.mrf.mxu0
  %v1284 = vpop.f32.mrf.mxu0
  %v1285 = vadd.f32 %v1220, %v1284
  %v1286 = vpop.f32.mrf.mxu0
  %1287 = vmatprep.mubr.bf16.mxu0 %v497
  %1288 = vmatmul.mubr.bf16.gmra.mxu0 %v496
  %v1289 = vpop.f32.mrf.mxu0
  %v1290 = vadd.f32 %v1225, %v1289
  %v1291 = vpop.f32.mrf.mxu0
  %v1292 = vpop.f32.mrf.mxu0
  %v1293 = vadd.f32 %v1228, %v1292
  %v1294 = vpop.f32.mrf.mxu0
  %1295 = vmatprep.mubr.bf16.mxu0 %v510
  %1296 = vmatmul.mubr.bf16.gmra.mxu0 %v509
  %v1297 = vpop.f32.mrf.mxu0
  %v1298 = vadd.f32 %v1233, %v1297
  %v1299 = vpop.f32.mrf.mxu0
  %v1300 = vpop.f32.mrf.mxu0
  %v1301 = vadd.f32 %v1236, %v1300
  %v1302 = vpop.f32.mrf.mxu0
  %1303 = vmatprep.mubr.bf16.mxu0 %v523
  %1304 = vmatmul.mubr.bf16.gmra.mxu0 %v522
  %v1305 = vpop.f32.mrf.mxu0
  %v1306 = vadd.f32 %v1241, %v1305
  %v1307 = vpop.f32.mrf.mxu0
  %v1308 = vpop.f32.mrf.mxu0
  %v1309 = vadd.f32 %v1244, %v1308
  %v1310 = vpop.f32.mrf.mxu0
  %1311 = vdwg.mxu0
  %1312 = vmatprep.subr.bf16.mxu0 0
  %1313 = vmatpush1.bf16.msra.mxu0 %v1012
  %1314 = vmatprep.subr.bf16.mxu0 0
  %1315 = vmatpush1.bf16.msra.mxu0 %v1011
  %1316 = vmatprep.subr.bf16.mxu0 0
  %1317 = vmatpush1.bf16.msra.mxu0 %v1010
  %1318 = vmatprep.subr.bf16.mxu0 0
  %1319 = vmatpush1.bf16.msra.mxu0 %v1009
  %1320 = vmatprep.subr.bf16.mxu0 0
  %1321 = vmatpush1.bf16.msra.mxu0 %v1008
  %1322 = vmatprep.subr.bf16.mxu0 0
  %1323 = vmatpush1.bf16.msra.mxu0 %v1007
  %1324 = vmatprep.subr.bf16.mxu0 0
  %1325 = vmatpush1.bf16.msra.mxu0 %v1006
  %1326 = vmatprep.subr.bf16.mxu0 0
  %1327 = vmatpush1.bf16.msra.mxu0 %v1005
  %1328 = vmatprep.subr.bf16.mxu0 0
  %1329 = vmatpush2.bf16.msra.mxu0 %v1020
  %1330 = vmatprep.subr.bf16.mxu0 0
  %1331 = vmatpush2.bf16.msra.mxu0 %v1019
  %1332 = vmatprep.subr.bf16.mxu0 0
  %1333 = vmatpush2.bf16.msra.mxu0 %v1018
  %1334 = vmatprep.subr.bf16.mxu0 0
  %1335 = vmatpush2.bf16.msra.mxu0 %v1017
  %1336 = vmatprep.subr.bf16.mxu0 0
  %1337 = vmatpush2.bf16.msra.mxu0 %v1016
  %1338 = vmatprep.subr.bf16.mxu0 0
  %1339 = vmatpush2.bf16.msra.mxu0 %v1015
  %1340 = vmatprep.subr.bf16.mxu0 0
  %1341 = vmatpush2.bf16.msra.mxu0 %v1014
  %1342 = vmatprep.subr.bf16.mxu0 0
  %1343 = vmatpush2.bf16.msra.mxu0 %v1013
  %1344 = vmatprep.mubr.bf16.mxu0 %v486
  %1345 = vmatmul.mubr.bf16.gmra.mxu0 %v485
  %v1346 = vpop.f32.mrf.mxu0
  %v1347 = vadd.f32 %v1282, %v1346
  %v1348 = vpop.f32.mrf.mxu0
  %v1349 = vpop.f32.mrf.mxu0
  %v1350 = vadd.f32 %v1285, %v1349
  %v1351 = vpop.f32.mrf.mxu0
  %1352 = vmatprep.mubr.bf16.mxu0 %v499
  %1353 = vmatmul.mubr.bf16.gmra.mxu0 %v498
  %v1354 = vpop.f32.mrf.mxu0
  %v1355 = vadd.f32 %v1290, %v1354
  %v1356 = vpop.f32.mrf.mxu0
  %v1357 = vpop.f32.mrf.mxu0
  %v1358 = vadd.f32 %v1293, %v1357
  %v1359 = vpop.f32.mrf.mxu0
  %1360 = vmatprep.mubr.bf16.mxu0 %v512
  %1361 = vmatmul.mubr.bf16.gmra.mxu0 %v511
  %v1362 = vpop.f32.mrf.mxu0
  %v1363 = vadd.f32 %v1298, %v1362
  %v1364 = vpop.f32.mrf.mxu0
  %v1365 = vpop.f32.mrf.mxu0
  %v1366 = vadd.f32 %v1301, %v1365
  %v1367 = vpop.f32.mrf.mxu0
  %1368 = vmatprep.mubr.bf16.mxu0 %v525
  %1369 = vmatmul.mubr.bf16.gmra.mxu0 %v524
  %v1370 = vpop.f32.mrf.mxu0
  %v1371 = vadd.f32 %v1306, %v1370
  %v1372 = vpop.f32.mrf.mxu0
  %v1373 = vpop.f32.mrf.mxu0
  %v1374 = vadd.f32 %v1309, %v1373
  %v1375 = vpop.f32.mrf.mxu0
  %1376 = vdwg.mxu0
  %1377 = vmatprep.subr.bf16.mxu0 0
  %1378 = vmatpush1.bf16.msra.mxu0 %v1028
  %1379 = vmatprep.subr.bf16.mxu0 0
  %1380 = vmatpush1.bf16.msra.mxu0 %v1027
  %1381 = vmatprep.subr.bf16.mxu0 0
  %1382 = vmatpush1.bf16.msra.mxu0 %v1026
  %1383 = vmatprep.subr.bf16.mxu0 0
  %1384 = vmatpush1.bf16.msra.mxu0 %v1025
  %1385 = vmatprep.subr.bf16.mxu0 0
  %1386 = vmatpush1.bf16.msra.mxu0 %v1024
  %1387 = vmatprep.subr.bf16.mxu0 0
  %1388 = vmatpush1.bf16.msra.mxu0 %v1023
  %1389 = vmatprep.subr.bf16.mxu0 0
  %1390 = vmatpush1.bf16.msra.mxu0 %v1022
  %1391 = vmatprep.subr.bf16.mxu0 0
  %1392 = vmatpush1.bf16.msra.mxu0 %v1021
  %1393 = vmatprep.subr.bf16.mxu0 0
  %1394 = vmatpush2.bf16.msra.mxu0 %v1036
  %1395 = vmatprep.subr.bf16.mxu0 0
  %1396 = vmatpush2.bf16.msra.mxu0 %v1035
  %1397 = vmatprep.subr.bf16.mxu0 0
  %1398 = vmatpush2.bf16.msra.mxu0 %v1034
  %1399 = vmatprep.subr.bf16.mxu0 0
  %1400 = vmatpush2.bf16.msra.mxu0 %v1033
  %1401 = vmatprep.subr.bf16.mxu0 0
  %1402 = vmatpush2.bf16.msra.mxu0 %v1032
  %1403 = vmatprep.subr.bf16.mxu0 0
  %1404 = vmatpush2.bf16.msra.mxu0 %v1031
  %1405 = vmatprep.subr.bf16.mxu0 0
  %1406 = vmatpush2.bf16.msra.mxu0 %v1030
  %1407 = vmatprep.subr.bf16.mxu0 0
  %1408 = vmatpush2.bf16.msra.mxu0 %v1029
  %1409 = vmatprep.mubr.bf16.mxu0 %v488
  %1410 = vmatmul.mubr.bf16.gmra.mxu0 %v487
  %v1411 = vpop.f32.mrf.mxu0
  %v1412 = vadd.f32 %v1347, %v1411
  %v1413 = vpop.f32.mrf.mxu0
  %v1414 = vpop.f32.mrf.mxu0
  %v1415 = vadd.f32 %v1350, %v1414
  %v1416 = vpop.f32.mrf.mxu0
  %1417 = vmatprep.mubr.bf16.mxu0 %v501
  %1418 = vmatmul.mubr.bf16.gmra.mxu0 %v500
  %v1419 = vpop.f32.mrf.mxu0
  %v1420 = vadd.f32 %v1355, %v1419
  %v1421 = vpop.f32.mrf.mxu0
  %v1422 = vpop.f32.mrf.mxu0
  %v1423 = vadd.f32 %v1358, %v1422
  %v1424 = vpop.f32.mrf.mxu0
  %1425 = vmatprep.mubr.bf16.mxu0 %v514
  %1426 = vmatmul.mubr.bf16.gmra.mxu0 %v513
  %v1427 = vpop.f32.mrf.mxu0
  %v1428 = vadd.f32 %v1363, %v1427
  %v1429 = vpop.f32.mrf.mxu0
  %v1430 = vpop.f32.mrf.mxu0
  %v1431 = vadd.f32 %v1366, %v1430
  %v1432 = vpop.f32.mrf.mxu0
  %1433 = vmatprep.mubr.bf16.mxu0 %v527
  %1434 = vmatmul.mubr.bf16.gmra.mxu0 %v526
  %v1435 = vpop.f32.mrf.mxu0
  %v1436 = vadd.f32 %v1371, %v1435
  %v1437 = vpop.f32.mrf.mxu0
  %v1438 = vpop.f32.mrf.mxu0
  %v1439 = vadd.f32 %v1374, %v1438
  %v1440 = vpop.f32.mrf.mxu0
  %1441 = vdwg.mxu0
  %1442 = vmatprep.subr.bf16.mxu0 0
  %1443 = vmatpush1.bf16.msra.mxu0 %v1044
  %1444 = vmatprep.subr.bf16.mxu0 0
  %1445 = vmatpush1.bf16.msra.mxu0 %v1043
  %1446 = vmatprep.subr.bf16.mxu0 0
  %1447 = vmatpush1.bf16.msra.mxu0 %v1042
  %1448 = vmatprep.subr.bf16.mxu0 0
  %1449 = vmatpush1.bf16.msra.mxu0 %v1041
  %1450 = vmatprep.subr.bf16.mxu0 0
  %1451 = vmatpush1.bf16.msra.mxu0 %v1040
  %1452 = vmatprep.subr.bf16.mxu0 0
  %1453 = vmatpush1.bf16.msra.mxu0 %v1039
  %1454 = vmatprep.subr.bf16.mxu0 0
  %1455 = vmatpush1.bf16.msra.mxu0 %v1038
  %1456 = vmatprep.subr.bf16.mxu0 0
  %1457 = vmatpush1.bf16.msra.mxu0 %v1037
  %1458 = vmatprep.subr.bf16.mxu0 0
  %1459 = vmatpush2.bf16.msra.mxu0 %v1052
  %1460 = vmatprep.subr.bf16.mxu0 0
  %1461 = vmatpush2.bf16.msra.mxu0 %v1051
  %1462 = vmatprep.subr.bf16.mxu0 0
  %1463 = vmatpush2.bf16.msra.mxu0 %v1050
  %1464 = vmatprep.subr.bf16.mxu0 0
  %1465 = vmatpush2.bf16.msra.mxu0 %v1049
  %1466 = vmatprep.subr.bf16.mxu0 0
  %1467 = vmatpush2.bf16.msra.mxu0 %v1048
  %1468 = vmatprep.subr.bf16.mxu0 0
  %1469 = vmatpush2.bf16.msra.mxu0 %v1047
  %1470 = vmatprep.subr.bf16.mxu0 0
  %1471 = vmatpush2.bf16.msra.mxu0 %v1046
  %1472 = vmatprep.subr.bf16.mxu0 0
  %1473 = vmatpush2.bf16.msra.mxu0 %v1045
  %1474 = vmatprep.mubr.bf16.mxu0 %v490
  %1475 = vmatmul.mubr.bf16.gmra.mxu0 %v489
  %v1476 = vpop.f32.mrf.mxu0
  %v1477 = vadd.f32 %v1412, %v1476
  %v1478 = vpop.f32.mrf.mxu0
  %v1479 = vpop.f32.mrf.mxu0
  %v1480 = vadd.f32 %v1415, %v1479
  %v1481 = vpop.f32.mrf.mxu0
  %1482 = vmatprep.mubr.bf16.mxu0 %v503
  %1483 = vmatmul.mubr.bf16.gmra.mxu0 %v502
  %v1484 = vpop.f32.mrf.mxu0
  %v1485 = vadd.f32 %v1420, %v1484
  %v1486 = vpop.f32.mrf.mxu0
  %v1487 = vpop.f32.mrf.mxu0
  %v1488 = vadd.f32 %v1423, %v1487
  %v1489 = vpop.f32.mrf.mxu0
  %1490 = vmatprep.mubr.bf16.mxu0 %v516
  %1491 = vmatmul.mubr.bf16.gmra.mxu0 %v515
  %v1492 = vpop.f32.mrf.mxu0
  %v1493 = vadd.f32 %v1428, %v1492
  %v1494 = vpop.f32.mrf.mxu0
  %v1495 = vpop.f32.mrf.mxu0
  %v1496 = vadd.f32 %v1431, %v1495
  %v1497 = vpop.f32.mrf.mxu0
  %1498 = vmatprep.mubr.bf16.mxu0 %v529
  %1499 = vmatmul.mubr.bf16.gmra.mxu0 %v528
  %v1500 = vpop.f32.mrf.mxu0
  %v1501 = vadd.f32 %v1436, %v1500
  %v1502 = vpop.f32.mrf.mxu0
  %v1503 = vpop.f32.mrf.mxu0
  %v1504 = vadd.f32 %v1439, %v1503
  %v1505 = vpop.f32.mrf.mxu0
  %1506 = vdwg.mxu0
  %1507 = vmatprep.subr.bf16.mxu0 0
  %1508 = vmatpush1.bf16.msra.mxu0 %v1060
  %1509 = vmatprep.subr.bf16.mxu0 0
  %1510 = vmatpush1.bf16.msra.mxu0 %v1059
  %1511 = vmatprep.subr.bf16.mxu0 0
  %1512 = vmatpush1.bf16.msra.mxu0 %v1058
  %1513 = vmatprep.subr.bf16.mxu0 0
  %1514 = vmatpush1.bf16.msra.mxu0 %v1057
  %1515 = vmatprep.subr.bf16.mxu0 0
  %1516 = vmatpush1.bf16.msra.mxu0 %v1056
  %1517 = vmatprep.subr.bf16.mxu0 0
  %1518 = vmatpush1.bf16.msra.mxu0 %v1055
  %1519 = vmatprep.subr.bf16.mxu0 0
  %1520 = vmatpush1.bf16.msra.mxu0 %v1054
  %1521 = vmatprep.subr.bf16.mxu0 0
  %1522 = vmatpush1.bf16.msra.mxu0 %v1053
  %1523 = vmatprep.subr.bf16.mxu0 0
  %1524 = vmatpush2.bf16.msra.mxu0 %v1068
  %1525 = vmatprep.subr.bf16.mxu0 0
  %1526 = vmatpush2.bf16.msra.mxu0 %v1067
  %1527 = vmatprep.subr.bf16.mxu0 0
  %1528 = vmatpush2.bf16.msra.mxu0 %v1066
  %1529 = vmatprep.subr.bf16.mxu0 0
  %1530 = vmatpush2.bf16.msra.mxu0 %v1065
  %1531 = vmatprep.subr.bf16.mxu0 0
  %1532 = vmatpush2.bf16.msra.mxu0 %v1064
  %1533 = vmatprep.subr.bf16.mxu0 0
  %1534 = vmatpush2.bf16.msra.mxu0 %v1063
  %1535 = vmatprep.subr.bf16.mxu0 0
  %1536 = vmatpush2.bf16.msra.mxu0 %v1062
  %1537 = vmatprep.subr.bf16.mxu0 0
  %1538 = vmatpush2.bf16.msra.mxu0 %v1061
  %1539 = vmatprep.mubr.bf16.mxu0 %v492
  %1540 = vmatmul.mubr.bf16.gmra.mxu0 %v491
  %v1541 = vpop.f32.mrf.mxu0
  %v1542 = vadd.f32 %v1477, %v1541
  %v1543 = vpop.f32.mrf.mxu0
  %v1544 = vpop.f32.mrf.mxu0
  %v1545 = vadd.f32 %v1480, %v1544
  %v1546 = vpop.f32.mrf.mxu0
  %1547 = vmatprep.mubr.bf16.mxu0 %v505
  %1548 = vmatmul.mubr.bf16.gmra.mxu0 %v504
  %v1549 = vpop.f32.mrf.mxu0
  %v1550 = vadd.f32 %v1485, %v1549
  %v1551 = vpop.f32.mrf.mxu0
  %v1552 = vpop.f32.mrf.mxu0
  %v1553 = vadd.f32 %v1488, %v1552
  %v1554 = vpop.f32.mrf.mxu0
  %1555 = vmatprep.mubr.bf16.mxu0 %v518
  %1556 = vmatmul.mubr.bf16.gmra.mxu0 %v517
  %v1557 = vpop.f32.mrf.mxu0
  %v1558 = vadd.f32 %v1493, %v1557
  %v1559 = vpop.f32.mrf.mxu0
  %v1560 = vpop.f32.mrf.mxu0
  %v1561 = vadd.f32 %v1496, %v1560
  %v1562 = vpop.f32.mrf.mxu0
  %1563 = vmatprep.mubr.bf16.mxu0 %v531
  %1564 = vmatmul.mubr.bf16.gmra.mxu0 %v530
  %v1565 = vpop.f32.mrf.mxu0
  %v1566 = vadd.f32 %v1501, %v1565
  %v1567 = vpop.f32.mrf.mxu0
  %v1568 = vpop.f32.mrf.mxu0
  %v1569 = vadd.f32 %v1504, %v1568
  %v1570 = vpop.f32.mrf.mxu0
  %1571 = vdwg.mxu0
  %1572 = vmatprep.subr.bf16.mxu0 0
  %1573 = vmatpush1.bf16.msra.mxu0 0
  %1574 = vmatprep.subr.bf16.mxu0 0
  %1575 = vmatpush1.bf16.msra.mxu0 0
  %1576 = vmatprep.subr.bf16.mxu0 0
  %1577 = vmatpush1.bf16.msra.mxu0 0
  %1578 = vmatprep.subr.bf16.mxu0 0
  %1579 = vmatpush1.bf16.msra.mxu0 0
  %1580 = vmatprep.subr.bf16.mxu0 0
  %1581 = vmatpush1.bf16.msra.mxu0 0
  %1582 = vmatprep.subr.bf16.mxu0 0
  %1583 = vmatpush1.bf16.msra.mxu0 0
  %1584 = vmatprep.subr.bf16.mxu0 0
  %1585 = vmatpush1.bf16.msra.mxu0 %v1070
  %1586 = vmatprep.subr.bf16.mxu0 0
  %1587 = vmatpush1.bf16.msra.mxu0 %v1069
  %1588 = vmatprep.subr.bf16.mxu0 0
  %1589 = vmatpush2.bf16.msra.mxu0 0
  %1590 = vmatprep.subr.bf16.mxu0 0
  %1591 = vmatpush2.bf16.msra.mxu0 0
  %1592 = vmatprep.subr.bf16.mxu0 0
  %1593 = vmatpush2.bf16.msra.mxu0 0
  %1594 = vmatprep.subr.bf16.mxu0 0
  %1595 = vmatpush2.bf16.msra.mxu0 0
  %1596 = vmatprep.subr.bf16.mxu0 0
  %1597 = vmatpush2.bf16.msra.mxu0 0
  %1598 = vmatprep.subr.bf16.mxu0 0
  %1599 = vmatpush2.bf16.msra.mxu0 0
  %1600 = vmatprep.subr.bf16.mxu0 0
  %1601 = vmatpush2.bf16.msra.mxu0 0
  %1602 = vmatprep.subr.bf16.mxu0 0
  %1603 = vmatpush2.bf16.msra.mxu0 0
  %1604 = vmatprep.mubr.bf16.mxu0 0
  %1605 = vmatmul.mubr.bf16.gmra.mxu0 %v1171
  %v1606 = vpop.f32.mrf.mxu0
  %v1607 = vadd.f32 %v1542, %v1606
  %v1608 = vpop.f32.mrf.mxu0
  %v1609 = vpop.f32.mrf.mxu0
  %v1610 = vadd.f32 %v1545, %v1609
  %v1611 = vpop.f32.mrf.mxu0
  %1612 = vmatprep.mubr.bf16.mxu0 0
  %1613 = vmatmul.mubr.bf16.gmra.mxu0 %v1174
  %v1614 = vpop.f32.mrf.mxu0
  %v1615 = vadd.f32 %v1550, %v1614
  %v1616 = vpop.f32.mrf.mxu0
  %v1617 = vpop.f32.mrf.mxu0
  %v1618 = vadd.f32 %v1553, %v1617
  %v1619 = vpop.f32.mrf.mxu0
  %1620 = vmatprep.mubr.bf16.mxu0 0
  %1621 = vmatmul.mubr.bf16.gmra.mxu0 %v1177
  %v1622 = vpop.f32.mrf.mxu0
  %v1623 = vadd.f32 %v1558, %v1622
  %v1624 = vpop.f32.mrf.mxu0
  %v1625 = vpop.f32.mrf.mxu0
  %v1626 = vadd.f32 %v1561, %v1625
  %v1627 = vpop.f32.mrf.mxu0
  %1628 = vmatprep.mubr.bf16.mxu0 0
  %1629 = vmatmul.mubr.bf16.gmra.mxu0 %v1180
  %v1630 = vpop.f32.mrf.mxu0
  %v1631 = vadd.f32 %v1566, %v1630
  %v1632 = vpop.f32.mrf.mxu0
  %v1633 = vpop.f32.mrf.mxu0
  %v1634 = vadd.f32 %v1569, %v1633
  %v1635 = vpop.f32.mrf.mxu0
  %1636 = vdwg.mxu0
  %v1637 = vmul.f32 %v1607, 0.5
  %v1638 = vmul.f32 %v1610, 0.5
  %v1639 = vmul.f32 %v1615, 0.5
  %v1640 = vmul.f32 %v1618, 0.5
  %v1641 = vmul.f32 %v1623, 0.5
  %v1642 = vmul.f32 %v1626, 0.5
  %v1643 = vmul.f32 %v1631, 0.5
  %v1644 = vmul.f32 %v1634, 0.5
  %v1645 = vmul.f32 %v1607, 0.70710677
  %v1646 = vmul.f32 %v1610, 0.70710677
  %v1647 = vmul.f32 %v1615, 0.70710677
  %v1648 = vmul.f32 %v1618, 0.70710677
  %v1649 = vmul.f32 %v1623, 0.70710677
  %v1650 = vmul.f32 %v1626, 0.70710677
  %v1651 = vmul.f32 %v1631, 0.70710677
  %v1652 = vmul.f32 %v1634, 0.70710677
  %vm1653 = vcmp.ge.f32.partialorder %v1645, 0.0
  %vm1654 = vcmp.ge.f32.partialorder %v1646, 0.0
  %vm1655 = vcmp.ge.f32.partialorder %v1647, 0.0
  %vm1656 = vcmp.ge.f32.partialorder %v1648, 0.0
  %vm1657 = vcmp.ge.f32.partialorder %v1649, 0.0
  %vm1658 = vcmp.ge.f32.partialorder %v1650, 0.0
  %vm1659 = vcmp.ge.f32.partialorder %v1651, 0.0
  %vm1660 = vcmp.ge.f32.partialorder %v1652, 0.0
  %v1661 = vsel %vm1653, 1.0, -1.0
  %v1662 = vsel %vm1654, 1.0, -1.0
  %v1663 = vsel %vm1655, 1.0, -1.0
  %v1664 = vsel %vm1656, 1.0, -1.0
  %v1665 = vsel %vm1657, 1.0, -1.0
  %v1666 = vsel %vm1658, 1.0, -1.0
  %v1667 = vsel %vm1659, 1.0, -1.0
  %v1668 = vsel %vm1660, 1.0, -1.0
  %v1669 = vand.u32 2147483647, %v1645
  %v1670 = vand.u32 2147483647, %v1646
  %v1671 = vand.u32 2147483647, %v1647
  %v1672 = vand.u32 2147483647, %v1648
  %v1673 = vand.u32 2147483647, %v1649
  %v1674 = vand.u32 2147483647, %v1650
  %v1675 = vand.u32 2147483647, %v1651
  %v1676 = vand.u32 2147483647, %v1652
  %v1677 = vmul.f32 %v1669, 0.3275911
  %v1678 = vmul.f32 %v1670, 0.3275911
  %v1679 = vmul.f32 %v1671, 0.3275911
  %v1680 = vmul.f32 %v1672, 0.3275911
  %v1681 = vmul.f32 %v1673, 0.3275911
  %v1682 = vmul.f32 %v1674, 0.3275911
  %v1683 = vmul.f32 %v1675, 0.3275911
  %v1684 = vmul.f32 %v1676, 0.3275911
  %v1685 = vadd.f32 %v1677, 1.0
  %v1686 = vadd.f32 %v1678, 1.0
  %v1687 = vadd.f32 %v1679, 1.0
  %v1688 = vadd.f32 %v1680, 1.0
  %v1689 = vadd.f32 %v1681, 1.0
  %v1690 = vadd.f32 %v1682, 1.0
  %v1691 = vadd.f32 %v1683, 1.0
  %v1692 = vadd.f32 %v1684, 1.0
  %v1693 = vrcp.pop %v1685
  %v1694 = vmul.f32 1.0, %v1693
  %v1695 = vrcp.pop %v1686
  %v1696 = vmul.f32 1.0, %v1695
  %v1697 = vrcp.pop %v1687
  %v1698 = vmul.f32 1.0, %v1697
  %v1699 = vrcp.pop %v1688
  %v1700 = vmul.f32 1.0, %v1699
  %v1701 = vrcp.pop %v1689
  %v1702 = vmul.f32 1.0, %v1701
  %v1703 = vrcp.pop %v1690
  %v1704 = vmul.f32 1.0, %v1703
  %v1705 = vrcp.pop %v1691
  %v1706 = vmul.f32 1.0, %v1705
  %v1707 = vrcp.pop %v1692
  %v1708 = vmul.f32 1.0, %v1707
  %v1709 = vmul.f32 %v1694, 1.0614054
  %v1710 = vmul.f32 %v1696, 1.0614054
  %v1711 = vmul.f32 %v1698, 1.0614054
  %v1712 = vmul.f32 %v1700, 1.0614054
  %v1713 = vmul.f32 %v1702, 1.0614054
  %v1714 = vmul.f32 %v1704, 1.0614054
  %v1715 = vmul.f32 %v1706, 1.0614054
  %v1716 = vmul.f32 %v1708, 1.0614054
  %v1717 = vadd.f32 %v1709, -1.4531521
  %v1718 = vadd.f32 %v1710, -1.4531521
  %v1719 = vadd.f32 %v1711, -1.4531521
  %v1720 = vadd.f32 %v1712, -1.4531521
  %v1721 = vadd.f32 %v1713, -1.4531521
  %v1722 = vadd.f32 %v1714, -1.4531521
  %v1723 = vadd.f32 %v1715, -1.4531521
  %v1724 = vadd.f32 %v1716, -1.4531521
  %v1725 = vmul.f32 %v1717, %v1694
  %v1726 = vmul.f32 %v1718, %v1696
  %v1727 = vmul.f32 %v1719, %v1698
  %v1728 = vmul.f32 %v1720, %v1700
  %v1729 = vmul.f32 %v1721, %v1702
  %v1730 = vmul.f32 %v1722, %v1704
  %v1731 = vmul.f32 %v1723, %v1706
  %v1732 = vmul.f32 %v1724, %v1708
  %v1733 = vadd.f32 %v1725, 1.4214138
  %v1734 = vadd.f32 %v1726, 1.4214138
  %v1735 = vadd.f32 %v1727, 1.4214138
  %v1736 = vadd.f32 %v1728, 1.4214138
  %v1737 = vadd.f32 %v1729, 1.4214138
  %v1738 = vadd.f32 %v1730, 1.4214138
  %v1739 = vadd.f32 %v1731, 1.4214138
  %v1740 = vadd.f32 %v1732, 1.4214138
  %v1741 = vmul.f32 %v1733, %v1694
  %v1742 = vmul.f32 %v1734, %v1696
  %v1743 = vmul.f32 %v1735, %v1698
  %v1744 = vmul.f32 %v1736, %v1700
  %v1745 = vmul.f32 %v1737, %v1702
  %v1746 = vmul.f32 %v1738, %v1704
  %v1747 = vmul.f32 %v1739, %v1706
  %v1748 = vmul.f32 %v1740, %v1708
  %v1749 = vadd.f32 %v1741, -0.28449672
  %v1750 = vadd.f32 %v1742, -0.28449672
  %v1751 = vadd.f32 %v1743, -0.28449672
  %v1752 = vadd.f32 %v1744, -0.28449672
  %v1753 = vadd.f32 %v1745, -0.28449672
  %v1754 = vadd.f32 %v1746, -0.28449672
  %v1755 = vadd.f32 %v1747, -0.28449672
  %v1756 = vadd.f32 %v1748, -0.28449672
  %v1757 = vmul.f32 %v1749, %v1694
  %v1758 = vmul.f32 %v1750, %v1696
  %v1759 = vmul.f32 %v1751, %v1698
  %v1760 = vmul.f32 %v1752, %v1700
  %v1761 = vmul.f32 %v1753, %v1702
  %v1762 = vmul.f32 %v1754, %v1704
  %v1763 = vmul.f32 %v1755, %v1706
  %v1764 = vmul.f32 %v1756, %v1708
  %v1765 = vadd.f32 %v1757, 0.2548296
  %v1766 = vadd.f32 %v1758, 0.2548296
  %v1767 = vadd.f32 %v1759, 0.2548296
  %v1768 = vadd.f32 %v1760, 0.2548296
  %v1769 = vadd.f32 %v1761, 0.2548296
  %v1770 = vadd.f32 %v1762, 0.2548296
  %v1771 = vadd.f32 %v1763, 0.2548296
  %v1772 = vadd.f32 %v1764, 0.2548296
  %v1773 = vmul.f32 %v1765, %v1694
  %v1774 = vmul.f32 %v1766, %v1696
  %v1775 = vmul.f32 %v1767, %v1698
  %v1776 = vmul.f32 %v1768, %v1700
  %v1777 = vmul.f32 %v1769, %v1702
  %v1778 = vmul.f32 %v1770, %v1704
  %v1779 = vmul.f32 %v1771, %v1706
  %v1780 = vmul.f32 %v1772, %v1708
  %v1781 = vsub.f32 0.0, %v1669
  %v1782 = vsub.f32 0.0, %v1670
  %v1783 = vsub.f32 0.0, %v1671
  %v1784 = vsub.f32 0.0, %v1672
  %v1785 = vsub.f32 0.0, %v1673
  %v1786 = vsub.f32 0.0, %v1674
  %v1787 = vsub.f32 0.0, %v1675
  %v1788 = vsub.f32 0.0, %v1676
  %v1789 = vmul.f32 %v1781, %v1669
  %v1790 = vmul.f32 %v1782, %v1670
  %v1791 = vmul.f32 %v1783, %v1671
  %v1792 = vmul.f32 %v1784, %v1672
  %v1793 = vmul.f32 %v1785, %v1673
  %v1794 = vmul.f32 %v1786, %v1674
  %v1795 = vmul.f32 %v1787, %v1675
  %v1796 = vmul.f32 %v1788, %v1676
  %v1797 = vmul.f32 %v1789, 1.442695
  %v1798 = vpow.pop %v1797
  %v1799 = vmul.f32 %v1790, 1.442695
  %v1800 = vpow.pop %v1799
  %v1801 = vmul.f32 %v1791, 1.442695
  %v1802 = vpow.pop %v1801
  %v1803 = vmul.f32 %v1792, 1.442695
  %v1804 = vpow.pop %v1803
  %v1805 = vmul.f32 %v1793, 1.442695
  %v1806 = vpow.pop %v1805
  %v1807 = vmul.f32 %v1794, 1.442695
  %v1808 = vpow.pop %v1807
  %v1809 = vmul.f32 %v1795, 1.442695
  %v1810 = vpow.pop %v1809
  %v1811 = vmul.f32 %v1796, 1.442695
  %v1812 = vpow.pop %v1811
  %v1813 = vmul.f32 %v1773, %v1798
  %v1814 = vmul.f32 %v1774, %v1800
  %v1815 = vmul.f32 %v1775, %v1802
  %v1816 = vmul.f32 %v1776, %v1804
  %v1817 = vmul.f32 %v1777, %v1806
  %v1818 = vmul.f32 %v1778, %v1808
  %v1819 = vmul.f32 %v1779, %v1810
  %v1820 = vmul.f32 %v1780, %v1812
  %v1821 = vsub.f32 1.0, %v1813
  %v1822 = vsub.f32 1.0, %v1814
  %v1823 = vsub.f32 1.0, %v1815
  %v1824 = vsub.f32 1.0, %v1816
  %v1825 = vsub.f32 1.0, %v1817
  %v1826 = vsub.f32 1.0, %v1818
  %v1827 = vsub.f32 1.0, %v1819
  %v1828 = vsub.f32 1.0, %v1820
  %v1829 = vmul.f32 %v1661, %v1821
  %v1830 = vmul.f32 %v1662, %v1822
  %v1831 = vmul.f32 %v1663, %v1823
  %v1832 = vmul.f32 %v1664, %v1824
  %v1833 = vmul.f32 %v1665, %v1825
  %v1834 = vmul.f32 %v1666, %v1826
  %v1835 = vmul.f32 %v1667, %v1827
  %v1836 = vmul.f32 %v1668, %v1828
  %v1837 = vadd.f32 %v1829, 1.0
  %v1838 = vadd.f32 %v1830, 1.0
  %v1839 = vadd.f32 %v1831, 1.0
  %v1840 = vadd.f32 %v1832, 1.0
  %v1841 = vadd.f32 %v1833, 1.0
  %v1842 = vadd.f32 %v1834, 1.0
  %v1843 = vadd.f32 %v1835, 1.0
  %v1844 = vadd.f32 %v1836, 1.0
  %v1845 = vmul.f32 %v1637, %v1837
  %v1846 = vmul.f32 %v1638, %v1838
  %v1847 = vmul.f32 %v1639, %v1839
  %v1848 = vmul.f32 %v1640, %v1840
  %v1849 = vmul.f32 %v1641, %v1841
  %v1850 = vmul.f32 %v1642, %v1842
  %v1851 = vmul.f32 %v1643, %v1843
  %v1852 = vmul.f32 %v1644, %v1844
  %v1853 = vpack.c.bf16 %v1846, %v1845
  %v1854 = vpack.c.bf16 %v1848, %v1847
  %v1855 = vpack.c.bf16 %v1850, %v1849
  %v1856 = vpack.c.bf16 %v1852, %v1851
  %v1857 = vld [vmem:[%s3] sm:$0xf]
  %v1858 = vld [vmem:[%s4] sm:$0xff]
  %1860 = vset.pattern.permute.xlu0 0
  %1861 = vperm.xlu0 %1860, %v1858
  %v1862 = vpop.permute.xlu0 %1861
  %vm1864 = vcmask 523264
  %v1866 = vsel %vm1864, %v1857, 0
  %1868 = vmatprep.subr.bf16.mxu0 0
  %1869 = vmatpush1.bf16.msra.mxu0 0
  %1870 = vmatprep.subr.bf16.mxu0 0
  %1871 = vmatpush1.bf16.msra.mxu0 0
  %1872 = vmatprep.subr.bf16.mxu0 0
  %1873 = vmatpush1.bf16.msra.mxu0 0
  %1874 = vmatprep.subr.bf16.mxu0 0
  %1875 = vmatpush1.bf16.msra.mxu0 0
  %1876 = vmatprep.subr.bf16.mxu0 0
  %1877 = vmatpush1.bf16.msra.mxu0 %v1856
  %1878 = vmatprep.subr.bf16.mxu0 0
  %1879 = vmatpush1.bf16.msra.mxu0 %v1855
  %1880 = vmatprep.subr.bf16.mxu0 0
  %1881 = vmatpush1.bf16.msra.mxu0 %v1854
  %1882 = vmatprep.subr.bf16.mxu0 0
  %1883 = vmatpush1.bf16.msra.mxu0 %v1853
  %1884 = vmatprep.subr.bf16.mxu0 0
  %1885 = vmatpush2.bf16.msra.mxu0 0
  %1886 = vmatprep.subr.bf16.mxu0 0
  %1887 = vmatpush2.bf16.msra.mxu0 0
  %1888 = vmatprep.subr.bf16.mxu0 0
  %1889 = vmatpush2.bf16.msra.mxu0 0
  %1890 = vmatprep.subr.bf16.mxu0 0
  %1891 = vmatpush2.bf16.msra.mxu0 0
  %1892 = vmatprep.subr.bf16.mxu0 0
  %1893 = vmatpush2.bf16.msra.mxu0 0
  %1894 = vmatprep.subr.bf16.mxu0 0
  %1895 = vmatpush2.bf16.msra.mxu0 0
  %1896 = vmatprep.subr.bf16.mxu0 0
  %1897 = vmatpush2.bf16.msra.mxu0 0
  %1898 = vmatprep.subr.bf16.mxu0 0
  %1899 = vmatpush2.bf16.msra.mxu0 0
  %1900 = vmatprep.mubr.bf16.mxu0 0
  %1901 = vmatmul.mubr.bf16.gmra.mxu0 %v1866
  %v1902 = vpop.f32.mrf.mxu0
  %v1903 = vadd.f32 %v1862, %v1902
  %v1904 = vpop.f32.mrf.mxu0
  %v1905 = vpop.f32.mrf.mxu0
  %v1906 = vpop.f32.mrf.mxu0
  %1907 = vdwg.mxu0
  %vm1908 = vcmask 15360
  %1909 = vst.msk [vmem:[%s5] sm:$0xff] %vm1908, %v1903
  // Predicated region
  $region22: #{forward.5} parent=0 // pred_check
    _
  $region23: #{forward.5} parent=0 // pred_check_branch
    %1911 = sbr.rel (0) target = $region25
  $region24: #{forward.5} parent=0 // pred_region
    _
  $region25: #{forward.5} parent=0 // pred_fallthru
    _
  // Predicated region
  $region26: #{forward.5} parent=0 // pred_check
    _
  $region27: #{forward.5} parent=0 // pred_check_branch
    %1913 = sbr.rel (0) target = $region29
  $region28: #{forward.5} parent=0 // pred_region
    _
  $region29: #{forward.5} parent=0 // pred_fallthru
    _

</llo_original>
